<compile_context>
chip_gen: v5e
topology: v5e:2x2
jax: 0.10.0
libtpu: 0.0.40
codegen_flags: <defaults>
</compile_context>

<pallas_src>
import functools
import math

import jax
import jax.numpy as jnp
import numpy as np
from jax import lax
from jax.experimental import pallas as pl
from jax.experimental.pallas import tpu as pltpu


_NEG = -10000.0  # masked_fill value used by the reference module


# ---------------------------------------------------------------------------
# One-time probe: is the strided / sublane pltpu.roll available, and what is
# its sign convention?  Returns (lane_base_sign, sub_sign) or None (-> fall
# back to the per-diagonal loops).
# ---------------------------------------------------------------------------
@functools.lru_cache(maxsize=None)
def _probe_roll_conventions():
    n = 128
    sp = 3  # probe shift

    def kern(x_ref, o_strided_ref, o_sub_ref):
        o_strided_ref[...] = pltpu.roll(x_ref[...], sp, axis=1,
                                        stride=1, stride_axis=0)
        o_sub_ref[...] = pltpu.roll(x_ref[...], sp, axis=0)

    x = (jnp.arange(8, dtype=jnp.float32)[:, None] * 1000.0
         + jnp.arange(n, dtype=jnp.float32)[None, :])
    try:
        o1, o2 = pl.pallas_call(
            kern,
            out_shape=(jax.ShapeDtypeStruct((8, n), jnp.float32),
                       jax.ShapeDtypeStruct((8, n), jnp.float32)))(x)
        o1 = np.asarray(jax.block_until_ready(o1))
        o2 = np.asarray(jax.block_until_ready(o2))
    except Exception:
        return None

    # Strided lane roll: per-row jnp.roll amount amt[r]; need increment == +1.
    amt = []
    for r in range(8):
        col = int(round(float(o1[r, 0]))) % 1000
        amt.append((-col) % n)
    if any(((amt[r + 1] - amt[r]) % n) != 1 for r in range(7)):
        return None
    if amt[0] == sp % n:
        lane_base_sign = 1
    elif amt[0] == (-sp) % n:
        lane_base_sign = -1
    else:
        return None

    # Constant sublane roll: which direction does shift=sp move the rows?
    srows = [int(round(float(o2[r, 0]))) // 1000 for r in range(8)]
    if all(srows[r] == (r - sp) % 8 for r in range(8)):
        sub_sign = 1
    elif all(srows[r] == (r + sp) % 8 for r in range(8)):
        sub_sign = -1
    else:
        return None
    return lane_base_sign, sub_sign


# ---------------------------------------------------------------------------
# Pallas kernel: one (batch, head) pair per grid step; head axis is stateful.
# ---------------------------------------------------------------------------
def _mhsa_kernel(*refs, weff, use_rel, rel_fast, roll_shift, sub_sign, causal,
                 proximal_bias, compute_dtype, exp_dtype):
    (x_ref, c_ref, mrow_ref, mcol_ref,
     wq_ref, bq_ref, wk_ref, bk_ref, wv_ref, bv_ref,
     wo_ref, bo_ref) = refs[:12]
    i = 12
    if use_rel:
        ek_ref, ev_ref, bcode_ref = refs[i:i + 3]
        i += 3
    o_ref = refs[i]
    mb_ref, q_scr, k_scr, v_scr, out_scr = refs[i + 1:i + 6]

    h = pl.program_id(1)
    H, T, kc = q_scr.shape
    W2 = 2 * weff + 1
    scale = 1.0 / math.sqrt(kc)
    cd = compute_dtype
    is_f32 = (cd == np.dtype(np.float32))
    # HIGHEST only on the f32 validation path; bf16 production path uses default.
    prec = lax.Precision.HIGHEST if is_f32 else None

    # ---- once per batch element: merged mask/prox bias + fused projections ----
    @pl.when(h == 0)
    def _per_batch_setup():
        ri = lax.broadcasted_iota(jnp.int32, (T, T), 0)
        ci = lax.broadcasted_iota(jnp.int32, (T, T), 1)
        invalid = (mrow_ref[0] == 0.0) | (mcol_ref[0] == 0.0)
        if causal:
            invalid = invalid | (ci > ri)
        if proximal_bias:
            base = -jnp.log1p(jnp.abs((ci - ri).astype(jnp.float32)))
        else:
            base = jnp.zeros((T, T), jnp.float32)
        mb_ref[...] = jnp.where(invalid, _NEG, base)

        x = x_ref[0]
        c = c_ref[0]
        q_all = jnp.dot(x, wq_ref[...], preferred_element_type=jnp.float32,
                        precision=prec) + bq_ref[...]
        k_all = jnp.dot(c, wk_ref[...], preferred_element_type=jnp.float32,
                        precision=prec) + bk_ref[...]
        v_all = jnp.dot(c, wv_ref[...], preferred_element_type=jnp.float32,
                        precision=prec) + bv_ref[...]
        for hh in range(H):
            sl = slice(hh * kc, (hh + 1) * kc)
            q_scr[hh] = q_all[:, sl].astype(cd)
            k_scr[hh] = k_all[:, sl].astype(cd)
            v_scr[hh] = v_all[:, sl].astype(cd)

    q = q_scr[h]
    k = k_scr[h]
    v = v_scr[h]

    # scores = q @ k^T  (MXU, f32 accumulation)
    qk = lax.dot_general(q, k, (((1,), (1,)), ((), ())),
                         preferred_element_type=jnp.float32, precision=prec)

    diff = None
    if use_rel:
        # rel logits against the zero-padded embedding band: [T, C] (lane dense)
        ek = ek_ref[0]                        # [C, kc], rows >= W2 are zeros
        qe = lax.dot_general(q, ek, (((1,), (1,)), ((), ())),
                             preferred_element_type=jnp.float32, precision=prec)
        if rel_fast:
            # scatter qe[:, m] onto diagonal j - i = m - weff with ONE strided roll
            rolled = pltpu.roll(qe, roll_shift, axis=1, stride=1, stride_axis=0)
            qk = qk + rolled[:, :T]
        else:
            diff = (lax.broadcasted_iota(jnp.int32, (T, T), 1)
                    - lax.broadcasted_iota(jnp.int32, (T, T), 0))
            for m in range(W2):
                qk = qk + jnp.where(diff == m - weff, qe[:, m:m + 1], 0.0)

    # merged mask / causal / proximal bias (built once per batch element)
    mb = mb_ref[...]
    scores = jnp.where(mb == _NEG, _NEG, qk * scale + mb)

    # numerically stable softmax statistics (f32); p is never materialized
    s_max = jnp.max(scores, axis=-1, keepdims=True)
    sub = scores - s_max
    if exp_dtype == np.dtype(np.float32):
        e = jnp.exp(sub)
    else:
        e = jnp.exp(sub.astype(exp_dtype))    # bf16 EUP exp on v6e/v7x
    denom = jnp.sum(e.astype(jnp.float32), axis=-1, keepdims=True)
    if is_f32:
        inv = 1.0 / denom
    else:
        inv = pl.reciprocal(denom, approx=True)
    # TODO(synk): att_weights_dropout (identity at inference).

    out_h = jnp.dot(e.astype(cd), v, preferred_element_type=jnp.float32,
                    precision=prec)           # [T, kc], scaled by inv later

    if use_rel:
        ev = ev_ref[0]                        # [W2, kc]
        if rel_fast:
            # relative-value term directly in band coordinates: O(W * T * kc)
            qf = q.astype(jnp.float32)
            kf = k.astype(jnp.float32)
            code = bcode_ref[0]               # [T, W2]: 0 ok, 1 -> -1e4, 2 -> oob
            for m in range(W2):
                d = m - weff
                s = ((-d) * sub_sign) % T
                km = kf if s == 0 else pltpu.roll(kf, s, axis=0)
                qk_col = jnp.sum(qf * km, axis=1, keepdims=True)   # [T, 1]
                col = (qk_col + qe[:, m:m + 1]) * scale
                if proximal_bias:
                    col = col - math.log1p(abs(d))
                cc = code[:, m:m + 1]
                col = jnp.where(cc >= 0.5, _NEG, col)
                col_e = jnp.where(cc >= 1.5, 0.0, jnp.exp(col - s_max))
                out_h = out_h + col_e * ev[m:m + 1, :]
        else:
            e32 = e.astype(jnp.float32)
            for m in range(W2):
                diag = jnp.sum(jnp.where(diff == m - weff, e32, 0.0),
                               axis=1, keepdims=True)
                out_h = out_h + diag * ev[m:m + 1, :].astype(jnp.float32)

    out_scr[h] = (out_h * inv).astype(cd)

    # ---- last head: single fused output projection over all heads ----
    @pl.when(h == H - 1)
    def _finalize():
        parts = [out_scr[hh] for hh in range(H)]
        cat = parts[0] if H == 1 else jnp.concatenate(parts, axis=1)   # [T, F]
        o = jnp.dot(cat, wo_ref[...], preferred_element_type=jnp.float32,
                    precision=prec)
        o_ref[0] = (o + bo_ref[...]).astype(o_ref.dtype)
        # TODO(synk): output dropout (identity at inference).


# ---------------------------------------------------------------------------
# Plain-JAX wrapper
# ---------------------------------------------------------------------------
def glowtts_mhsa_forward(x, c, attn_mask, params, *, num_heads, window_size=None,
                         heads_share=True, causal=False, proximal_bias=False,
                         block_length=None, compute_dtype=jnp.bfloat16,
                         softmax_exp_dtype=None, rel_impl="auto"):
    """Forward pass; x, c: [B, T, F]; attn_mask: [B, T]; returns [B, T, F] f32.

    compute_dtype=float32 is the (slow, precision=HIGHEST) validation path.
    softmax_exp_dtype defaults to compute_dtype (bf16 exp on v6e/v7x); pass
    jnp.float32 on v5e.  Fully-masked query rows produce meaningless outputs
    (matching the reference); callers must mask them.
    """
    del heads_share  # inferred from the leading dim of emb_rel_* params
    assert block_length is None  # TODO(synk): block_length banding not implemented
    B, T, F = x.shape
    H = num_heads
    assert F % H == 0
    kc = F // H
    use_rel = window_size is not None
    cd = np.dtype(compute_dtype)
    exp_dt = np.dtype(softmax_exp_dtype) if softmax_exp_dtype is not None else cd

    # Conv1d(kernel=1) weights are [F_out, F_in]; transpose so output columns /
    # input rows are head-major, enabling the fused full-F matmuls.
    wq = params["wq"].T.astype(cd)          # [F, F]
    wk = params["wk"].T.astype(cd)
    wv = params["wv"].T.astype(cd)
    wo = params["wo"].T.astype(cd)
    bq = params["bq"].reshape(1, F).astype(jnp.float32)
    bk = params["bk"].reshape(1, F).astype(jnp.float32)
    bv = params["bv"].reshape(1, F).astype(jnp.float32)
    bo = params["bo"].reshape(1, F).astype(jnp.float32)

    m = attn_mask.astype(jnp.float32)
    m_row = m.reshape(B, 1, T)
    m_col = m.reshape(B, T, 1)

    x_cd = x.astype(cd)
    c_cd = c.astype(cd)

    in_specs = [
        pl.BlockSpec((1, T, F), lambda b, h: (b, 0, 0)),   # x
        pl.BlockSpec((1, T, F), lambda b, h: (b, 0, 0)),   # c
        pl.BlockSpec((1, 1, T), lambda b, h: (b, 0, 0)),   # mask over keys
        pl.BlockSpec((1, T, 1), lambda b, h: (b, 0, 0)),   # mask over queries
        pl.BlockSpec((F, F), lambda b, h: (0, 0)),         # wq (all heads)
        pl.BlockSpec((1, F), lambda b, h: (0, 0)),         # bq
        pl.BlockSpec((F, F), lambda b, h: (0, 0)),         # wk
        pl.BlockSpec((1, F), lambda b, h: (0, 0)),         # bk
        pl.BlockSpec((F, F), lambda b, h: (0, 0)),         # wv
        pl.BlockSpec((1, F), lambda b, h: (0, 0)),         # bv
        pl.BlockSpec((F, F), lambda b, h: (0, 0)),         # wo (all heads)
        pl.BlockSpec((1, F), lambda b, h: (0, 0)),         # bo
    ]
    args = [x_cd, c_cd, m_row, m_col, wq, bq, wk, bk, wv, bv, wo, bo]

    weff = 0
    rel_fast = False
    roll_shift = 0
    sub_sign = 1
    if use_rel:
        # Only the non-zero band of the relative embeddings is ever needed:
        # offsets |j - i| <= min(window_size, T-1).
        weff = min(window_size, T - 1)
        W2 = 2 * weff + 1
        C = ((T + weff + 127) // 128) * 128          # lane-dense, >= T + weff
        lo, hi = window_size - weff, window_size + weff + 1
        ek_band = jnp.asarray(params["emb_rel_k"])[:, lo:hi, :]
        ev_band = jnp.asarray(params["emb_rel_v"])[:, lo:hi, :].astype(cd)
        n_rel = ek_band.shape[0]
        ek_pad = jnp.zeros((n_rel, C, kc), ek_band.dtype)
        ek_pad = ek_pad.at[:, :W2, :].set(ek_band).astype(cd)

        # band_code[b, i, m]: 0 = normal, 1 = fill score with -1e4, 2 = out of
        # range (zero attention-weight contribution).
        ii = jnp.arange(T)[:, None]
        mm = jnp.arange(W2)[None, :]
        jj = ii + mm - weff
        oob = (jj < 0) | (jj >= T)
        jc = jnp.clip(jj, 0, T - 1)
        key_ok = jnp.take(m, jc.reshape(-1), axis=1).reshape(B, T, W2)
        kill = (key_ok == 0.0) | (m[:, :, None] == 0.0)
        if causal:
            kill = kill | (mm > weff)[None]
        band_code = jnp.where(oob[None], 2.0,
                              jnp.where(kill, 1.0, 0.0)).astype(jnp.float32)

        rel_map = ((lambda b, h: (0, 0, 0)) if n_rel == 1
                   else (lambda b, h: (h, 0, 0)))
        in_specs += [
            pl.BlockSpec((1, C, kc), rel_map),              # padded E_k band
            pl.BlockSpec((1, W2, kc), rel_map),             # E_v band
            pl.BlockSpec((1, T, W2), lambda b, h: (b, 0, 0)),  # band codes
        ]
        args += [ek_pad, ev_band, band_code]

        if rel_impl in ("auto", "fast"):
            conv = _probe_roll_conventions()
            if conv is not None:
                lane_base_sign, sub_sign = conv
                rel_fast = True
                roll_shift = ((-weff) * lane_base_sign) % C
            elif rel_impl == "fast":
                raise RuntimeError("strided pltpu.roll unavailable on this TPU")

    kernel = functools.partial(
        _mhsa_kernel, weff=weff, use_rel=use_rel, rel_fast=rel_fast,
        roll_shift=roll_shift, sub_sign=sub_sign, causal=causal,
        proximal_bias=proximal_bias, compute_dtype=cd, exp_dtype=exp_dt)

    # Generation-aware VMEM limit (v7x has 64 MiB physical, v5e/v6e 128 MiB).
    try:
        cap = pltpu.get_tpu_info().vmem_capacity_bytes
        vmem_limit = max(32 * 1024 * 1024,
                         min(int(0.7 * cap), 100 * 1024 * 1024))
    except Exception:
        vmem_limit = 44 * 1024 * 1024

    out = pl.pallas_call(
        kernel,
        out_shape=jax.ShapeDtypeStruct((B, T, F), jnp.float32),
        grid_spec=pltpu.PrefetchScalarGridSpec(
            num_scalar_prefetch=0,
            grid=(B, H),                 # head axis is the (inner) stateful axis
            in_specs=in_specs,
            out_specs=pl.BlockSpec((1, T, F), lambda b, h: (b, 0, 0)),
            scratch_shapes=[
                pltpu.VMEM((T, T), jnp.float32),   # merged mask/causal/prox bias
                pltpu.VMEM((H, T, kc), cd),        # q, all heads
                pltpu.VMEM((H, T, kc), cd),        # k
                pltpu.VMEM((H, T, kc), cd),        # v
                pltpu.VMEM((H, T, kc), cd),        # per-head attention outputs
            ],
        ),
        compiler_params=pltpu.CompilerParams(
            dimension_semantics=("parallel", "arbitrary"),
            vmem_limit_bytes=vmem_limit),
    )(*args)
    return out


# ---------------------------------------------------------------------------
# Deterministic parameter init (synthetic; mirrors shapes from __init__)
# ---------------------------------------------------------------------------
def init_params(key, input_dim, num_heads, window_size=None, heads_share=True):
    kc = input_dim // num_heads
    keys = jax.random.split(key, 10)

    def xavier(k, shape):
        limit = math.sqrt(6.0 / (shape[0] + shape[1]))
        return jax.random.uniform(k, shape, jnp.float32, -limit, limit)

    params = {
        "wq": xavier(keys[0], (input_dim, input_dim)),
        "bq": 0.01 * jax.random.normal(keys[1], (input_dim,), jnp.float32),
        "wk": xavier(keys[2], (input_dim, input_dim)),
        "bk": 0.01 * jax.random.normal(keys[3], (input_dim,), jnp.float32),
        "wv": xavier(keys[4], (input_dim, input_dim)),
        "bv": 0.01 * jax.random.normal(keys[5], (input_dim,), jnp.float32),
        "wo": xavier(keys[6], (input_dim, input_dim)),
        "bo": 0.01 * jax.random.normal(keys[7], (input_dim,), jnp.float32),
    }
    if window_size is not None:
        n_rel = 1 if heads_share else num_heads
        rel_std = kc ** (-0.5)
        params["emb_rel_k"] = rel_std * jax.random.normal(
            keys[8], (n_rel, 2 * window_size + 1, kc), jnp.float32)
        params["emb_rel_v"] = rel_std * jax.random.normal(
            keys[9], (n_rel, 2 * window_size + 1, kc), jnp.float32)
    return params


# ---------------------------------------------------------------------------
# Pure-JAX reference (direct translation of the PyTorch module, incl. the
# rel-pos pad/reshape tricks) used to validate the kernel numerically.
# ---------------------------------------------------------------------------
def _get_relative_embeddings(emb, length, window_size):
    pad_length = max(length - (window_size + 1), 0)
    slice_start = max(window_size + 1 - length, 0)
    slice_end = slice_start + 2 * length - 1
    if pad_length > 0:
        emb = jnp.pad(emb, ((0, 0), (pad_length, pad_length), (0, 0)))
    return emb[:, slice_start:slice_end]


def _rel_to_abs_ref(x):
    b, h, l, _ = x.shape
    x = jnp.pad(x, ((0, 0), (0, 0), (0, 0), (0, 1)))
    x_flat = x.reshape(b, h, l * 2 * l)
    x_flat = jnp.pad(x_flat, ((0, 0), (0, 0), (0, l - 1)))
    return x_flat.reshape(b, h, l + 1, 2 * l - 1)[:, :, :l, l - 1:]


def _abs_to_rel_ref(x):
    b, h, l, _ = x.shape
    x = jnp.pad(x, ((0, 0), (0, 0), (0, 0), (0, l - 1)))
    x_flat = x.reshape(b, h, l * l + l * (l - 1))
    x_flat = jnp.pad(x_flat, ((0, 0), (0, 0), (l, 0)))
    return x_flat.reshape(b, h, l, 2 * l)[:, :, :, 1:]


def glowtts_mhsa_reference(x, c, attn_mask, params, *, num_heads, window_size=None,
                           causal=False, proximal_bias=False):
    B, T, F = x.shape
    kc = F // num_heads
    prec = jax.lax.Precision.HIGHEST

    def proj(inp, w, b):
        return jnp.einsum("btf,gf->btg", inp, w, precision=prec) + b

    q = proj(x, params["wq"], params["bq"])
    k = proj(c, params["wk"], params["bk"])
    v = proj(c, params["wv"], params["bv"])

    def to_heads(a):
        return a.reshape(B, T, num_heads, kc).transpose(0, 2, 1, 3)

    qh, kh, vh = to_heads(q), to_heads(k), to_heads(v)
    scores = jnp.matmul(qh, jnp.swapaxes(kh, -1, -2), precision=prec) / math.sqrt(kc)
    if window_size is not None:
        ek = _get_relative_embeddings(params["emb_rel_k"], T, window_size)
        rel_logits = jnp.matmul(qh, jnp.swapaxes(ek[None], -1, -2), precision=prec)
        scores = scores + _rel_to_abs_ref(rel_logits) / math.sqrt(kc)
    if proximal_bias:
        r = jnp.arange(T, dtype=jnp.float32)
        scores = scores + (-jnp.log1p(jnp.abs(r[None, :] - r[:, None])))[None, None]
    am = attn_mask.astype(scores.dtype)[:, None, :]       # [B, 1, T]
    mask_full = am[:, :, None, :] * am[:, :, :, None]     # [B, 1, T, T]
    if causal:
        mask_full = mask_full * jnp.tril(jnp.ones((T, T), scores.dtype))[None, None]
    scores = jnp.where(mask_full == 0, -1e4, scores)
    p = jax.nn.softmax(scores, axis=-1)
    out = jnp.matmul(p, vh, precision=prec)
    if window_size is not None:
        rel_w = _abs_to_rel_ref(p)
        ev = _get_relative_embeddings(params["emb_rel_v"], T, window_size)
        out = out + jnp.matmul(rel_w, ev[None], precision=prec)
    out_features = out.transpose(0, 2, 1, 3).reshape(B, T, F)
    return jnp.einsum("btf,gf->btg", out_features, params["wo"],
                      precision=prec) + params["bo"]


if __name__ == "__main__":
    B, T, F, H, WS = 2, 16, 32, 4, 4

    key = jax.random.PRNGKey(0)
    kx, kc_key, kp = jax.random.split(key, 3)
    x = jax.random.normal(kx, (B, T, F), jnp.float32)
    c = jax.random.normal(kc_key, (B, T, F), jnp.float32)
    # attn_mask [B, T]; second sequence has 4 padded positions.
    attn_mask = jnp.ones((B, T), jnp.float32).at[1, 12:].set(0.0)

    params = init_params(kp, F, H, window_size=WS, heads_share=True)
    ref = glowtts_mhsa_reference(x, c, attn_mask, params,
                                 num_heads=H, window_size=WS)

    # 1) exact-path validation (f32 MXU operands) against the pure-JAX reference.
    out_f32 = glowtts_mhsa_forward(x, c, attn_mask, params, num_heads=H,
                                   window_size=WS, compute_dtype=jnp.float32)
    out_f32 = jax.block_until_ready(out_f32)
    assert out_f32.shape == (B, T, F)
    np.testing.assert_allclose(np.asarray(out_f32), np.asarray(ref),
                               rtol=2e-3, atol=2e-3)

    # 2) fast path (bf16 MXU operands + bf16 softmax exponent) - loose check.
    out_bf16 = glowtts_mhsa_forward(x, c, attn_mask, params, num_heads=H,
                                    window_size=WS, compute_dtype=jnp.bfloat16)
    out_bf16 = jax.block_until_ready(out_bf16)
    np.testing.assert_allclose(np.asarray(out_bf16), np.asarray(ref),
                               rtol=6e-2, atol=6e-2)

    # 3) no rel-pos window + causal + proximal bias (exercises the conditional
    #    input plumbing and the merged mask/prox scratch), f32 path.
    params2 = init_params(kp, F, H, window_size=None)
    out2 = glowtts_mhsa_forward(x, c, attn_mask, params2, num_heads=H,
                                window_size=None, causal=True, proximal_bias=True,
                                compute_dtype=jnp.float32)
    out2 = jax.block_until_ready(out2)
    ref2 = glowtts_mhsa_reference(x, c, attn_mask, params2, num_heads=H,
                                  window_size=None, causal=True, proximal_bias=True)
    np.testing.assert_allclose(np.asarray(out2), np.asarray(ref2),
                               rtol=2e-3, atol=2e-3)

    print("KERNEL_OK")
</pallas_src>

<mosaic_0001>
module attributes {stable_mosaic.version = 11 : i64} {
  func.func @kern(%arg0: memref<8x128xf32, #tpu.memory_space<vmem>>, %arg1: memref<8x128xf32, #tpu.memory_space<vmem>>, %arg2: memref<8x128xf32, #tpu.memory_space<vmem>>) attributes {dimension_semantics = [], scalar_prefetch = 0 : i64, scratch_operands = 0 : i64, tpu.core_type = #tpu.core_type<tc>} {
    %c0 = arith.constant 0 : index
    %c0_0 = arith.constant 0 : index
    %0 = vector.load %arg0[%c0, %c0_0] : memref<8x128xf32, #tpu.memory_space<vmem>>, vector<8x128xf32>
    %c3_i32 = arith.constant 3 : i32
    %1 = tpu.dynamic_rotate %0 by %c3_i32 dim 1 {stride = 1 : si32, stride_dimension = 0 : si32} : vector<8x128xf32>, i32 -> vector<8x128xf32>
    %c0_1 = arith.constant 0 : index
    %c0_2 = arith.constant 0 : index
    %2 = vector.load %arg1[%c0_1, %c0_2] : memref<8x128xf32, #tpu.memory_space<vmem>>, vector<8x128xf32>
    tpu.vector_store %arg1[%c0_1, %c0_2], %1 {strides = array<i32>} : memref<8x128xf32, #tpu.memory_space<vmem>>, vector<8x128xf32>,
    %c0_3 = arith.constant 0 : index
    %c0_4 = arith.constant 0 : index
    %3 = vector.load %arg0[%c0_3, %c0_4] : memref<8x128xf32, #tpu.memory_space<vmem>>, vector<8x128xf32>
    %c3_i32_5 = arith.constant 3 : i32
    %4 = tpu.dynamic_rotate %3 by %c3_i32_5 dim 0 : vector<8x128xf32>, i32 -> vector<8x128xf32>
    %c0_6 = arith.constant 0 : index
    %c0_7 = arith.constant 0 : index
    %5 = vector.load %arg2[%c0_6, %c0_7] : memref<8x128xf32, #tpu.memory_space<vmem>>, vector<8x128xf32>
    tpu.vector_store %arg2[%c0_6, %c0_7], %4 {strides = array<i32>} : memref<8x128xf32, #tpu.memory_space<vmem>>, vector<8x128xf32>,
    return
  }
}

module attributes {stable_mosaic.version = 11 : i64} {
  func.func @_mhsa_kernel(%arg0: i32, %arg1: i32, %arg2: memref<1x16x32xf32, #tpu.memory_space<vmem>>, %arg3: memref<1x16x32xf32, #tpu.memory_space<vmem>>, %arg4: memref<1x1x16xf32, #tpu.memory_space<vmem>>, %arg5: memref<1x16x1xf32, #tpu.memory_space<vmem>>, %arg6: memref<32x32xf32, #tpu.memory_space<vmem>>, %arg7: memref<1x32xf32, #tpu.memory_space<vmem>>, %arg8: memref<32x32xf32, #tpu.memory_space<vmem>>, %arg9: memref<1x32xf32, #tpu.memory_space<vmem>>, %arg10: memref<32x32xf32, #tpu.memory_space<vmem>>, %arg11: memref<1x32xf32, #tpu.memory_space<vmem>>, %arg12: memref<32x32xf32, #tpu.memory_space<vmem>>, %arg13: memref<1x32xf32, #tpu.memory_space<vmem>>, %arg14: memref<1x128x8xf32, #tpu.memory_space<vmem>>, %arg15: memref<1x9x8xf32, #tpu.memory_space<vmem>>, %arg16: memref<1x16x9xf32, #tpu.memory_space<vmem>>, %arg17: memref<1x16x32xf32, #tpu.memory_space<vmem>>, %arg18: memref<16x16xf32, #tpu.memory_space<vmem>>, %arg19: memref<4x16x8xf32, #tpu.memory_space<vmem>>, %arg20: memref<4x16x8xf32, #tpu.memory_space<vmem>>, %arg21: memref<4x16x8xf32, #tpu.memory_space<vmem>>, %arg22: memref<4x16x8xf32, #tpu.memory_space<vmem>>) attributes {dimension_semantics = [#tpu.dimension_semantics<parallel>, #tpu.dimension_semantics<arbitrary>], iteration_bounds = array<i64: 2, 4>, scalar_prefetch = 0 : i64, scratch_operands = 5 : i64, tpu.core_type = #tpu.core_type<tc>, window_params = [{transform_indices = @transform_0, window_bounds = array<i64: 1, 16, 32>}, {transform_indices = @transform_1, window_bounds = array<i64: 1, 16, 32>}, {transform_indices = @transform_2, window_bounds = array<i64: 1, 1, 16>}, {transform_indices = @transform_3, window_bounds = array<i64: 1, 16, 1>}, {pipeline_mode = #tpu.pipeline_mode<synchronous>, transform_indices = @transform_4, window_bounds = array<i64: 32, 32>}, {pipeline_mode = #tpu.pipeline_mode<synchronous>, transform_indices = @transform_5, window_bounds = array<i64: 1, 32>}, {pipeline_mode = #tpu.pipeline_mode<synchronous>, transform_indices = @transform_6, window_bounds = array<i64: 32, 32>}, {pipeline_mode = #tpu.pipeline_mode<synchronous>, transform_indices = @transform_7, window_bounds = array<i64: 1, 32>}, {pipeline_mode = #tpu.pipeline_mode<synchronous>, transform_indices = @transform_8, window_bounds = array<i64: 32, 32>}, {pipeline_mode = #tpu.pipeline_mode<synchronous>, transform_indices = @transform_9, window_bounds = array<i64: 1, 32>}, {pipeline_mode = #tpu.pipeline_mode<synchronous>, transform_indices = @transform_10, window_bounds = array<i64: 32, 32>}, {pipeline_mode = #tpu.pipeline_mode<synchronous>, transform_indices = @transform_11, window_bounds = array<i64: 1, 32>}, {pipeline_mode = #tpu.pipeline_mode<synchronous>, transform_indices = @transform_12, window_bounds = array<i64: 1, 128, 8>}, {pipeline_mode = #tpu.pipeline_mode<synchronous>, transform_indices = @transform_13, window_bounds = array<i64: 1, 9, 8>}, {transform_indices = @transform_14, window_bounds = array<i64: 1, 16, 9>}, {transform_indices = @transform_15, window_bounds = array<i64: 1, 16, 32>}]} {
    %c0_i32 = arith.constant 0 : i32
    %0 = arith.cmpi eq, %arg1, %c0_i32 : i32
    %1 = arith.extui %0 : i1 to i32
    %c0_i32_0 = arith.constant 0 : i32
    %2 = arith.cmpi ne, %1, %c0_i32_0 : i32
    scf.if %2 {
      %c0_63 = arith.constant 0 : index
      %c0_64 = arith.constant 0 : index
      %c0_65 = arith.constant 0 : index
      %219 = vector.load %arg4[%c0_63, %c0_64, %c0_65] : memref<1x1x16xf32, #tpu.memory_space<vmem>>, vector<1x1x16xf32>
      %220 = vector.shape_cast %219 : vector<1x1x16xf32> to vector<1x16xf32>
      %cst_66 = arith.constant 0.000000e+00 : f32
      %221 = vector.broadcast %cst_66 : f32 to vector<1x16xf32>
      %222 = arith.cmpf oeq, %220, %221 : vector<1x16xf32>
      %c0_67 = arith.constant 0 : index
      %c0_68 = arith.constant 0 : index
      %c0_69 = arith.constant 0 : index
      %223 = vector.load %arg5[%c0_67, %c0_68, %c0_69] : memref<1x16x1xf32, #tpu.memory_space<vmem>>, vector<1x16x1xf32>
      %224 = vector.shape_cast %223 : vector<1x16x1xf32> to vector<16x1xf32>
      %cst_70 = arith.constant 0.000000e+00 : f32
      %225 = vector.broadcast %cst_70 : f32 to vector<16x1xf32>
      %226 = arith.cmpf oeq, %224, %225 : vector<16x1xf32>
      %227 = vector.broadcast %222 : vector<1x16xi1> to vector<16x16xi1>
      %228 = vector.broadcast %226 : vector<16x1xi1> to vector<16x16xi1>
      %229 = arith.ori %227, %228 : vector<16x16xi1>
      %cst_71 = arith.constant 0.000000e+00 : f32
      %230 = vector.broadcast %cst_71 : f32 to vector<16x16xf32>
      %cst_72 = arith.constant -1.000000e+04 : f32
      %231 = vector.broadcast %cst_72 : f32 to vector<16x16xf32>
      %232 = arith.select %229, %231, %230 : vector<16x16xi1>, vector<16x16xf32>
      %c0_73 = arith.constant 0 : index
      %c0_74 = arith.constant 0 : index
      %233 = vector.load %arg18[%c0_73, %c0_74] : memref<16x16xf32, #tpu.memory_space<vmem>>, vector<16x16xf32>
      tpu.vector_store %arg18[%c0_73, %c0_74], %232 {strides = array<i32>} : memref<16x16xf32, #tpu.memory_space<vmem>>, vector<16x16xf32>,
      %c0_75 = arith.constant 0 : index
      %c0_76 = arith.constant 0 : index
      %c0_77 = arith.constant 0 : index
      %234 = vector.load %arg2[%c0_75, %c0_76, %c0_77] : memref<1x16x32xf32, #tpu.memory_space<vmem>>, vector<1x16x32xf32>
      %235 = vector.shape_cast %234 : vector<1x16x32xf32> to vector<16x32xf32>
      %c0_78 = arith.constant 0 : index
      %c0_79 = arith.constant 0 : index
      %c0_80 = arith.constant 0 : index
      %236 = vector.load %arg3[%c0_78, %c0_79, %c0_80] : memref<1x16x32xf32, #tpu.memory_space<vmem>>, vector<1x16x32xf32>
      %237 = vector.shape_cast %236 : vector<1x16x32xf32> to vector<16x32xf32>
      %c0_81 = arith.constant 0 : index
      %c0_82 = arith.constant 0 : index
      %238 = vector.load %arg6[%c0_81, %c0_82] : memref<32x32xf32, #tpu.memory_space<vmem>>, vector<32x32xf32>
      %cst_83 = arith.constant dense<0.000000e+00> : vector<16x32xf32>
      %239 = tpu.matmul %235, %238, %cst_83 {dimension_numbers = #tpu.dot_dimension_numbers<[1], [0], [0], [1], [0, 0, 1, 1], [], []>, precision = #tpu.contract_precision<fp32>} : vector<16x32xf32>, vector<32x32xf32>, vector<16x32xf32> -> vector<16x32xf32>
      %c0_84 = arith.constant 0 : index
      %c0_85 = arith.constant 0 : index
      %240 = vector.load %arg7[%c0_84, %c0_85] : memref<1x32xf32, #tpu.memory_space<vmem>>, vector<1x32xf32>
      %241 = vector.broadcast %240 : vector<1x32xf32> to vector<16x32xf32>
      %242 = arith.addf %239, %241 : vector<16x32xf32>
      %c0_86 = arith.constant 0 : index
      %c0_87 = arith.constant 0 : index
      %243 = vector.load %arg8[%c0_86, %c0_87] : memref<32x32xf32, #tpu.memory_space<vmem>>, vector<32x32xf32>
      %cst_88 = arith.constant dense<0.000000e+00> : vector<16x32xf32>
      %244 = tpu.matmul %237, %243, %cst_88 {dimension_numbers = #tpu.dot_dimension_numbers<[1], [0], [0], [1], [0, 0, 1, 1], [], []>, precision = #tpu.contract_precision<fp32>} : vector<16x32xf32>, vector<32x32xf32>, vector<16x32xf32> -> vector<16x32xf32>
      %c0_89 = arith.constant 0 : index
      %c0_90 = arith.constant 0 : index
      %245 = vector.load %arg9[%c0_89, %c0_90] : memref<1x32xf32, #tpu.memory_space<vmem>>, vector<1x32xf32>
      %246 = vector.broadcast %245 : vector<1x32xf32> to vector<16x32xf32>
      %247 = arith.addf %244, %246 : vector<16x32xf32>
      %c0_91 = arith.constant 0 : index
      %c0_92 = arith.constant 0 : index
      %248 = vector.load %arg10[%c0_91, %c0_92] : memref<32x32xf32, #tpu.memory_space<vmem>>, vector<32x32xf32>
      %cst_93 = arith.constant dense<0.000000e+00> : vector<16x32xf32>
      %249 = tpu.matmul %237, %248, %cst_93 {dimension_numbers = #tpu.dot_dimension_numbers<[1], [0], [0], [1], [0, 0, 1, 1], [], []>, precision = #tpu.contract_precision<fp32>} : vector<16x32xf32>, vector<32x32xf32>, vector<16x32xf32> -> vector<16x32xf32>
      %c0_94 = arith.constant 0 : index
      %c0_95 = arith.constant 0 : index
      %250 = vector.load %arg11[%c0_94, %c0_95] : memref<1x32xf32, #tpu.memory_space<vmem>>, vector<1x32xf32>
      %251 = vector.broadcast %250 : vector<1x32xf32> to vector<16x32xf32>
      %252 = arith.addf %249, %251 : vector<16x32xf32>
      %253 = vector.extract_strided_slice %242 {offsets = [0, 0], sizes = [16, 8], strides = [1, 1]} : vector<16x32xf32> to vector<16x8xf32>
      %c0_96 = arith.constant 0 : index
      %c0_97 = arith.constant 0 : index
      %c0_98 = arith.constant 0 : index
      %254 = vector.load %arg19[%c0_96, %c0_97, %c0_98] : memref<4x16x8xf32, #tpu.memory_space<vmem>>, vector<1x16x8xf32>
      %255 = vector.shape_cast %254 : vector<1x16x8xf32> to vector<16x8xf32>
      %256 = vector.shape_cast %253 : vector<16x8xf32> to vector<1x16x8xf32>
      tpu.vector_store %arg19[%c0_96, %c0_97, %c0_98], %256 {strides = array<i32>} : memref<4x16x8xf32, #tpu.memory_space<vmem>>, vector<1x16x8xf32>,
      %257 = vector.extract_strided_slice %247 {offsets = [0, 0], sizes = [16, 8], strides = [1, 1]} : vector<16x32xf32> to vector<16x8xf32>
      %c0_99 = arith.constant 0 : index
      %c0_100 = arith.constant 0 : index
      %c0_101 = arith.constant 0 : index
      %258 = vector.load %arg20[%c0_99, %c0_100, %c0_101] : memref<4x16x8xf32, #tpu.memory_space<vmem>>, vector<1x16x8xf32>
      %259 = vector.shape_cast %258 : vector<1x16x8xf32> to vector<16x8xf32>
      %260 = vector.shape_cast %257 : vector<16x8xf32> to vector<1x16x8xf32>
      tpu.vector_store %arg20[%c0_99, %c0_100, %c0_101], %260 {strides = array<i32>} : memref<4x16x8xf32, #tpu.memory_space<vmem>>, vector<1x16x8xf32>,
      %261 = vector.extract_strided_slice %252 {offsets = [0, 0], sizes = [16, 8], strides = [1, 1]} : vector<16x32xf32> to vector<16x8xf32>
      %c0_102 = arith.constant 0 : index
      %c0_103 = arith.constant 0 : index
      %c0_104 = arith.constant 0 : index
      %262 = vector.load %arg21[%c0_102, %c0_103, %c0_104] : memref<4x16x8xf32, #tpu.memory_space<vmem>>, vector<1x16x8xf32>
      %263 = vector.shape_cast %262 : vector<1x16x8xf32> to vector<16x8xf32>
      %264 = vector.shape_cast %261 : vector<16x8xf32> to vector<1x16x8xf32>
      tpu.vector_store %arg21[%c0_102, %c0_103, %c0_104], %264 {strides = array<i32>} : memref<4x16x8xf32, #tpu.memory_space<vmem>>, vector<1x16x8xf32>,
      %265 = vector.extract_strided_slice %242 {offsets = [0, 8], sizes = [16, 8], strides = [1, 1]} : vector<16x32xf32> to vector<16x8xf32>
      %c1 = arith.constant 1 : index
      %c0_105 = arith.constant 0 : index
      %c0_106 = arith.constant 0 : index
      %266 = vector.load %arg19[%c1, %c0_105, %c0_106] : memref<4x16x8xf32, #tpu.memory_space<vmem>>, vector<1x16x8xf32>
      %267 = vector.shape_cast %266 : vector<1x16x8xf32> to vector<16x8xf32>
      %268 = vector.shape_cast %265 : vector<16x8xf32> to vector<1x16x8xf32>
      tpu.vector_store %arg19[%c1, %c0_105, %c0_106], %268 {strides = array<i32>} : memref<4x16x8xf32, #tpu.memory_space<vmem>>, vector<1x16x8xf32>,
      %269 = vector.extract_strided_slice %247 {offsets = [0, 8], sizes = [16, 8], strides = [1, 1]} : vector<16x32xf32> to vector<16x8xf32>
      %c1_107 = arith.constant 1 : index
      %c0_108 = arith.constant 0 : index
      %c0_109 = arith.constant 0 : index
      %270 = vector.load %arg20[%c1_107, %c0_108, %c0_109] : memref<4x16x8xf32, #tpu.memory_space<vmem>>, vector<1x16x8xf32>
      %271 = vector.shape_cast %270 : vector<1x16x8xf32> to vector<16x8xf32>
      %272 = vector.shape_cast %269 : vector<16x8xf32> to vector<1x16x8xf32>
      tpu.vector_store %arg20[%c1_107, %c0_108, %c0_109], %272 {strides = array<i32>} : memref<4x16x8xf32, #tpu.memory_space<vmem>>, vector<1x16x8xf32>,
      %273 = vector.extract_strided_slice %252 {offsets = [0, 8], sizes = [16, 8], strides = [1, 1]} : vector<16x32xf32> to vector<16x8xf32>
      %c1_110 = arith.constant 1 : index
      %c0_111 = arith.constant 0 : index
      %c0_112 = arith.constant 0 : index
      %274 = vector.load %arg21[%c1_110, %c0_111, %c0_112] : memref<4x16x8xf32, #tpu.memory_space<vmem>>, vector<1x16x8xf32>
      %275 = vector.shape_cast %274 : vector<1x16x8xf32> to vector<16x8xf32>
      %276 = vector.shape_cast %273 : vector<16x8xf32> to vector<1x16x8xf32>
      tpu.vector_store %arg21[%c1_110, %c0_111, %c0_112], %276 {strides = array<i32>} : memref<4x16x8xf32, #tpu.memory_space<vmem>>, vector<1x16x8xf32>,
      %277 = vector.extract_strided_slice %242 {offsets = [0, 16], sizes = [16, 8], strides = [1, 1]} : vector<16x32xf32> to vector<16x8xf32>
      %c2 = arith.constant 2 : index
      %c0_113 = arith.constant 0 : index
      %c0_114 = arith.constant 0 : index
      %278 = vector.load %arg19[%c2, %c0_113, %c0_114] : memref<4x16x8xf32, #tpu.memory_space<vmem>>, vector<1x16x8xf32>
      %279 = vector.shape_cast %278 : vector<1x16x8xf32> to vector<16x8xf32>
      %280 = vector.shape_cast %277 : vector<16x8xf32> to vector<1x16x8xf32>
      tpu.vector_store %arg19[%c2, %c0_113, %c0_114], %280 {strides = array<i32>} : memref<4x16x8xf32, #tpu.memory_space<vmem>>, vector<1x16x8xf32>,
      %281 = vector.extract_strided_slice %247 {offsets = [0, 16], sizes = [16, 8], strides = [1, 1]} : vector<16x32xf32> to vector<16x8xf32>
      %c2_115 = arith.constant 2 : index
      %c0_116 = arith.constant 0 : index
      %c0_117 = arith.constant 0 : index
      %282 = vector.load %arg20[%c2_115, %c0_116, %c0_117] : memref<4x16x8xf32, #tpu.memory_space<vmem>>, vector<1x16x8xf32>
      %283 = vector.shape_cast %282 : vector<1x16x8xf32> to vector<16x8xf32>
      %284 = vector.shape_cast %281 : vector<16x8xf32> to vector<1x16x8xf32>
      tpu.vector_store %arg20[%c2_115, %c0_116, %c0_117], %284 {strides = array<i32>} : memref<4x16x8xf32, #tpu.memory_space<vmem>>, vector<1x16x8xf32>,
      %285 = vector.extract_strided_slice %252 {offsets = [0, 16], sizes = [16, 8], strides = [1, 1]} : vector<16x32xf32> to vector<16x8xf32>
      %c2_118 = arith.constant 2 : index
      %c0_119 = arith.constant 0 : index
      %c0_120 = arith.constant 0 : index
      %286 = vector.load %arg21[%c2_118, %c0_119, %c0_120] : memref<4x16x8xf32, #tpu.memory_space<vmem>>, vector<1x16x8xf32>
      %287 = vector.shape_cast %286 : vector<1x16x8xf32> to vector<16x8xf32>
      %288 = vector.shape_cast %285 : vector<16x8xf32> to vector<1x16x8xf32>
      tpu.vector_store %arg21[%c2_118, %c0_119, %c0_120], %288 {strides = array<i32>} : memref<4x16x8xf32, #tpu.memory_space<vmem>>, vector<1x16x8xf32>,
      %289 = vector.extract_strided_slice %242 {offsets = [0, 24], sizes = [16, 8], strides = [1, 1]} : vector<16x32xf32> to vector<16x8xf32>
      %c3 = arith.constant 3 : index
      %c0_121 = arith.constant 0 : index
      %c0_122 = arith.constant 0 : index
      %290 = vector.load %arg19[%c3, %c0_121, %c0_122] : memref<4x16x8xf32, #tpu.memory_space<vmem>>, vector<1x16x8xf32>
      %291 = vector.shape_cast %290 : vector<1x16x8xf32> to vector<16x8xf32>
      %292 = vector.shape_cast %289 : vector<16x8xf32> to vector<1x16x8xf32>
      tpu.vector_store %arg19[%c3, %c0_121, %c0_122], %292 {strides = array<i32>} : memref<4x16x8xf32, #tpu.memory_space<vmem>>, vector<1x16x8xf32>,
      %293 = vector.extract_strided_slice %247 {offsets = [0, 24], sizes = [16, 8], strides = [1, 1]} : vector<16x32xf32> to vector<16x8xf32>
      %c3_123 = arith.constant 3 : index
      %c0_124 = arith.constant 0 : index
      %c0_125 = arith.constant 0 : index
      %294 = vector.load %arg20[%c3_123, %c0_124, %c0_125] : memref<4x16x8xf32, #tpu.memory_space<vmem>>, vector<1x16x8xf32>
      %295 = vector.shape_cast %294 : vector<1x16x8xf32> to vector<16x8xf32>
      %296 = vector.shape_cast %293 : vector<16x8xf32> to vector<1x16x8xf32>
      tpu.vector_store %arg20[%c3_123, %c0_124, %c0_125], %296 {strides = array<i32>} : memref<4x16x8xf32, #tpu.memory_space<vmem>>, vector<1x16x8xf32>,
      %297 = vector.extract_strided_slice %252 {offsets = [0, 24], sizes = [16, 8], strides = [1, 1]} : vector<16x32xf32> to vector<16x8xf32>
      %c3_126 = arith.constant 3 : index
      %c0_127 = arith.constant 0 : index
      %c0_128 = arith.constant 0 : index
      %298 = vector.load %arg21[%c3_126, %c0_127, %c0_128] : memref<4x16x8xf32, #tpu.memory_space<vmem>>, vector<1x16x8xf32>
      %299 = vector.shape_cast %298 : vector<1x16x8xf32> to vector<16x8xf32>
      %300 = vector.shape_cast %297 : vector<16x8xf32> to vector<1x16x8xf32>
      tpu.vector_store %arg21[%c3_126, %c0_127, %c0_128], %300 {strides = array<i32>} : memref<4x16x8xf32, #tpu.memory_space<vmem>>, vector<1x16x8xf32>,
    } else {
    }
    %3 = arith.index_cast %arg1 : i32 to index
    %c0 = arith.constant 0 : index
    %c0_1 = arith.constant 0 : index
    %4 = vector.load %arg19[%3, %c0, %c0_1] : memref<4x16x8xf32, #tpu.memory_space<vmem>>, vector<1x16x8xf32>
    %5 = vector.shape_cast %4 : vector<1x16x8xf32> to vector<16x8xf32>
    %6 = arith.index_cast %arg1 : i32 to index
    %c0_2 = arith.constant 0 : index
    %c0_3 = arith.constant 0 : index
    %7 = vector.load %arg20[%6, %c0_2, %c0_3] : memref<4x16x8xf32, #tpu.memory_space<vmem>>, vector<1x16x8xf32>
    %8 = vector.shape_cast %7 : vector<1x16x8xf32> to vector<16x8xf32>
    %9 = arith.index_cast %arg1 : i32 to index
    %c0_4 = arith.constant 0 : index
    %c0_5 = arith.constant 0 : index
    %10 = vector.load %arg21[%9, %c0_4, %c0_5] : memref<4x16x8xf32, #tpu.memory_space<vmem>>, vector<1x16x8xf32>
    %11 = vector.shape_cast %10 : vector<1x16x8xf32> to vector<16x8xf32>
    %cst = arith.constant dense<0.000000e+00> : vector<16x16xf32>
    %12 = tpu.matmul %5, %8, %cst {dimension_numbers = #tpu.dot_dimension_numbers<[1], [1], [0], [0], [0, 0, 1, 0], [], []>, precision = #tpu.contract_precision<fp32>} : vector<16x8xf32>, vector<16x8xf32>, vector<16x16xf32> -> vector<16x16xf32>
    %c0_6 = arith.constant 0 : index
    %c0_7 = arith.constant 0 : index
    %c0_8 = arith.constant 0 : index
    %13 = vector.load %arg14[%c0_6, %c0_7, %c0_8] : memref<1x128x8xf32, #tpu.memory_space<vmem>>, vector<1x128x8xf32>
    %14 = vector.shape_cast %13 : vector<1x128x8xf32> to vector<128x8xf32>
    %cst_9 = arith.constant dense<0.000000e+00> : vector<16x128xf32>
    %15 = tpu.matmul %5, %14, %cst_9 {dimension_numbers = #tpu.dot_dimension_numbers<[1], [1], [0], [0], [0, 0, 1, 0], [], []>, precision = #tpu.contract_precision<fp32>} : vector<16x8xf32>, vector<128x8xf32>, vector<16x128xf32> -> vector<16x128xf32>
    %16 = tpu.iota {dimensions = array<i32: 1>} : vector<16x16xi32>
    %17 = tpu.iota {dimensions = array<i32: 0>} : vector<16x16xi32>
    %18 = arith.subi %16, %17 : vector<16x16xi32>
    %c-4_i32 = arith.constant -4 : i32
    %19 = vector.broadcast %c-4_i32 : i32 to vector<16x16xi32>
    %20 = arith.cmpi eq, %18, %19 : vector<16x16xi32>
    %21 = vector.extract_strided_slice %15 {offsets = [0, 0], sizes = [16, 1], strides = [1, 1]} : vector<16x128xf32> to vector<16x1xf32>
    %cst_10 = arith.constant 0.000000e+00 : f32
    %22 = vector.shape_cast %21 : vector<16x1xf32> to vector<16x1xf32>
    %23 = vector.broadcast %22 : vector<16x1xf32> to vector<16x16xf32>
    %24 = vector.broadcast %cst_10 : f32 to vector<16x16xf32>
    %25 = arith.select %20, %23, %24 : vector<16x16xi1>, vector<16x16xf32>
    %26 = arith.addf %12, %25 : vector<16x16xf32>
    %c-3_i32 = arith.constant -3 : i32
    %27 = vector.broadcast %c-3_i32 : i32 to vector<16x16xi32>
    %28 = arith.cmpi eq, %18, %27 : vector<16x16xi32>
    %29 = vector.extract_strided_slice %15 {offsets = [0, 1], sizes = [16, 1], strides = [1, 1]} : vector<16x128xf32> to vector<16x1xf32>
    %cst_11 = arith.constant 0.000000e+00 : f32
    %30 = vector.shape_cast %29 : vector<16x1xf32> to vector<16x1xf32>
    %31 = vector.broadcast %30 : vector<16x1xf32> to vector<16x16xf32>
    %32 = vector.broadcast %cst_11 : f32 to vector<16x16xf32>
    %33 = arith.select %28, %31, %32 : vector<16x16xi1>, vector<16x16xf32>
    %34 = arith.addf %26, %33 : vector<16x16xf32>
    %c-2_i32 = arith.constant -2 : i32
    %35 = vector.broadcast %c-2_i32 : i32 to vector<16x16xi32>
    %36 = arith.cmpi eq, %18, %35 : vector<16x16xi32>
    %37 = vector.extract_strided_slice %15 {offsets = [0, 2], sizes = [16, 1], strides = [1, 1]} : vector<16x128xf32> to vector<16x1xf32>
    %cst_12 = arith.constant 0.000000e+00 : f32
    %38 = vector.shape_cast %37 : vector<16x1xf32> to vector<16x1xf32>
    %39 = vector.broadcast %38 : vector<16x1xf32> to vector<16x16xf32>
    %40 = vector.broadcast %cst_12 : f32 to vector<16x16xf32>
    %41 = arith.select %36, %39, %40 : vector<16x16xi1>, vector<16x16xf32>
    %42 = arith.addf %34, %41 : vector<16x16xf32>
    %c-1_i32 = arith.constant -1 : i32
    %43 = vector.broadcast %c-1_i32 : i32 to vector<16x16xi32>
    %44 = arith.cmpi eq, %18, %43 : vector<16x16xi32>
    %45 = vector.extract_strided_slice %15 {offsets = [0, 3], sizes = [16, 1], strides = [1, 1]} : vector<16x128xf32> to vector<16x1xf32>
    %cst_13 = arith.constant 0.000000e+00 : f32
    %46 = vector.shape_cast %45 : vector<16x1xf32> to vector<16x1xf32>
    %47 = vector.broadcast %46 : vector<16x1xf32> to vector<16x16xf32>
    %48 = vector.broadcast %cst_13 : f32 to vector<16x16xf32>
    %49 = arith.select %44, %47, %48 : vector<16x16xi1>, vector<16x16xf32>
    %50 = arith.addf %42, %49 : vector<16x16xf32>
    %c0_i32_14 = arith.constant 0 : i32
    %51 = vector.broadcast %c0_i32_14 : i32 to vector<16x16xi32>
    %52 = arith.cmpi eq, %18, %51 : vector<16x16xi32>
    %53 = vector.extract_strided_slice %15 {offsets = [0, 4], sizes = [16, 1], strides = [1, 1]} : vector<16x128xf32> to vector<16x1xf32>
    %cst_15 = arith.constant 0.000000e+00 : f32
    %54 = vector.shape_cast %53 : vector<16x1xf32> to vector<16x1xf32>
    %55 = vector.broadcast %54 : vector<16x1xf32> to vector<16x16xf32>
    %56 = vector.broadcast %cst_15 : f32 to vector<16x16xf32>
    %57 = arith.select %52, %55, %56 : vector<16x16xi1>, vector<16x16xf32>
    %58 = arith.addf %50, %57 : vector<16x16xf32>
    %c1_i32 = arith.constant 1 : i32
    %59 = vector.broadcast %c1_i32 : i32 to vector<16x16xi32>
    %60 = arith.cmpi eq, %18, %59 : vector<16x16xi32>
    %61 = vector.extract_strided_slice %15 {offsets = [0, 5], sizes = [16, 1], strides = [1, 1]} : vector<16x128xf32> to vector<16x1xf32>
    %cst_16 = arith.constant 0.000000e+00 : f32
    %62 = vector.shape_cast %61 : vector<16x1xf32> to vector<16x1xf32>
    %63 = vector.broadcast %62 : vector<16x1xf32> to vector<16x16xf32>
    %64 = vector.broadcast %cst_16 : f32 to vector<16x16xf32>
    %65 = arith.select %60, %63, %64 : vector<16x16xi1>, vector<16x16xf32>
    %66 = arith.addf %58, %65 : vector<16x16xf32>
    %c2_i32 = arith.constant 2 : i32
    %67 = vector.broadcast %c2_i32 : i32 to vector<16x16xi32>
    %68 = arith.cmpi eq, %18, %67 : vector<16x16xi32>
    %69 = vector.extract_strided_slice %15 {offsets = [0, 6], sizes = [16, 1], strides = [1, 1]} : vector<16x128xf32> to vector<16x1xf32>
    %cst_17 = arith.constant 0.000000e+00 : f32
    %70 = vector.shape_cast %69 : vector<16x1xf32> to vector<16x1xf32>
    %71 = vector.broadcast %70 : vector<16x1xf32> to vector<16x16xf32>
    %72 = vector.broadcast %cst_17 : f32 to vector<16x16xf32>
    %73 = arith.select %68, %71, %72 : vector<16x16xi1>, vector<16x16xf32>
    %74 = arith.addf %66, %73 : vector<16x16xf32>
    %c3_i32 = arith.constant 3 : i32
    %75 = vector.broadcast %c3_i32 : i32 to vector<16x16xi32>
    %76 = arith.cmpi eq, %18, %75 : vector<16x16xi32>
    %77 = vector.extract_strided_slice %15 {offsets = [0, 7], sizes = [16, 1], strides = [1, 1]} : vector<16x128xf32> to vector<16x1xf32>
    %cst_18 = arith.constant 0.000000e+00 : f32
    %78 = vector.shape_cast %77 : vector<16x1xf32> to vector<16x1xf32>
    %79 = vector.broadcast %78 : vector<16x1xf32> to vector<16x16xf32>
    %80 = vector.broadcast %cst_18 : f32 to vector<16x16xf32>
    %81 = arith.select %76, %79, %80 : vector<16x16xi1>, vector<16x16xf32>
    %82 = arith.addf %74, %81 : vector<16x16xf32>
    %c4_i32 = arith.constant 4 : i32
    %83 = vector.broadcast %c4_i32 : i32 to vector<16x16xi32>
    %84 = arith.cmpi eq, %18, %83 : vector<16x16xi32>
    %85 = vector.extract_strided_slice %15 {offsets = [0, 8], sizes = [16, 1], strides = [1, 1]} : vector<16x128xf32> to vector<16x1xf32>
    %cst_19 = arith.constant 0.000000e+00 : f32
    %86 = vector.shape_cast %85 : vector<16x1xf32> to vector<16x1xf32>
    %87 = vector.broadcast %86 : vector<16x1xf32> to vector<16x16xf32>
    %88 = vector.broadcast %cst_19 : f32 to vector<16x16xf32>
    %89 = arith.select %84, %87, %88 : vector<16x16xi1>, vector<16x16xf32>
    %90 = arith.addf %82, %89 : vector<16x16xf32>
    %c0_20 = arith.constant 0 : index
    %c0_21 = arith.constant 0 : index
    %91 = vector.load %arg18[%c0_20, %c0_21] : memref<16x16xf32, #tpu.memory_space<vmem>>, vector<16x16xf32>
    %cst_22 = arith.constant -1.000000e+04 : f32
    %92 = vector.broadcast %cst_22 : f32 to vector<16x16xf32>
    %93 = arith.cmpf oeq, %91, %92 : vector<16x16xf32>
    %cst_23 = arith.constant 0.353553385 : f32
    %94 = vector.broadcast %cst_23 : f32 to vector<16x16xf32>
    %95 = arith.mulf %90, %94 : vector<16x16xf32>
    %96 = arith.addf %95, %91 : vector<16x16xf32>
    %cst_24 = arith.constant -1.000000e+04 : f32
    %97 = vector.broadcast %cst_24 : f32 to vector<16x16xf32>
    %98 = arith.select %93, %97, %96 : vector<16x16xi1>, vector<16x16xf32>
    %cst_25 = arith.constant dense<0xFF800000> : vector<16xf32>
    %99 = vector.multi_reduction <maximumf>, %98, %cst_25 [1] : vector<16x16xf32> to vector<16xf32>
    %100 = vector.shape_cast %99 : vector<16xf32> to vector<16x1xf32>
    %101 = vector.broadcast %100 : vector<16x1xf32> to vector<16x16xf32>
    %102 = arith.subf %98, %101 : vector<16x16xf32>
    %103 = math.exp %102 : vector<16x16xf32>
    %cst_26 = arith.constant dense<0.000000e+00> : vector<16xf32>
    %104 = vector.multi_reduction <add>, %103, %cst_26 [1] : vector<16x16xf32> to vector<16xf32>
    %105 = vector.shape_cast %104 : vector<16xf32> to vector<16x1xf32>
    %cst_27 = arith.constant 1.000000e+00 : f32
    %106 = vector.broadcast %cst_27 : f32 to vector<16x1xf32>
    %107 = arith.divf %106, %105 : vector<16x1xf32>
    %cst_28 = arith.constant dense<0.000000e+00> : vector<16x8xf32>
    %108 = tpu.matmul %103, %11, %cst_28 {dimension_numbers = #tpu.dot_dimension_numbers<[1], [0], [0], [1], [0, 0, 1, 1], [], []>, precision = #tpu.contract_precision<fp32>} : vector<16x16xf32>, vector<16x8xf32>, vector<16x8xf32> -> vector<16x8xf32>
    %c0_29 = arith.constant 0 : index
    %c0_30 = arith.constant 0 : index
    %c0_31 = arith.constant 0 : index
    %109 = vector.load %arg15[%c0_29, %c0_30, %c0_31] : memref<1x9x8xf32, #tpu.memory_space<vmem>>, vector<1x9x8xf32>
    %110 = vector.shape_cast %109 : vector<1x9x8xf32> to vector<9x8xf32>
    %c-4_i32_32 = arith.constant -4 : i32
    %111 = vector.broadcast %c-4_i32_32 : i32 to vector<16x16xi32>
    %112 = arith.cmpi eq, %18, %111 : vector<16x16xi32>
    %cst_33 = arith.constant 0.000000e+00 : f32
    %113 = vector.broadcast %cst_33 : f32 to vector<16x16xf32>
    %114 = arith.select %112, %103, %113 : vector<16x16xi1>, vector<16x16xf32>
    %cst_34 = arith.constant dense<0.000000e+00> : vector<16xf32>
    %115 = vector.multi_reduction <add>, %114, %cst_34 [1] : vector<16x16xf32> to vector<16xf32>
    %116 = vector.shape_cast %115 : vector<16xf32> to vector<16x1xf32>
    %117 = vector.extract_strided_slice %110 {offsets = [0, 0], sizes = [1, 8], strides = [1, 1]} : vector<9x8xf32> to vector<1x8xf32>
    %118 = vector.broadcast %116 : vector<16x1xf32> to vector<16x8xf32>
    %119 = vector.broadcast %117 : vector<1x8xf32> to vector<16x8xf32>
    %120 = arith.mulf %118, %119 : vector<16x8xf32>
    %121 = arith.addf %108, %120 : vector<16x8xf32>
    %c-3_i32_35 = arith.constant -3 : i32
    %122 = vector.broadcast %c-3_i32_35 : i32 to vector<16x16xi32>
    %123 = arith.cmpi eq, %18, %122 : vector<16x16xi32>
    %cst_36 = arith.constant 0.000000e+00 : f32
    %124 = vector.broadcast %cst_36 : f32 to vector<16x16xf32>
    %125 = arith.select %123, %103, %124 : vector<16x16xi1>, vector<16x16xf32>
    %cst_37 = arith.constant dense<0.000000e+00> : vector<16xf32>
    %126 = vector.multi_reduction <add>, %125, %cst_37 [1] : vector<16x16xf32> to vector<16xf32>
    %127 = vector.shape_cast %126 : vector<16xf32> to vector<16x1xf32>
    %128 = vector.extract_strided_slice %110 {offsets = [1, 0], sizes = [1, 8], strides = [1, 1]} : vector<9x8xf32> to vector<1x8xf32>
    %129 = vector.broadcast %127 : vector<16x1xf32> to vector<16x8xf32>
    %130 = vector.broadcast %128 : vector<1x8xf32> to vector<16x8xf32>
    %131 = arith.mulf %129, %130 : vector<16x8xf32>
    %132 = arith.addf %121, %131 : vector<16x8xf32>
    %c-2_i32_38 = arith.constant -2 : i32
    %133 = vector.broadcast %c-2_i32_38 : i32 to vector<16x16xi32>
    %134 = arith.cmpi eq, %18, %133 : vector<16x16xi32>
    %cst_39 = arith.constant 0.000000e+00 : f32
    %135 = vector.broadcast %cst_39 : f32 to vector<16x16xf32>
    %136 = arith.select %134, %103, %135 : vector<16x16xi1>, vector<16x16xf32>
    %cst_40 = arith.constant dense<0.000000e+00> : vector<16xf32>
    %137 = vector.multi_reduction <add>, %136, %cst_40 [1] : vector<16x16xf32> to vector<16xf32>
    %138 = vector.shape_cast %137 : vector<16xf32> to vector<16x1xf32>
    %139 = vector.extract_strided_slice %110 {offsets = [2, 0], sizes = [1, 8], strides = [1, 1]} : vector<9x8xf32> to vector<1x8xf32>
    %140 = vector.broadcast %138 : vector<16x1xf32> to vector<16x8xf32>
    %141 = vector.broadcast %139 : vector<1x8xf32> to vector<16x8xf32>
    %142 = arith.mulf %140, %141 : vector<16x8xf32>
    %143 = arith.addf %132, %142 : vector<16x8xf32>
    %c-1_i32_41 = arith.constant -1 : i32
    %144 = vector.broadcast %c-1_i32_41 : i32 to vector<16x16xi32>
    %145 = arith.cmpi eq, %18, %144 : vector<16x16xi32>
    %cst_42 = arith.constant 0.000000e+00 : f32
    %146 = vector.broadcast %cst_42 : f32 to vector<16x16xf32>
    %147 = arith.select %145, %103, %146 : vector<16x16xi1>, vector<16x16xf32>
    %cst_43 = arith.constant dense<0.000000e+00> : vector<16xf32>
    %148 = vector.multi_reduction <add>, %147, %cst_43 [1] : vector<16x16xf32> to vector<16xf32>
    %149 = vector.shape_cast %148 : vector<16xf32> to vector<16x1xf32>
    %150 = vector.extract_strided_slice %110 {offsets = [3, 0], sizes = [1, 8], strides = [1, 1]} : vector<9x8xf32> to vector<1x8xf32>
    %151 = vector.broadcast %149 : vector<16x1xf32> to vector<16x8xf32>
    %152 = vector.broadcast %150 : vector<1x8xf32> to vector<16x8xf32>
    %153 = arith.mulf %151, %152 : vector<16x8xf32>
    %154 = arith.addf %143, %153 : vector<16x8xf32>
    %c0_i32_44 = arith.constant 0 : i32
    %155 = vector.broadcast %c0_i32_44 : i32 to vector<16x16xi32>
    %156 = arith.cmpi eq, %18, %155 : vector<16x16xi32>
    %cst_45 = arith.constant 0.000000e+00 : f32
    %157 = vector.broadcast %cst_45 : f32 to vector<16x16xf32>
    %158 = arith.select %156, %103, %157 : vector<16x16xi1>, vector<16x16xf32>
    %cst_46 = arith.constant dense<0.000000e+00> : vector<16xf32>
    %159 = vector.multi_reduction <add>, %158, %cst_46 [1] : vector<16x16xf32> to vector<16xf32>
    %160 = vector.shape_cast %159 : vector<16xf32> to vector<16x1xf32>
    %161 = vector.extract_strided_slice %110 {offsets = [4, 0], sizes = [1, 8], strides = [1, 1]} : vector<9x8xf32> to vector<1x8xf32>
    %162 = vector.broadcast %160 : vector<16x1xf32> to vector<16x8xf32>
    %163 = vector.broadcast %161 : vector<1x8xf32> to vector<16x8xf32>
    %164 = arith.mulf %162, %163 : vector<16x8xf32>
    %165 = arith.addf %154, %164 : vector<16x8xf32>
    %c1_i32_47 = arith.constant 1 : i32
    %166 = vector.broadcast %c1_i32_47 : i32 to vector<16x16xi32>
    %167 = arith.cmpi eq, %18, %166 : vector<16x16xi32>
    %cst_48 = arith.constant 0.000000e+00 : f32
    %168 = vector.broadcast %cst_48 : f32 to vector<16x16xf32>
    %169 = arith.select %167, %103, %168 : vector<16x16xi1>, vector<16x16xf32>
    %cst_49 = arith.constant dense<0.000000e+00> : vector<16xf32>
    %170 = vector.multi_reduction <add>, %169, %cst_49 [1] : vector<16x16xf32> to vector<16xf32>
    %171 = vector.shape_cast %170 : vector<16xf32> to vector<16x1xf32>
    %172 = vector.extract_strided_slice %110 {offsets = [5, 0], sizes = [1, 8], strides = [1, 1]} : vector<9x8xf32> to vector<1x8xf32>
    %173 = vector.broadcast %171 : vector<16x1xf32> to vector<16x8xf32>
    %174 = vector.broadcast %172 : vector<1x8xf32> to vector<16x8xf32>
    %175 = arith.mulf %173, %174 : vector<16x8xf32>
    %176 = arith.addf %165, %175 : vector<16x8xf32>
    %c2_i32_50 = arith.constant 2 : i32
    %177 = vector.broadcast %c2_i32_50 : i32 to vector<16x16xi32>
    %178 = arith.cmpi eq, %18, %177 : vector<16x16xi32>
    %cst_51 = arith.constant 0.000000e+00 : f32
    %179 = vector.broadcast %cst_51 : f32 to vector<16x16xf32>
    %180 = arith.select %178, %103, %179 : vector<16x16xi1>, vector<16x16xf32>
    %cst_52 = arith.constant dense<0.000000e+00> : vector<16xf32>
    %181 = vector.multi_reduction <add>, %180, %cst_52 [1] : vector<16x16xf32> to vector<16xf32>
    %182 = vector.shape_cast %181 : vector<16xf32> to vector<16x1xf32>
    %183 = vector.extract_strided_slice %110 {offsets = [6, 0], sizes = [1, 8], strides = [1, 1]} : vector<9x8xf32> to vector<1x8xf32>
    %184 = vector.broadcast %182 : vector<16x1xf32> to vector<16x8xf32>
    %185 = vector.broadcast %183 : vector<1x8xf32> to vector<16x8xf32>
    %186 = arith.mulf %184, %185 : vector<16x8xf32>
    %187 = arith.addf %176, %186 : vector<16x8xf32>
    %c3_i32_53 = arith.constant 3 : i32
    %188 = vector.broadcast %c3_i32_53 : i32 to vector<16x16xi32>
    %189 = arith.cmpi eq, %18, %188 : vector<16x16xi32>
    %cst_54 = arith.constant 0.000000e+00 : f32
    %190 = vector.broadcast %cst_54 : f32 to vector<16x16xf32>
    %191 = arith.select %189, %103, %190 : vector<16x16xi1>, vector<16x16xf32>
    %cst_55 = arith.constant dense<0.000000e+00> : vector<16xf32>
    %192 = vector.multi_reduction <add>, %191, %cst_55 [1] : vector<16x16xf32> to vector<16xf32>
    %193 = vector.shape_cast %192 : vector<16xf32> to vector<16x1xf32>
    %194 = vector.extract_strided_slice %110 {offsets = [7, 0], sizes = [1, 8], strides = [1, 1]} : vector<9x8xf32> to vector<1x8xf32>
    %195 = vector.broadcast %193 : vector<16x1xf32> to vector<16x8xf32>
    %196 = vector.broadcast %194 : vector<1x8xf32> to vector<16x8xf32>
    %197 = arith.mulf %195, %196 : vector<16x8xf32>
    %198 = arith.addf %187, %197 : vector<16x8xf32>
    %c4_i32_56 = arith.constant 4 : i32
    %199 = vector.broadcast %c4_i32_56 : i32 to vector<16x16xi32>
    %200 = arith.cmpi eq, %18, %199 : vector<16x16xi32>
    %cst_57 = arith.constant 0.000000e+00 : f32
    %201 = vector.broadcast %cst_57 : f32 to vector<16x16xf32>
    %202 = arith.select %200, %103, %201 : vector<16x16xi1>, vector<16x16xf32>
    %cst_58 = arith.constant dense<0.000000e+00> : vector<16xf32>
    %203 = vector.multi_reduction <add>, %202, %cst_58 [1] : vector<16x16xf32> to vector<16xf32>
    %204 = vector.shape_cast %203 : vector<16xf32> to vector<16x1xf32>
    %205 = vector.extract_strided_slice %110 {offsets = [8, 0], sizes = [1, 8], strides = [1, 1]} : vector<9x8xf32> to vector<1x8xf32>
    %206 = vector.broadcast %204 : vector<16x1xf32> to vector<16x8xf32>
    %207 = vector.broadcast %205 : vector<1x8xf32> to vector<16x8xf32>
    %208 = arith.mulf %206, %207 : vector<16x8xf32>
    %209 = arith.addf %198, %208 : vector<16x8xf32>
    %210 = vector.broadcast %107 : vector<16x1xf32> to vector<16x8xf32>
    %211 = arith.mulf %209, %210 : vector<16x8xf32>
    %212 = arith.index_cast %arg1 : i32 to index
    %c0_59 = arith.constant 0 : index
    %c0_60 = arith.constant 0 : index
    %213 = vector.load %arg22[%212, %c0_59, %c0_60] : memref<4x16x8xf32, #tpu.memory_space<vmem>>, vector<1x16x8xf32>
    %214 = vector.shape_cast %213 : vector<1x16x8xf32> to vector<16x8xf32>
    %215 = vector.shape_cast %211 : vector<16x8xf32> to vector<1x16x8xf32>
    tpu.vector_store %arg22[%212, %c0_59, %c0_60], %215 {strides = array<i32>} : memref<4x16x8xf32, #tpu.memory_space<vmem>>, vector<1x16x8xf32>,
    %c3_i32_61 = arith.constant 3 : i32
    %216 = arith.cmpi eq, %arg1, %c3_i32_61 : i32
    %217 = arith.extui %216 : i1 to i32
    %c0_i32_62 = arith.constant 0 : i32
    %218 = arith.cmpi ne, %217, %c0_i32_62 : i32
    scf.if %218 {
      %c0_63 = arith.constant 0 : index
      %c0_64 = arith.constant 0 : index
      %c0_65 = arith.constant 0 : index
      %219 = vector.load %arg22[%c0_63, %c0_64, %c0_65] : memref<4x16x8xf32, #tpu.memory_space<vmem>>, vector<1x16x8xf32>
      %220 = vector.shape_cast %219 : vector<1x16x8xf32> to vector<16x8xf32>
      %c1 = arith.constant 1 : index
      %c0_66 = arith.constant 0 : index
      %c0_67 = arith.constant 0 : index
      %221 = vector.load %arg22[%c1, %c0_66, %c0_67] : memref<4x16x8xf32, #tpu.memory_space<vmem>>, vector<1x16x8xf32>
      %222 = vector.shape_cast %221 : vector<1x16x8xf32> to vector<16x8xf32>
      %c2 = arith.constant 2 : index
      %c0_68 = arith.constant 0 : index
      %c0_69 = arith.constant 0 : index
      %223 = vector.load %arg22[%c2, %c0_68, %c0_69] : memref<4x16x8xf32, #tpu.memory_space<vmem>>, vector<1x16x8xf32>
      %224 = vector.shape_cast %223 : vector<1x16x8xf32> to vector<16x8xf32>
      %c3 = arith.constant 3 : index
      %c0_70 = arith.constant 0 : index
      %c0_71 = arith.constant 0 : index
      %225 = vector.load %arg22[%c3, %c0_70, %c0_71] : memref<4x16x8xf32, #tpu.memory_space<vmem>>, vector<1x16x8xf32>
      %226 = vector.shape_cast %225 : vector<1x16x8xf32> to vector<16x8xf32>
      %227 = tpu.concatenate %220, %222, %224, %226 in 1 : vector<16x8xf32>, vector<16x8xf32>, vector<16x8xf32>, vector<16x8xf32> -> vector<16x32xf32>
      %c0_72 = arith.constant 0 : index
      %c0_73 = arith.constant 0 : index
      %228 = vector.load %arg12[%c0_72, %c0_73] : memref<32x32xf32, #tpu.memory_space<vmem>>, vector<32x32xf32>
      %cst_74 = arith.constant dense<0.000000e+00> : vector<16x32xf32>
      %229 = tpu.matmul %227, %228, %cst_74 {dimension_numbers = #tpu.dot_dimension_numbers<[1], [0], [0], [1], [0, 0, 1, 1], [], []>, precision = #tpu.contract_precision<fp32>} : vector<16x32xf32>, vector<32x32xf32>, vector<16x32xf32> -> vector<16x32xf32>
      %c0_75 = arith.constant 0 : index
      %c0_76 = arith.constant 0 : index
      %230 = vector.load %arg13[%c0_75, %c0_76] : memref<1x32xf32, #tpu.memory_space<vmem>>, vector<1x32xf32>
      %231 = vector.broadcast %230 : vector<1x32xf32> to vector<16x32xf32>
      %232 = arith.addf %229, %231 : vector<16x32xf32>
      %c0_77 = arith.constant 0 : index
      %c0_78 = arith.constant 0 : index
      %c0_79 = arith.constant 0 : index
      %233 = vector.load %arg17[%c0_77, %c0_78, %c0_79] : memref<1x16x32xf32, #tpu.memory_space<vmem>>, vector<1x16x32xf32>
      %234 = vector.shape_cast %233 : vector<1x16x32xf32> to vector<16x32xf32>
      %235 = vector.shape_cast %232 : vector<16x32xf32> to vector<1x16x32xf32>
      tpu.vector_store %arg17[%c0_77, %c0_78, %c0_79], %235 {strides = array<i32>} : memref<1x16x32xf32, #tpu.memory_space<vmem>>, vector<1x16x32xf32>,
    } else {
    }
    return
  }
  func.func @transform_0(%arg0: i32, %arg1: i32) -> (i32, i32, i32) {
    %c0_i32 = arith.constant 0 : i32
    %c0_i32_0 = arith.constant 0 : i32
    %c0_i32_1 = arith.constant 0 : i32
    return %arg0, %c0_i32, %c0_i32_0 : i32, i32, i32
  }
  func.func @transform_1(%arg0: i32, %arg1: i32) -> (i32, i32, i32) {
    %c0_i32 = arith.constant 0 : i32
    %c0_i32_0 = arith.constant 0 : i32
    %c0_i32_1 = arith.constant 0 : i32
    return %arg0, %c0_i32, %c0_i32_0 : i32, i32, i32
  }
  func.func @transform_2(%arg0: i32, %arg1: i32) -> (i32, i32, i32) {
    %c0_i32 = arith.constant 0 : i32
    %c0_i32_0 = arith.constant 0 : i32
    %c0_i32_1 = arith.constant 0 : i32
    return %arg0, %c0_i32, %c0_i32_0 : i32, i32, i32
  }
  func.func @transform_3(%arg0: i32, %arg1: i32) -> (i32, i32, i32) {
    %c0_i32 = arith.constant 0 : i32
    %c0_i32_0 = arith.constant 0 : i32
    %c0_i32_1 = arith.constant 0 : i32
    return %arg0, %c0_i32, %c0_i32_0 : i32, i32, i32
  }
  func.func @transform_4(%arg0: i32, %arg1: i32) -> (i32, i32) {
    %c0_i32 = arith.constant 0 : i32
    %c0_i32_0 = arith.constant 0 : i32
    %c0_i32_1 = arith.constant 0 : i32
    return %c0_i32, %c0_i32_0 : i32, i32
  }
  func.func @transform_5(%arg0: i32, %arg1: i32) -> (i32, i32) {
    %c0_i32 = arith.constant 0 : i32
    %c0_i32_0 = arith.constant 0 : i32
    %c0_i32_1 = arith.constant 0 : i32
    return %c0_i32, %c0_i32_0 : i32, i32
  }
  func.func @transform_6(%arg0: i32, %arg1: i32) -> (i32, i32) {
    %c0_i32 = arith.constant 0 : i32
    %c0_i32_0 = arith.constant 0 : i32
    %c0_i32_1 = arith.constant 0 : i32
    return %c0_i32, %c0_i32_0 : i32, i32
  }
  func.func @transform_7(%arg0: i32, %arg1: i32) -> (i32, i32) {
    %c0_i32 = arith.constant 0 : i32
    %c0_i32_0 = arith.constant 0 : i32
    %c0_i32_1 = arith.constant 0 : i32
    return %c0_i32, %c0_i32_0 : i32, i32
  }
  func.func @transform_8(%arg0: i32, %arg1: i32) -> (i32, i32) {
    %c0_i32 = arith.constant 0 : i32
    %c0_i32_0 = arith.constant 0 : i32
    %c0_i32_1 = arith.constant 0 : i32
    return %c0_i32, %c0_i32_0 : i32, i32
  }
  func.func @transform_9(%arg0: i32, %arg1: i32) -> (i32, i32) {
    %c0_i32 = arith.constant 0 : i32
    %c0_i32_0 = arith.constant 0 : i32
    %c0_i32_1 = arith.constant 0 : i32
    return %c0_i32, %c0_i32_0 : i32, i32
  }
  func.func @transform_10(%arg0: i32, %arg1: i32) -> (i32, i32) {
    %c0_i32 = arith.constant 0 : i32
    %c0_i32_0 = arith.constant 0 : i32
    %c0_i32_1 = arith.constant 0 : i32
    return %c0_i32, %c0_i32_0 : i32, i32
  }
  func.func @transform_11(%arg0: i32, %arg1: i32) -> (i32, i32) {
    %c0_i32 = arith.constant 0 : i32
    %c0_i32_0 = arith.constant 0 : i32
    %c0_i32_1 = arith.constant 0 : i32
    return %c0_i32, %c0_i32_0 : i32, i32
  }
  func.func @transform_12(%arg0: i32, %arg1: i32) -> (i32, i32, i32) {
    %c0_i32 = arith.constant 0 : i32
    %c0_i32_0 = arith.constant 0 : i32
    %c0_i32_1 = arith.constant 0 : i32
    %c0_i32_2 = arith.constant 0 : i32
    return %c0_i32, %c0_i32_0, %c0_i32_1 : i32, i32, i32
  }
  func.func @transform_13(%arg0: i32, %arg1: i32) -> (i32, i32, i32) {
    %c0_i32 = arith.constant 0 : i32
    %c0_i32_0 = arith.constant 0 : i32
    %c0_i32_1 = arith.constant 0 : i32
    %c0_i32_2 = arith.constant 0 : i32
    return %c0_i32, %c0_i32_0, %c0_i32_1 : i32, i32, i32
  }
  func.func @transform_14(%arg0: i32, %arg1: i32) -> (i32, i32, i32) {
    %c0_i32 = arith.constant 0 : i32
    %c0_i32_0 = arith.constant 0 : i32
    %c0_i32_1 = arith.constant 0 : i32
    return %arg0, %c0_i32, %c0_i32_0 : i32, i32, i32
  }
  func.func @transform_15(%arg0: i32, %arg1: i32) -> (i32, i32, i32) {
    %c0_i32 = arith.constant 0 : i32
    %c0_i32_0 = arith.constant 0 : i32
    %c0_i32_1 = arith.constant 0 : i32
    return %arg0, %c0_i32, %c0_i32_0 : i32, i32, i32
  }
}

</mosaic_0001>

<llo_original>
// kernel: tpu_custom_call.1
$region0: #{tpu_custom_call.1}
  #allocation0 [shape = 'u32[]', space=smem, size = 0x4, offset = 0x4, fixed_abs, tag = 'smem constant byte address 0x4 - core index']
  #allocation1 [shape = 'u32[72,128]{1,0:T(1,128)}', space=vmem, size = 0x9000, scoped, tag = 'internal scratch']
  %s0 = inlined_call_operand.hbm [shape: f32[8,128], index: 0, kind: input, shape index: {}]
  %s1 = inlined_call_operand.hbm [shape: f32[8,128], index: 1, kind: output, shape index: {0}]
  %s2 = inlined_call_operand.hbm [shape: f32[8,128], index: 2, kind: output, shape index: {1}]
  %3 = xla_tuple %s1, %s2
  %s4 = sld [smem:[#allocation0]]
  $region26: #{tpu_custom_call.1} parent=0
    _
  %s6 = ssub.s32 1, %s4
  %s7 = scalar_select 0, %s6, %s4
  $region1: #{tpu_custom_call.1} parent=0
    #allocation2 [shape = 'u8[4096]{0}', space=vmem, size = 0x1000, scoped, tag = 'input window, operand 0, single buffered']
    #allocation3 [shape = 's32[1]{0}', space=sflag, size = 0x4, scoped, tag = 'scoped memory for tpu_custom_call.1']
    #allocation4 [shape = 's32[1]{0}', space=sflag, size = 0x4, scoped, tag = 'scoped memory for tpu_custom_call.1']
    #allocation5 [shape = 'u8[4096]{0}', space=vmem, size = 0x1000, scoped, tag = 'output window, operand 0, single buffered']
    #allocation6 [shape = 'u8[4096]{0}', space=vmem, size = 0x1000, scoped, tag = 'output window, operand 1, single buffered']
    #allocation7 [shape = 's32[1]{0}', space=sflag, size = 0x4, scoped, tag = 'scoped memory for tpu_custom_call.1']
    %8 = vsyncpa [#allocation3], 0
    %9 = vsyncpa [#allocation4], 0
    %10 = vsyncpa [#allocation7], 0
    // Predicated region
    $region2: #{tpu_custom_call.1} parent=1 // pred_check
      _
    $region3: #{tpu_custom_call.1} parent=1 // pred_check_branch
      %12 = sbr.rel (0) target = $region5
    $region4: #{tpu_custom_call.1} parent=1 // pred_region
      %14 = vsyncadd [#allocation3], 0
      %s16 = sshll.u32 %s0, 4
      %s17 = int_to_ptr.hbm [resolvable:$true] %s16
      %s18 = sshll.u32 [#allocation2], 4
      %s19 = int_to_ptr.vmem [resolvable:$true] %s18
      %21 = dma.hbm_to_vmem [thread:$0]  %s17, 128, %s19, [#allocation3]
    $region5: #{tpu_custom_call.1} parent=1 // pred_fallthru
      _
    // Predicated region
    $region6: #{tpu_custom_call.1} parent=1 // pred_check
      _
    $region7: #{tpu_custom_call.1} parent=1 // pred_check_branch
      %23 = sbr.rel (0) target = $region9
    $region8: #{tpu_custom_call.1} parent=1 // pred_region
      %25 = dma.done [#allocation3], 128
    $region9: #{tpu_custom_call.1} parent=1 // pred_fallthru
      _
    %v26 = vld [vmem:[#allocation2] sm:$0xff]
    %s28 = sor.u32 256, 3
    %29 = vrot.lane.b32.xlu0 %v26, %s28
    %v30 = vpop.permute.xlu0 %29
    %31 = vst [vmem:[#allocation5] sm:$0xff] %v30
    %v32 = vld [vmem:[#allocation2] sm:$0xff]
    %v33 = vrot.slane %v32, 5
    %34 = vst [vmem:[#allocation6] sm:$0xff] %v33
    // Predicated region
    $region10: #{tpu_custom_call.1} parent=1 // pred_check
      _
    $region11: #{tpu_custom_call.1} parent=1 // pred_check_branch
      %36 = sbr.rel (0) target = $region13
    $region12: #{tpu_custom_call.1} parent=1 // pred_region
      %38 = vsyncadd [#allocation4], 0
      %s40 = sshll.u32 [#allocation5], 4
      %s41 = int_to_ptr.vmem [resolvable:$true] %s40
      %s42 = sshll.u32 %s1, 4
      %s43 = int_to_ptr.hbm [resolvable:$true] %s42
      %45 = dma.vmem_to_hbm [thread:$0]  %s41, 128, %s43, [#allocation4]
    $region13: #{tpu_custom_call.1} parent=1 // pred_fallthru
      _
    // Predicated region
    $region14: #{tpu_custom_call.1} parent=1 // pred_check
      _
    $region15: #{tpu_custom_call.1} parent=1 // pred_check_branch
      %47 = sbr.rel (0) target = $region17
    $region16: #{tpu_custom_call.1} parent=1 // pred_region
      %49 = vsyncadd [#allocation7], 0
      %s51 = sshll.u32 [#allocation6], 4
      %s52 = int_to_ptr.vmem [resolvable:$true] %s51
      %s53 = sshll.u32 %s2, 4
      %s54 = int_to_ptr.hbm [resolvable:$true] %s53
      %56 = dma.vmem_to_hbm [thread:$0]  %s52, 128, %s54, [#allocation7]
    $region17: #{tpu_custom_call.1} parent=1 // pred_fallthru
      _
    // Predicated region
    $region18: #{tpu_custom_call.1} parent=1 // pred_check
      _
    $region19: #{tpu_custom_call.1} parent=1 // pred_check_branch
      %58 = sbr.rel (0) target = $region21
    $region20: #{tpu_custom_call.1} parent=1 // pred_region
      %60 = dma.done [#allocation4], 128
    $region21: #{tpu_custom_call.1} parent=1 // pred_fallthru
      _
    // Predicated region
    $region22: #{tpu_custom_call.1} parent=1 // pred_check
      _
    $region23: #{tpu_custom_call.1} parent=1 // pred_check_branch
      %62 = sbr.rel (0) target = $region25
    $region24: #{tpu_custom_call.1} parent=1 // pred_region
      %64 = dma.done [#allocation7], 128
    $region25: #{tpu_custom_call.1} parent=1 // pred_fallthru
      _
    %65 = vsyncpa [#allocation3], 1
    %66 = vsyncpa [#allocation4], 1
    %67 = vsyncpa [#allocation7], 1

// kernel: tpu_custom_call.1
$region0: #{tpu_custom_call.1}
  #allocation0 [shape = 'u32[]', space=smem, size = 0x4, offset = 0x4, fixed_abs, tag = 'smem constant byte address 0x4 - core index']
  #allocation1 [shape = 'u32[72,128]{1,0:T(1,128)}', space=vmem, size = 0x9000, scoped, tag = 'internal scratch']
  #allocation2 [shape = 'f32[16,16]{1,0:T(8,128)}', space=vmem, size = 0x2000, scoped, tag = 'scratch operand']
  #allocation3 [shape = 'f32[4,16,8]{2,1,0:T(8,128)}', space=vmem, size = 0x8000, scoped, tag = 'scratch operand']
  #allocation4 [shape = 'f32[4,16,8]{2,1,0:T(8,128)}', space=vmem, size = 0x8000, scoped, tag = 'scratch operand']
  #allocation5 [shape = 'f32[4,16,8]{2,1,0:T(8,128)}', space=vmem, size = 0x8000, scoped, tag = 'scratch operand']
  #allocation6 [shape = 'f32[4,16,8]{2,1,0:T(8,128)}', space=vmem, size = 0x8000, scoped, tag = 'scratch operand']
  %s0 = inlined_call_operand.vmem [shape: f32[2,16,32], index: 0, kind: input, shape index: {}]
  %s1 = inlined_call_operand.vmem [shape: f32[2,16,32], index: 1, kind: input, shape index: {}]
  %s2 = inlined_call_operand.vmem [shape: f32[2,1,16], index: 2, kind: input, shape index: {}]
  %s3 = inlined_call_operand.vmem [shape: f32[2,16,1], index: 3, kind: input, shape index: {}]
  %s4 = inlined_call_operand.vmem [shape: f32[32,32], index: 4, kind: input, shape index: {}]
  %s5 = inlined_call_operand.vmem [shape: f32[1,32], index: 5, kind: input, shape index: {}]
  %s6 = inlined_call_operand.vmem [shape: f32[32,32], index: 6, kind: input, shape index: {}]
  %s7 = inlined_call_operand.vmem [shape: f32[1,32], index: 7, kind: input, shape index: {}]
  %s8 = inlined_call_operand.vmem [shape: f32[32,32], index: 8, kind: input, shape index: {}]
  %s9 = inlined_call_operand.vmem [shape: f32[1,32], index: 9, kind: input, shape index: {}]
  %s10 = inlined_call_operand.vmem [shape: f32[32,32], index: 10, kind: input, shape index: {}]
  %s11 = inlined_call_operand.vmem [shape: f32[1,32], index: 11, kind: input, shape index: {}]
  %s12 = inlined_call_operand.vmem [shape: f32[1,128,8], index: 12, kind: input, shape index: {}]
  %s13 = inlined_call_operand.vmem [shape: f32[1,9,8], index: 13, kind: input, shape index: {}]
  %s14 = inlined_call_operand.vmem [shape: f32[2,16,9], index: 14, kind: input, shape index: {}]
  %s15 = inlined_call_operand.hbm [shape: f32[2,16,32], index: 15, kind: output, shape index: {}]
  %s16 = sld [smem:[#allocation0]]
  $region101: #{tpu_custom_call.1} parent=0
    _
  %s18 = ssub.s32 1, %s16
  %s19 = scalar_select 0, %s18, %s16
  $region1: #{tpu_custom_call.1} parent=0
    #allocation7 [shape = 'u8[16384]{0}', space=vmem, size = 0x4000, scoped, tag = 'output window, operand 0']
    #allocation8 [shape = 's32[2]{0}', space=sflag, size = 0x8, scoped, tag = 'scoped memory for tpu_custom_call.1']
    %20 = vsyncpa [#allocation8], 0
    %s21 = scalar_lea.sflag [#allocation8], 1
    %22 = vsyncpa %s21, 0
    loop: start=0, step=1, limit=10
    $region2: #{tpu_custom_call.1} parent=1 // loop_pre_header
      _
    $region3: #{tpu_custom_call.1} parent=1 // loop_header
      %s24 = sphi 0, %s28
      %p25 = scmp.ge.s32.totalorder %s24, 10
      %s31 = sphi 0, %s43
      %s32 = sphi 0, %s39
      %s33 = sphi 0, %s31
      %s34 = sphi 0, %s32
      %s35 = sphi 0, %s33
      %s36 = sphi 0, %s34
      %s46 = sphi 0, %s48
      %s49 = sphi 0, %s46
      %s50 = sphi 0, %s49
      %s66 = sphi 0, %s50
      %s72 = sphi 0, %s74
      %s75 = sphi 0, %s72
      %s76 = sphi 0, %s75
      %s92 = sphi 0, %s76
      %s98 = sphi 0, %s100
      %s101 = sphi 0, %s98
      %s102 = sphi 0, %s101
      %s118 = sphi 0, %s102
      %s124 = sphi 0, %s126
      %s127 = sphi 0, %s124
      %s128 = sphi 0, %s127
      %s144 = sphi 0, %s128
      %s148 = sphi 0, %s148
      %s150 = sphi 0, %s148
      %s151 = sphi 0, %s150
      %s165 = sphi 0, %s151
      %s169 = sphi 0, %s169
      %s171 = sphi 0, %s169
      %s172 = sphi 0, %s171
      %s186 = sphi 0, %s172
      %s190 = sphi 0, %s190
      %s192 = sphi 0, %s190
      %s193 = sphi 0, %s192
      %s207 = sphi 0, %s193
      %s211 = sphi 0, %s211
      %s213 = sphi 0, %s211
      %s214 = sphi 0, %s213
      %s228 = sphi 0, %s214
      %s232 = sphi 0, %s232
      %s234 = sphi 0, %s232
      %s235 = sphi 0, %s234
      %s249 = sphi 0, %s235
      %s253 = sphi 0, %s253
      %s255 = sphi 0, %s253
      %s256 = sphi 0, %s255
      %s270 = sphi 0, %s256
      %s274 = sphi 0, %s274
      %s276 = sphi 0, %s274
      %s277 = sphi 0, %s276
      %s291 = sphi 0, %s277
      %s295 = sphi 0, %s295
      %s297 = sphi 0, %s295
      %s298 = sphi 0, %s297
      %s312 = sphi 0, %s298
      %s316 = sphi 0, %s316
      %s318 = sphi 0, %s316
      %s319 = sphi 0, %s318
      %s333 = sphi 0, %s319
      %s337 = sphi 0, %s337
      %s339 = sphi 0, %s337
      %s340 = sphi 0, %s339
      %s354 = sphi 0, %s340
      %s360 = sphi 0, %s362
      %s363 = sphi 0, %s360
      %s364 = sphi 0, %s363
      %s380 = sphi 0, %s364
      %s386 = sphi 0, %s388
      %s389 = sphi 0, %s386
      %s390 = sphi 0, %s389
      %s406 = sphi 0, %s390
    $region4: #{tpu_custom_call.1} parent=1 // loop_header_branch
      %27 = sbr.rel (%p25) target = $region8
    $region5: #{tpu_custom_call.1} parent=1 // loop_body
      %s29 = ssub.s32 %s24, 1
      %s30 = ssub.s32 %s24, 2
      %s37 = sadd.s32 1, %s32
      %p38 = scmp.ge.s32.totalorder %s37, 4
      %s39 = scalar_select %p38, 0, %s37
      %s40 = sadd.s32 1, %s31
      %s41 = scalar_select %p38, %s40, %s31
      %p42 = scmp.ge.s32.totalorder %s41, 2
      %s43 = scalar_select %p42, 0, %s41
      %s44 = ssub.s32 %s31, %s43
      %p45 = scmp.eq.s32.totalorder %s44, 0
      %s47 = sadd.s32 %s46, 1
      %s48 = scalar_select %p45, %s46, %s47
      %p51 = pneg %p45
      %p52 = scmp.eq.s32.totalorder %s24, 7
      %p53 = por %p51, %p52
      %p54 = scmp.ne.s32.totalorder %s46, %s49
      %p55 = scmp.eq.s32.totalorder %s24, 0
      %p56 = por %p54, %p55
      %p57 = scmp.ne.s32.totalorder %s46, %s49
      %p58 = scmp.eq.s32.totalorder %s29, 7
      %p59 = por %p57, %p58
      %p60 = scmp.ne.s32.totalorder %s49, %s50
      %p61 = scmp.eq.s32.totalorder %s29, 0
      %p62 = por %p60, %p61
      %p63 = scmp.ne.s32.totalorder %s49, %s50
      %p64 = scmp.eq.s32.totalorder %s30, 7
      %p65 = por %p63, %p64
      %p67 = scmp.ne.s32.totalorder %s50, %s66
      %p68 = scmp.eq.s32.totalorder %s30, 0
      %p69 = por %p67, %p68
      %s70 = ssub.s32 %s31, %s43
      %p71 = scmp.eq.s32.totalorder %s70, 0
      %s73 = sadd.s32 %s72, 1
      %s74 = scalar_select %p71, %s72, %s73
      %p77 = pneg %p71
      %p78 = scmp.eq.s32.totalorder %s24, 7
      %p79 = por %p77, %p78
      %p80 = scmp.ne.s32.totalorder %s72, %s75
      %p81 = scmp.eq.s32.totalorder %s24, 0
      %p82 = por %p80, %p81
      %p83 = scmp.ne.s32.totalorder %s72, %s75
      %p84 = scmp.eq.s32.totalorder %s29, 7
      %p85 = por %p83, %p84
      %p86 = scmp.ne.s32.totalorder %s75, %s76
      %p87 = scmp.eq.s32.totalorder %s29, 0
      %p88 = por %p86, %p87
      %p89 = scmp.ne.s32.totalorder %s75, %s76
      %p90 = scmp.eq.s32.totalorder %s30, 7
      %p91 = por %p89, %p90
      %p93 = scmp.ne.s32.totalorder %s76, %s92
      %p94 = scmp.eq.s32.totalorder %s30, 0
      %p95 = por %p93, %p94
      %s96 = ssub.s32 %s31, %s43
      %p97 = scmp.eq.s32.totalorder %s96, 0
      %s99 = sadd.s32 %s98, 1
      %s100 = scalar_select %p97, %s98, %s99
      %p103 = pneg %p97
      %p104 = scmp.eq.s32.totalorder %s24, 7
      %p105 = por %p103, %p104
      %p106 = scmp.ne.s32.totalorder %s98, %s101
      %p107 = scmp.eq.s32.totalorder %s24, 0
      %p108 = por %p106, %p107
      %p109 = scmp.ne.s32.totalorder %s98, %s101
      %p110 = scmp.eq.s32.totalorder %s29, 7
      %p111 = por %p109, %p110
      %p112 = scmp.ne.s32.totalorder %s101, %s102
      %p113 = scmp.eq.s32.totalorder %s29, 0
      %p114 = por %p112, %p113
      %p115 = scmp.ne.s32.totalorder %s101, %s102
      %p116 = scmp.eq.s32.totalorder %s30, 7
      %p117 = por %p115, %p116
      %p119 = scmp.ne.s32.totalorder %s102, %s118
      %p120 = scmp.eq.s32.totalorder %s30, 0
      %p121 = por %p119, %p120
      %s122 = ssub.s32 %s31, %s43
      %p123 = scmp.eq.s32.totalorder %s122, 0
      %s125 = sadd.s32 %s124, 1
      %s126 = scalar_select %p123, %s124, %s125
      %p129 = pneg %p123
      %p130 = scmp.eq.s32.totalorder %s24, 7
      %p131 = por %p129, %p130
      %p132 = scmp.ne.s32.totalorder %s124, %s127
      %p133 = scmp.eq.s32.totalorder %s24, 0
      %p134 = por %p132, %p133
      %p135 = scmp.ne.s32.totalorder %s124, %s127
      %p136 = scmp.eq.s32.totalorder %s29, 7
      %p137 = por %p135, %p136
      %p138 = scmp.ne.s32.totalorder %s127, %s128
      %p139 = scmp.eq.s32.totalorder %s29, 0
      %p140 = por %p138, %p139
      %p141 = scmp.ne.s32.totalorder %s127, %s128
      %p142 = scmp.eq.s32.totalorder %s30, 7
      %p143 = por %p141, %p142
      %p145 = scmp.ne.s32.totalorder %s128, %s144
      %p146 = scmp.eq.s32.totalorder %s30, 0
      %p147 = por %p145, %p146
      %s149 = sadd.s32 %s148, 1
      %p152 = scmp.eq.s32.totalorder %s24, 7
      %p153 = scmp.ne.s32.totalorder %s148, %s150
      %p154 = scmp.eq.s32.totalorder %s24, 0
      %p155 = por %p153, %p154
      %p156 = scmp.ne.s32.totalorder %s148, %s150
      %p157 = scmp.eq.s32.totalorder %s29, 7
      %p158 = por %p156, %p157
      %p159 = scmp.ne.s32.totalorder %s150, %s151
      %p160 = scmp.eq.s32.totalorder %s29, 0
      %p161 = por %p159, %p160
      %p162 = scmp.ne.s32.totalorder %s150, %s151
      %p163 = scmp.eq.s32.totalorder %s30, 7
      %p164 = por %p162, %p163
      %p166 = scmp.ne.s32.totalorder %s151, %s165
      %p167 = scmp.eq.s32.totalorder %s30, 0
      %p168 = por %p166, %p167
      %s170 = sadd.s32 %s169, 1
      %p173 = scmp.eq.s32.totalorder %s24, 7
      %p174 = scmp.ne.s32.totalorder %s169, %s171
      %p175 = scmp.eq.s32.totalorder %s24, 0
      %p176 = por %p174, %p175
      %p177 = scmp.ne.s32.totalorder %s169, %s171
      %p178 = scmp.eq.s32.totalorder %s29, 7
      %p179 = por %p177, %p178
      %p180 = scmp.ne.s32.totalorder %s171, %s172
      %p181 = scmp.eq.s32.totalorder %s29, 0
      %p182 = por %p180, %p181
      %p183 = scmp.ne.s32.totalorder %s171, %s172
      %p184 = scmp.eq.s32.totalorder %s30, 7
      %p185 = por %p183, %p184
      %p187 = scmp.ne.s32.totalorder %s172, %s186
      %p188 = scmp.eq.s32.totalorder %s30, 0
      %p189 = por %p187, %p188
      %s191 = sadd.s32 %s190, 1
      %p194 = scmp.eq.s32.totalorder %s24, 7
      %p195 = scmp.ne.s32.totalorder %s190, %s192
      %p196 = scmp.eq.s32.totalorder %s24, 0
      %p197 = por %p195, %p196
      %p198 = scmp.ne.s32.totalorder %s190, %s192
      %p199 = scmp.eq.s32.totalorder %s29, 7
      %p200 = por %p198, %p199
      %p201 = scmp.ne.s32.totalorder %s192, %s193
      %p202 = scmp.eq.s32.totalorder %s29, 0
      %p203 = por %p201, %p202
      %p204 = scmp.ne.s32.totalorder %s192, %s193
      %p205 = scmp.eq.s32.totalorder %s30, 7
      %p206 = por %p204, %p205
      %p208 = scmp.ne.s32.totalorder %s193, %s207
      %p209 = scmp.eq.s32.totalorder %s30, 0
      %p210 = por %p208, %p209
      %s212 = sadd.s32 %s211, 1
      %p215 = scmp.eq.s32.totalorder %s24, 7
      %p216 = scmp.ne.s32.totalorder %s211, %s213
      %p217 = scmp.eq.s32.totalorder %s24, 0
      %p218 = por %p216, %p217
      %p219 = scmp.ne.s32.totalorder %s211, %s213
      %p220 = scmp.eq.s32.totalorder %s29, 7
      %p221 = por %p219, %p220
      %p222 = scmp.ne.s32.totalorder %s213, %s214
      %p223 = scmp.eq.s32.totalorder %s29, 0
      %p224 = por %p222, %p223
      %p225 = scmp.ne.s32.totalorder %s213, %s214
      %p226 = scmp.eq.s32.totalorder %s30, 7
      %p227 = por %p225, %p226
      %p229 = scmp.ne.s32.totalorder %s214, %s228
      %p230 = scmp.eq.s32.totalorder %s30, 0
      %p231 = por %p229, %p230
      %s233 = sadd.s32 %s232, 1
      %p236 = scmp.eq.s32.totalorder %s24, 7
      %p237 = scmp.ne.s32.totalorder %s232, %s234
      %p238 = scmp.eq.s32.totalorder %s24, 0
      %p239 = por %p237, %p238
      %p240 = scmp.ne.s32.totalorder %s232, %s234
      %p241 = scmp.eq.s32.totalorder %s29, 7
      %p242 = por %p240, %p241
      %p243 = scmp.ne.s32.totalorder %s234, %s235
      %p244 = scmp.eq.s32.totalorder %s29, 0
      %p245 = por %p243, %p244
      %p246 = scmp.ne.s32.totalorder %s234, %s235
      %p247 = scmp.eq.s32.totalorder %s30, 7
      %p248 = por %p246, %p247
      %p250 = scmp.ne.s32.totalorder %s235, %s249
      %p251 = scmp.eq.s32.totalorder %s30, 0
      %p252 = por %p250, %p251
      %s254 = sadd.s32 %s253, 1
      %p257 = scmp.eq.s32.totalorder %s24, 7
      %p258 = scmp.ne.s32.totalorder %s253, %s255
      %p259 = scmp.eq.s32.totalorder %s24, 0
      %p260 = por %p258, %p259
      %p261 = scmp.ne.s32.totalorder %s253, %s255
      %p262 = scmp.eq.s32.totalorder %s29, 7
      %p263 = por %p261, %p262
      %p264 = scmp.ne.s32.totalorder %s255, %s256
      %p265 = scmp.eq.s32.totalorder %s29, 0
      %p266 = por %p264, %p265
      %p267 = scmp.ne.s32.totalorder %s255, %s256
      %p268 = scmp.eq.s32.totalorder %s30, 7
      %p269 = por %p267, %p268
      %p271 = scmp.ne.s32.totalorder %s256, %s270
      %p272 = scmp.eq.s32.totalorder %s30, 0
      %p273 = por %p271, %p272
      %s275 = sadd.s32 %s274, 1
      %p278 = scmp.eq.s32.totalorder %s24, 7
      %p279 = scmp.ne.s32.totalorder %s274, %s276
      %p280 = scmp.eq.s32.totalorder %s24, 0
      %p281 = por %p279, %p280
      %p282 = scmp.ne.s32.totalorder %s274, %s276
      %p283 = scmp.eq.s32.totalorder %s29, 7
      %p284 = por %p282, %p283
      %p285 = scmp.ne.s32.totalorder %s276, %s277
      %p286 = scmp.eq.s32.totalorder %s29, 0
      %p287 = por %p285, %p286
      %p288 = scmp.ne.s32.totalorder %s276, %s277
      %p289 = scmp.eq.s32.totalorder %s30, 7
      %p290 = por %p288, %p289
      %p292 = scmp.ne.s32.totalorder %s277, %s291
      %p293 = scmp.eq.s32.totalorder %s30, 0
      %p294 = por %p292, %p293
      %s296 = sadd.s32 %s295, 1
      %p299 = scmp.eq.s32.totalorder %s24, 7
      %p300 = scmp.ne.s32.totalorder %s295, %s297
      %p301 = scmp.eq.s32.totalorder %s24, 0
      %p302 = por %p300, %p301
      %p303 = scmp.ne.s32.totalorder %s295, %s297
      %p304 = scmp.eq.s32.totalorder %s29, 7
      %p305 = por %p303, %p304
      %p306 = scmp.ne.s32.totalorder %s297, %s298
      %p307 = scmp.eq.s32.totalorder %s29, 0
      %p308 = por %p306, %p307
      %p309 = scmp.ne.s32.totalorder %s297, %s298
      %p310 = scmp.eq.s32.totalorder %s30, 7
      %p311 = por %p309, %p310
      %p313 = scmp.ne.s32.totalorder %s298, %s312
      %p314 = scmp.eq.s32.totalorder %s30, 0
      %p315 = por %p313, %p314
      %s317 = sadd.s32 %s316, 1
      %p320 = scmp.eq.s32.totalorder %s24, 7
      %p321 = scmp.ne.s32.totalorder %s316, %s318
      %p322 = scmp.eq.s32.totalorder %s24, 0
      %p323 = por %p321, %p322
      %p324 = scmp.ne.s32.totalorder %s316, %s318
      %p325 = scmp.eq.s32.totalorder %s29, 7
      %p326 = por %p324, %p325
      %p327 = scmp.ne.s32.totalorder %s318, %s319
      %p328 = scmp.eq.s32.totalorder %s29, 0
      %p329 = por %p327, %p328
      %p330 = scmp.ne.s32.totalorder %s318, %s319
      %p331 = scmp.eq.s32.totalorder %s30, 7
      %p332 = por %p330, %p331
      %p334 = scmp.ne.s32.totalorder %s319, %s333
      %p335 = scmp.eq.s32.totalorder %s30, 0
      %p336 = por %p334, %p335
      %s338 = sadd.s32 %s337, 1
      %p341 = scmp.eq.s32.totalorder %s24, 7
      %p342 = scmp.ne.s32.totalorder %s337, %s339
      %p343 = scmp.eq.s32.totalorder %s24, 0
      %p344 = por %p342, %p343
      %p345 = scmp.ne.s32.totalorder %s337, %s339
      %p346 = scmp.eq.s32.totalorder %s29, 7
      %p347 = por %p345, %p346
      %p348 = scmp.ne.s32.totalorder %s339, %s340
      %p349 = scmp.eq.s32.totalorder %s29, 0
      %p350 = por %p348, %p349
      %p351 = scmp.ne.s32.totalorder %s339, %s340
      %p352 = scmp.eq.s32.totalorder %s30, 7
      %p353 = por %p351, %p352
      %p355 = scmp.ne.s32.totalorder %s340, %s354
      %p356 = scmp.eq.s32.totalorder %s30, 0
      %p357 = por %p355, %p356
      %s358 = ssub.s32 %s31, %s43
      %p359 = scmp.eq.s32.totalorder %s358, 0
      %s361 = sadd.s32 %s360, 1
      %s362 = scalar_select %p359, %s360, %s361
      %p365 = pneg %p359
      %p366 = scmp.eq.s32.totalorder %s24, 7
      %p367 = por %p365, %p366
      %p368 = scmp.ne.s32.totalorder %s360, %s363
      %p369 = scmp.eq.s32.totalorder %s24, 0
      %p370 = por %p368, %p369
      %p371 = scmp.ne.s32.totalorder %s360, %s363
      %p372 = scmp.eq.s32.totalorder %s29, 7
      %p373 = por %p371, %p372
      %p374 = scmp.ne.s32.totalorder %s363, %s364
      %p375 = scmp.eq.s32.totalorder %s29, 0
      %p376 = por %p374, %p375
      %p377 = scmp.ne.s32.totalorder %s363, %s364
      %p378 = scmp.eq.s32.totalorder %s30, 7
      %p379 = por %p377, %p378
      %p381 = scmp.ne.s32.totalorder %s364, %s380
      %p382 = scmp.eq.s32.totalorder %s30, 0
      %p383 = por %p381, %p382
      %s384 = ssub.s32 %s31, %s43
      %p385 = scmp.eq.s32.totalorder %s384, 0
      %s387 = sadd.s32 %s386, 1
      %s388 = scalar_select %p385, %s386, %s387
      %p391 = pneg %p385
      %p392 = scmp.eq.s32.totalorder %s24, 7
      %p393 = por %p391, %p392
      %p394 = scmp.ne.s32.totalorder %s386, %s389
      %p395 = scmp.eq.s32.totalorder %s24, 0
      %p396 = por %p394, %p395
      %p397 = scmp.ne.s32.totalorder %s386, %s389
      %p398 = scmp.eq.s32.totalorder %s29, 7
      %p399 = por %p397, %p398
      %p400 = scmp.ne.s32.totalorder %s389, %s390
      %p401 = scmp.eq.s32.totalorder %s29, 0
      %p402 = por %p400, %p401
      %p403 = scmp.ne.s32.totalorder %s389, %s390
      %p404 = scmp.eq.s32.totalorder %s30, 7
      %p405 = por %p403, %p404
      %p407 = scmp.ne.s32.totalorder %s390, %s406
      %p408 = scmp.eq.s32.totalorder %s30, 0
      %p409 = por %p407, %p408
      %p410 = scmp.le.s32.totalorder 1, %s24
      %p411 = scmp.lt.s32.totalorder %s24, 9
      %p412 = pnand %p410, %p411
      %p413 = pneg %p412
      // Predicated region
      $region9: #{tpu_custom_call.1} parent=5 // pred_check
        _
      $region10: #{tpu_custom_call.1} parent=5 // pred_check_branch
        %415 = sbr.rel (%p412) target = $region12
      $region11: #{tpu_custom_call.1} parent=5 // pred_region
        %s416 = ssub.s32 %s24, 1
        // Predicated region
        $region13: #{tpu_custom_call.1} parent=11 // pred_check
          %p417 = pneg %p161
        $region14: #{tpu_custom_call.1} parent=11 // pred_check_branch
          %419 = sbr.rel (%p417) target = $region16
        $region15: #{tpu_custom_call.1} parent=11 // pred_region
          _
        $region16: #{tpu_custom_call.1} parent=11 // pred_fallthru
          _
        // Predicated region
        $region17: #{tpu_custom_call.1} parent=11 // pred_check
          %p420 = pneg %p182
        $region18: #{tpu_custom_call.1} parent=11 // pred_check_branch
          %422 = sbr.rel (%p420) target = $region20
        $region19: #{tpu_custom_call.1} parent=11 // pred_region
          _
        $region20: #{tpu_custom_call.1} parent=11 // pred_fallthru
          _
        // Predicated region
        $region21: #{tpu_custom_call.1} parent=11 // pred_check
          %p423 = pneg %p203
        $region22: #{tpu_custom_call.1} parent=11 // pred_check_branch
          %425 = sbr.rel (%p423) target = $region24
        $region23: #{tpu_custom_call.1} parent=11 // pred_region
          _
        $region24: #{tpu_custom_call.1} parent=11 // pred_fallthru
          _
        // Predicated region
        $region25: #{tpu_custom_call.1} parent=11 // pred_check
          %p426 = pneg %p224
        $region26: #{tpu_custom_call.1} parent=11 // pred_check_branch
          %428 = sbr.rel (%p426) target = $region28
        $region27: #{tpu_custom_call.1} parent=11 // pred_region
          _
        $region28: #{tpu_custom_call.1} parent=11 // pred_fallthru
          _
        // Predicated region
        $region29: #{tpu_custom_call.1} parent=11 // pred_check
          %p429 = pneg %p245
        $region30: #{tpu_custom_call.1} parent=11 // pred_check_branch
          %431 = sbr.rel (%p429) target = $region32
        $region31: #{tpu_custom_call.1} parent=11 // pred_region
          _
        $region32: #{tpu_custom_call.1} parent=11 // pred_fallthru
          _
        // Predicated region
        $region33: #{tpu_custom_call.1} parent=11 // pred_check
          %p432 = pneg %p266
        $region34: #{tpu_custom_call.1} parent=11 // pred_check_branch
          %434 = sbr.rel (%p432) target = $region36
        $region35: #{tpu_custom_call.1} parent=11 // pred_region
          _
        $region36: #{tpu_custom_call.1} parent=11 // pred_fallthru
          _
        // Predicated region
        $region37: #{tpu_custom_call.1} parent=11 // pred_check
          %p435 = pneg %p287
        $region38: #{tpu_custom_call.1} parent=11 // pred_check_branch
          %437 = sbr.rel (%p435) target = $region40
        $region39: #{tpu_custom_call.1} parent=11 // pred_region
          _
        $region40: #{tpu_custom_call.1} parent=11 // pred_fallthru
          _
        // Predicated region
        $region41: #{tpu_custom_call.1} parent=11 // pred_check
          %p438 = pneg %p308
        $region42: #{tpu_custom_call.1} parent=11 // pred_check_branch
          %440 = sbr.rel (%p438) target = $region44
        $region43: #{tpu_custom_call.1} parent=11 // pred_region
          _
        $region44: #{tpu_custom_call.1} parent=11 // pred_fallthru
          _
        // Predicated region
        $region45: #{tpu_custom_call.1} parent=11 // pred_check
          %p441 = pneg %p329
        $region46: #{tpu_custom_call.1} parent=11 // pred_check_branch
          %443 = sbr.rel (%p441) target = $region48
        $region47: #{tpu_custom_call.1} parent=11 // pred_region
          _
        $region48: #{tpu_custom_call.1} parent=11 // pred_fallthru
          _
        // Predicated region
        $region49: #{tpu_custom_call.1} parent=11 // pred_check
          %p444 = pneg %p350
        $region50: #{tpu_custom_call.1} parent=11 // pred_check_branch
          %446 = sbr.rel (%p444) target = $region52
        $region51: #{tpu_custom_call.1} parent=11 // pred_region
          _
        $region52: #{tpu_custom_call.1} parent=11 // pred_fallthru
          _
      $region12: #{tpu_custom_call.1} parent=5 // pred_fallthru
        _
      %p447 = scmp.lt.s32.totalorder %s24, 8
      // Predicated region
      $region53: #{tpu_custom_call.1} parent=5 // pred_check
        %p448 = pneg %p447
      $region54: #{tpu_custom_call.1} parent=5 // pred_check_branch
        %450 = sbr.rel (%p448) target = $region56
      $region55: #{tpu_custom_call.1} parent=5 // pred_region
        // Predicated region
        $region57: #{tpu_custom_call.1} parent=55 // pred_check
          %p451 = pneg %p56
        $region58: #{tpu_custom_call.1} parent=55 // pred_check_branch
          %453 = sbr.rel (%p451) target = $region60
        $region59: #{tpu_custom_call.1} parent=55 // pred_region
          %p454 = scmp.lt.s32.totalorder %s31, 1
          %s455 = scalar_select %p454, %s31, 1
          %s456 = smul.addr %s455, 2
          %s457 = smul.addr %s456, 8
          %s458 = scalar_lea.vmem %s0, %s457
        $region60: #{tpu_custom_call.1} parent=55 // pred_fallthru
          _
        // Predicated region
        $region61: #{tpu_custom_call.1} parent=55 // pred_check
          %p459 = pneg %p82
        $region62: #{tpu_custom_call.1} parent=55 // pred_check_branch
          %461 = sbr.rel (%p459) target = $region64
        $region63: #{tpu_custom_call.1} parent=55 // pred_region
          %p462 = scmp.lt.s32.totalorder %s31, 1
          %s463 = scalar_select %p462, %s31, 1
          %s464 = smul.addr %s463, 2
          %s465 = smul.addr %s464, 8
          %s466 = scalar_lea.vmem %s1, %s465
        $region64: #{tpu_custom_call.1} parent=55 // pred_fallthru
          _
        // Predicated region
        $region65: #{tpu_custom_call.1} parent=55 // pred_check
          %p467 = pneg %p108
        $region66: #{tpu_custom_call.1} parent=55 // pred_check_branch
          %469 = sbr.rel (%p467) target = $region68
        $region67: #{tpu_custom_call.1} parent=55 // pred_region
          %p470 = scmp.lt.s32.totalorder %s31, 1
          %s471 = scalar_select %p470, %s31, 1
          %s472 = scalar_lea.vmem %s2, %s471
        $region68: #{tpu_custom_call.1} parent=55 // pred_fallthru
          _
        // Predicated region
        $region69: #{tpu_custom_call.1} parent=55 // pred_check
          %p473 = pneg %p134
        $region70: #{tpu_custom_call.1} parent=55 // pred_check_branch
          %475 = sbr.rel (%p473) target = $region72
        $region71: #{tpu_custom_call.1} parent=55 // pred_region
          %p476 = scmp.lt.s32.totalorder %s31, 1
          %s477 = scalar_select %p476, %s31, 1
          %s478 = smul.addr %s477, 2
          %s479 = smul.addr %s478, 8
          %s480 = scalar_lea.vmem %s3, %s479
        $region72: #{tpu_custom_call.1} parent=55 // pred_fallthru
          _
        // Predicated region
        $region73: #{tpu_custom_call.1} parent=55 // pred_check
          %p481 = pneg %p370
        $region74: #{tpu_custom_call.1} parent=55 // pred_check_branch
          %483 = sbr.rel (%p481) target = $region76
        $region75: #{tpu_custom_call.1} parent=55 // pred_region
          %p484 = scmp.lt.s32.totalorder %s31, 1
          %s485 = scalar_select %p484, %s31, 1
          %s486 = smul.addr %s485, 2
          %s487 = smul.addr %s486, 8
          %s488 = scalar_lea.vmem %s14, %s487
        $region76: #{tpu_custom_call.1} parent=55 // pred_fallthru
          _
      $region56: #{tpu_custom_call.1} parent=5 // pred_fallthru
        _
      %p489 = scmp.le.s32.totalorder 1, %s24
      %p490 = scmp.lt.s32.totalorder %s24, 9
      %p491 = pnand %p489, %p490
      %p492 = pneg %p491
      // Predicated region
      $region77: #{tpu_custom_call.1} parent=5 // pred_check
        _
      $region78: #{tpu_custom_call.1} parent=5 // pred_check_branch
        %494 = sbr.rel (%p491) target = $region80
      $region79: #{tpu_custom_call.1} parent=5 // pred_region
        %s495 = ssub.s32 %s24, 1
        %p496 = scmp.lt.s32.totalorder %s33, 1
        %s497 = scalar_select %p496, %s33, 1
        %s498 = smul.addr %s497, 2
        %s499 = smul.addr %s498, 8
        %s500 = scalar_lea.vmem %s0, %s499
        %p501 = pneg %p62
        %p502 = pneg %p59
        %p503 = scmp.lt.s32.totalorder %s33, 1
        %s504 = scalar_select %p503, %s33, 1
        %s505 = smul.addr %s504, 2
        %s506 = smul.addr %s505, 8
        %s507 = scalar_lea.vmem %s1, %s506
        %p508 = pneg %p88
        %p509 = pneg %p85
        %p510 = scmp.lt.s32.totalorder %s33, 1
        %s511 = scalar_select %p510, %s33, 1
        %s512 = scalar_lea.vmem %s2, %s511
        %p513 = pneg %p114
        %p514 = pneg %p111
        %p515 = scmp.lt.s32.totalorder %s33, 1
        %s516 = scalar_select %p515, %s33, 1
        %s517 = smul.addr %s516, 2
        %s518 = smul.addr %s517, 8
        %s519 = scalar_lea.vmem %s3, %s518
        %p520 = pneg %p140
        %p521 = pneg %p137
        %p522 = pneg %p161
        %p523 = pneg %p158
        %p524 = pneg %p182
        %p525 = pneg %p179
        %p526 = pneg %p203
        %p527 = pneg %p200
        %p528 = pneg %p224
        %p529 = pneg %p221
        %p530 = pneg %p245
        %p531 = pneg %p242
        %p532 = pneg %p266
        %p533 = pneg %p263
        %p534 = pneg %p287
        %p535 = pneg %p284
        %p536 = pneg %p308
        %p537 = pneg %p305
        %p538 = pneg %p329
        %p539 = pneg %p326
        %p540 = pneg %p350
        %p541 = pneg %p347
        %p542 = scmp.lt.s32.totalorder %s33, 1
        %s543 = scalar_select %p542, %s33, 1
        %s544 = smul.addr %s543, 2
        %s545 = smul.addr %s544, 8
        %s546 = scalar_lea.vmem %s14, %s545
        %p547 = pneg %p376
        %p548 = pneg %p373
        %p549 = pneg %p402
        %p550 = pneg %p399
        %s551 = sand.u32 %s389, 1
        %s552 = scalar_lea.sflag [#allocation8], %s551
        %s553 = sand.u32 %s389, 1
        %s554 = smul.addr %s553, 16
        %s555 = scalar_lea.vmem [#allocation7], %s554
        %p556 = scmp.lt.s32.totalorder %s33, 1
        %s557 = scalar_select %p556, %s33, 1
        %s558 = smul.addr %s557, 2
        %s559 = smul.addr %s558, 8
        %s560 = scalar_lea.vmem %s0, %s559
        %p561 = scmp.lt.s32.totalorder %s33, 1
        %s562 = scalar_select %p561, %s33, 1
        %s563 = smul.addr %s562, 2
        %s564 = smul.addr %s563, 8
        %s565 = scalar_lea.vmem %s1, %s564
        %p566 = scmp.lt.s32.totalorder %s33, 1
        %s567 = scalar_select %p566, %s33, 1
        %s568 = scalar_lea.vmem %s2, %s567
        %p569 = scmp.lt.s32.totalorder %s33, 1
        %s570 = scalar_select %p569, %s33, 1
        %s571 = smul.addr %s570, 2
        %s572 = smul.addr %s571, 8
        %s573 = scalar_lea.vmem %s3, %s572
        %p574 = scmp.lt.s32.totalorder %s33, 1
        %s575 = scalar_select %p574, %s33, 1
        %s576 = smul.addr %s575, 2
        %s577 = smul.addr %s576, 8
        %s578 = scalar_lea.vmem %s14, %s577
        %p579 = scmp.eq.s32.totalorder %s34, 0
        // Predicated region
        $region81: #{tpu_custom_call.1} parent=79 // pred_check
          %p580 = pneg %p579
        $region82: #{tpu_custom_call.1} parent=79 // pred_check_branch
          %582 = sbr.rel (%p580) target = $region84
        $region83: #{tpu_custom_call.1} parent=79 // pred_region
          %v583 = vld [vmem:[%s568] sm:$0x1]
          %vm584 = vcmp.eq.f32.partialorder %v583, 0.0
          %v585 = vld [vmem:[%s573] sm:$0xff]
          %v586 = vld [vmem:[%s573 + $0x8] sm:$0xff]
          %vm587 = vcmp.eq.f32.partialorder %v585, 0.0
          %vm588 = vcmp.eq.f32.partialorder %v586, 0.0
          %v589 = vsel %vm584, 1, 0
          %v590 = vperm.slane %v589, 0
          %vm591 = vcmp.eq.s32.totalorder %v590, 1
          %v592 = vsel %vm587, 1, 0
          %v593 = vsel %vm588, 1, 0
          %594 = vset.pattern.permute.xlu0 0
          %595 = vperm.xlu0 %594, %v592
          %v596 = vpop.permute.xlu0 %595
          %597 = vset.pattern.permute.xlu0 0
          %598 = vperm.xlu0 %597, %v593
          %v599 = vpop.permute.xlu0 %598
          %vm600 = vcmp.eq.s32.totalorder %v596, 1
          %vm601 = vcmp.eq.s32.totalorder %v599, 1
          %vm602 = vmor %vm591, %vm600
          %vm603 = vmor %vm591, %vm601
          %v604 = vsel %vm602, -10000.0, 0.0
          %v605 = vsel %vm603, -10000.0, 0.0
          %vm606 = vcmask 130048
          %607 = vst.msk [vmem:[#allocation2] sm:$0xff] %vm606, %v604
          %608 = vst.msk [vmem:[#allocation2 + $0x8] sm:$0xff] %vm606, %v605
          %v609 = vld [vmem:[%s560] sm:$0xff]
          %v610 = vld [vmem:[%s560 + $0x8] sm:$0xff]
          %v611 = vld [vmem:[%s565] sm:$0xff]
          %v612 = vld [vmem:[%s565 + $0x8] sm:$0xff]
          %v613 = vld [vmem:[%s4] sm:$0xff]
          %v614 = vld [vmem:[%s4 + $0x8] sm:$0xff]
          %v615 = vld [vmem:[%s4 + $0x10] sm:$0xff]
          %v616 = vld [vmem:[%s4 + $0x18] sm:$0xff]
          %v617 = vld [vmem:[%s5] sm:$0x1]
          %v619 = vperm.slane %v617, 0
          %vm621 = vcmask 261120
          %v623 = vsel %vm621, %v609, 0
          %v626 = vsel %vm621, %v610, 0
          %628 = vmatpush.msra.mxu0 0.0
          %629 = vmatpush.msra.mxu0 0.0
          %630 = vmatpush.msra.mxu0 0.0
          %631 = vmatpush.msra.mxu0 0.0
          %632 = vmatpush.msra.mxu0 0.0
          %633 = vmatpush.msra.mxu0 0.0
          %634 = vmatpush.msra.mxu0 0.0
          %635 = vmatpush.msra.mxu0 0.0
          %636 = vmatpush.msra.mxu0 0.0
          %637 = vmatpush.msra.mxu0 0.0
          %638 = vmatpush.msra.mxu0 0.0
          %639 = vmatpush.msra.mxu0 0.0
          %v640 = vand.u32 %v616, 4294901760
          %641 = vmatpush.msra.mxu0 %v640
          %v642 = vand.u32 %v615, 4294901760
          %643 = vmatpush.msra.mxu0 %v642
          %v644 = vand.u32 %v614, 4294901760
          %645 = vmatpush.msra.mxu0 %v644
          %v646 = vand.u32 %v613, 4294901760
          %647 = vmatpush.msra.mxu0 %v646
          %v648 = vand.u32 %v623, 4294901760
          %v649 = vsub.f32 %v623, %v648
          %v650 = vand.u32 %v649, 4294901760
          %v651 = vsub.f32 %v649, %v650
          %v652 = vand.u32 %v651, 4294901760
          %653 = vmatmul.f32.gmra.mxu0 %v652
          %v654 = vpop.f32.mrf.mxu0
          %v655 = vadd.f32 %v619, %v654
          %v656 = vand.u32 %v626, 4294901760
          %v657 = vsub.f32 %v626, %v656
          %v658 = vand.u32 %v657, 4294901760
          %v659 = vsub.f32 %v657, %v658
          %v660 = vand.u32 %v659, 4294901760
          %661 = vmatmul.f32.gmra.mxu0 %v660
          %v662 = vpop.f32.mrf.mxu0
          %v663 = vadd.f32 %v619, %v662
          %664 = vdwg.mxu0
          %665 = vmatpush.msra.mxu0 0.0
          %666 = vmatpush.msra.mxu0 0.0
          %667 = vmatpush.msra.mxu0 0.0
          %668 = vmatpush.msra.mxu0 0.0
          %669 = vmatpush.msra.mxu0 0.0
          %670 = vmatpush.msra.mxu0 0.0
          %671 = vmatpush.msra.mxu0 0.0
          %672 = vmatpush.msra.mxu0 0.0
          %673 = vmatpush.msra.mxu0 0.0
          %674 = vmatpush.msra.mxu0 0.0
          %675 = vmatpush.msra.mxu0 0.0
          %676 = vmatpush.msra.mxu0 0.0
          %v677 = vand.u32 %v616, 4294901760
          %v678 = vsub.f32 %v616, %v677
          %v679 = vand.u32 %v678, 4294901760
          %v680 = vsub.f32 %v678, %v679
          %v681 = vand.u32 %v680, 4294901760
          %682 = vmatpush.msra.mxu0 %v681
          %v683 = vand.u32 %v615, 4294901760
          %v684 = vsub.f32 %v615, %v683
          %v685 = vand.u32 %v684, 4294901760
          %v686 = vsub.f32 %v684, %v685
          %v687 = vand.u32 %v686, 4294901760
          %688 = vmatpush.msra.mxu0 %v687
          %v689 = vand.u32 %v614, 4294901760
          %v690 = vsub.f32 %v614, %v689
          %v691 = vand.u32 %v690, 4294901760
          %v692 = vsub.f32 %v690, %v691
          %v693 = vand.u32 %v692, 4294901760
          %694 = vmatpush.msra.mxu0 %v693
          %v695 = vand.u32 %v613, 4294901760
          %v696 = vsub.f32 %v613, %v695
          %v697 = vand.u32 %v696, 4294901760
          %v698 = vsub.f32 %v696, %v697
          %v699 = vand.u32 %v698, 4294901760
          %700 = vmatpush.msra.mxu0 %v699
          %v701 = vand.u32 %v623, 4294901760
          %702 = vmatmul.f32.gmra.mxu0 %v701
          %v703 = vpop.f32.mrf.mxu0
          %v704 = vadd.f32 %v655, %v703
          %v705 = vand.u32 %v626, 4294901760
          %706 = vmatmul.f32.gmra.mxu0 %v705
          %v707 = vpop.f32.mrf.mxu0
          %v708 = vadd.f32 %v663, %v707
          %709 = vdwg.mxu0
          %710 = vmatpush.msra.mxu0 0.0
          %711 = vmatpush.msra.mxu0 0.0
          %712 = vmatpush.msra.mxu0 0.0
          %713 = vmatpush.msra.mxu0 0.0
          %714 = vmatpush.msra.mxu0 0.0
          %715 = vmatpush.msra.mxu0 0.0
          %716 = vmatpush.msra.mxu0 0.0
          %717 = vmatpush.msra.mxu0 0.0
          %718 = vmatpush.msra.mxu0 0.0
          %719 = vmatpush.msra.mxu0 0.0
          %720 = vmatpush.msra.mxu0 0.0
          %721 = vmatpush.msra.mxu0 0.0
          %v722 = vand.u32 %v616, 4294901760
          %v723 = vsub.f32 %v616, %v722
          %724 = vmatpush.msra.mxu0 %v723
          %v725 = vand.u32 %v615, 4294901760
          %v726 = vsub.f32 %v615, %v725
          %727 = vmatpush.msra.mxu0 %v726
          %v728 = vand.u32 %v614, 4294901760
          %v729 = vsub.f32 %v614, %v728
          %730 = vmatpush.msra.mxu0 %v729
          %v731 = vand.u32 %v613, 4294901760
          %v732 = vsub.f32 %v613, %v731
          %733 = vmatpush.msra.mxu0 %v732
          %v734 = vand.u32 %v623, 4294901760
          %v735 = vsub.f32 %v623, %v734
          %736 = vmatmul.f32.gmra.mxu0 %v735
          %v737 = vpop.f32.mrf.mxu0
          %v738 = vadd.f32 %v704, %v737
          %v739 = vand.u32 %v626, 4294901760
          %v740 = vsub.f32 %v626, %v739
          %741 = vmatmul.f32.gmra.mxu0 %v740
          %v742 = vpop.f32.mrf.mxu0
          %v743 = vadd.f32 %v708, %v742
          %744 = vdwg.mxu0
          %745 = vmatpush.msra.mxu0 0.0
          %746 = vmatpush.msra.mxu0 0.0
          %747 = vmatpush.msra.mxu0 0.0
          %748 = vmatpush.msra.mxu0 0.0
          %749 = vmatpush.msra.mxu0 0.0
          %750 = vmatpush.msra.mxu0 0.0
          %751 = vmatpush.msra.mxu0 0.0
          %752 = vmatpush.msra.mxu0 0.0
          %753 = vmatpush.msra.mxu0 0.0
          %754 = vmatpush.msra.mxu0 0.0
          %755 = vmatpush.msra.mxu0 0.0
          %756 = vmatpush.msra.mxu0 0.0
          %v757 = vand.u32 %v616, 4294901760
          %758 = vmatpush.msra.mxu0 %v757
          %v759 = vand.u32 %v615, 4294901760
          %760 = vmatpush.msra.mxu0 %v759
          %v761 = vand.u32 %v614, 4294901760
          %762 = vmatpush.msra.mxu0 %v761
          %v763 = vand.u32 %v613, 4294901760
          %764 = vmatpush.msra.mxu0 %v763
          %v765 = vand.u32 %v623, 4294901760
          %v766 = vsub.f32 %v623, %v765
          %v767 = vand.u32 %v766, 4294901760
          %768 = vmatmul.f32.gmra.mxu0 %v767
          %v769 = vpop.f32.mrf.mxu0
          %v770 = vadd.f32 %v738, %v769
          %v771 = vand.u32 %v626, 4294901760
          %v772 = vsub.f32 %v626, %v771
          %v773 = vand.u32 %v772, 4294901760
          %774 = vmatmul.f32.gmra.mxu0 %v773
          %v775 = vpop.f32.mrf.mxu0
          %v776 = vadd.f32 %v743, %v775
          %777 = vdwg.mxu0
          %778 = vmatpush.msra.mxu0 0.0
          %779 = vmatpush.msra.mxu0 0.0
          %780 = vmatpush.msra.mxu0 0.0
          %781 = vmatpush.msra.mxu0 0.0
          %782 = vmatpush.msra.mxu0 0.0
          %783 = vmatpush.msra.mxu0 0.0
          %784 = vmatpush.msra.mxu0 0.0
          %785 = vmatpush.msra.mxu0 0.0
          %786 = vmatpush.msra.mxu0 0.0
          %787 = vmatpush.msra.mxu0 0.0
          %788 = vmatpush.msra.mxu0 0.0
          %789 = vmatpush.msra.mxu0 0.0
          %v790 = vand.u32 %v616, 4294901760
          %v791 = vsub.f32 %v616, %v790
          %v792 = vand.u32 %v791, 4294901760
          %793 = vmatpush.msra.mxu0 %v792
          %v794 = vand.u32 %v615, 4294901760
          %v795 = vsub.f32 %v615, %v794
          %v796 = vand.u32 %v795, 4294901760
          %797 = vmatpush.msra.mxu0 %v796
          %v798 = vand.u32 %v614, 4294901760
          %v799 = vsub.f32 %v614, %v798
          %v800 = vand.u32 %v799, 4294901760
          %801 = vmatpush.msra.mxu0 %v800
          %v802 = vand.u32 %v613, 4294901760
          %v803 = vsub.f32 %v613, %v802
          %v804 = vand.u32 %v803, 4294901760
          %805 = vmatpush.msra.mxu0 %v804
          %v806 = vand.u32 %v623, 4294901760
          %807 = vmatmul.f32.gmra.mxu0 %v806
          %v808 = vpop.f32.mrf.mxu0
          %v809 = vadd.f32 %v770, %v808
          %v810 = vand.u32 %v626, 4294901760
          %811 = vmatmul.f32.gmra.mxu0 %v810
          %v812 = vpop.f32.mrf.mxu0
          %v813 = vadd.f32 %v776, %v812
          %814 = vdwg.mxu0
          %815 = vmatpush.msra.mxu0 0.0
          %816 = vmatpush.msra.mxu0 0.0
          %817 = vmatpush.msra.mxu0 0.0
          %818 = vmatpush.msra.mxu0 0.0
          %819 = vmatpush.msra.mxu0 0.0
          %820 = vmatpush.msra.mxu0 0.0
          %821 = vmatpush.msra.mxu0 0.0
          %822 = vmatpush.msra.mxu0 0.0
          %823 = vmatpush.msra.mxu0 0.0
          %824 = vmatpush.msra.mxu0 0.0
          %825 = vmatpush.msra.mxu0 0.0
          %826 = vmatpush.msra.mxu0 0.0
          %v827 = vand.u32 %v616, 4294901760
          %828 = vmatpush.msra.mxu0 %v827
          %v829 = vand.u32 %v615, 4294901760
          %830 = vmatpush.msra.mxu0 %v829
          %v831 = vand.u32 %v614, 4294901760
          %832 = vmatpush.msra.mxu0 %v831
          %v833 = vand.u32 %v613, 4294901760
          %834 = vmatpush.msra.mxu0 %v833
          %v835 = vand.u32 %v623, 4294901760
          %836 = vmatmul.f32.gmra.mxu0 %v835
          %v837 = vpop.f32.mrf.mxu0
          %v838 = vadd.f32 %v809, %v837
          %v839 = vand.u32 %v626, 4294901760
          %840 = vmatmul.f32.gmra.mxu0 %v839
          %v841 = vpop.f32.mrf.mxu0
          %v842 = vadd.f32 %v813, %v841
          %843 = vdwg.mxu0
          %v844 = vld [vmem:[%s6] sm:$0xff]
          %v845 = vld [vmem:[%s6 + $0x8] sm:$0xff]
          %v846 = vld [vmem:[%s6 + $0x10] sm:$0xff]
          %v847 = vld [vmem:[%s6 + $0x18] sm:$0xff]
          %v848 = vld [vmem:[%s7] sm:$0x1]
          %v850 = vperm.slane %v848, 0
          %v853 = vsel %vm621, %v611, 0
          %v856 = vsel %vm621, %v612, 0
          %858 = vmatpush.msra.mxu0 0.0
          %859 = vmatpush.msra.mxu0 0.0
          %860 = vmatpush.msra.mxu0 0.0
          %861 = vmatpush.msra.mxu0 0.0
          %862 = vmatpush.msra.mxu0 0.0
          %863 = vmatpush.msra.mxu0 0.0
          %864 = vmatpush.msra.mxu0 0.0
          %865 = vmatpush.msra.mxu0 0.0
          %866 = vmatpush.msra.mxu0 0.0
          %867 = vmatpush.msra.mxu0 0.0
          %868 = vmatpush.msra.mxu0 0.0
          %869 = vmatpush.msra.mxu0 0.0
          %v870 = vand.u32 %v847, 4294901760
          %871 = vmatpush.msra.mxu0 %v870
          %v872 = vand.u32 %v846, 4294901760
          %873 = vmatpush.msra.mxu0 %v872
          %v874 = vand.u32 %v845, 4294901760
          %875 = vmatpush.msra.mxu0 %v874
          %v876 = vand.u32 %v844, 4294901760
          %877 = vmatpush.msra.mxu0 %v876
          %v878 = vand.u32 %v853, 4294901760
          %v879 = vsub.f32 %v853, %v878
          %v880 = vand.u32 %v879, 4294901760
          %v881 = vsub.f32 %v879, %v880
          %v882 = vand.u32 %v881, 4294901760
          %883 = vmatmul.f32.gmra.mxu0 %v882
          %v884 = vpop.f32.mrf.mxu0
          %v885 = vadd.f32 %v850, %v884
          %v886 = vand.u32 %v856, 4294901760
          %v887 = vsub.f32 %v856, %v886
          %v888 = vand.u32 %v887, 4294901760
          %v889 = vsub.f32 %v887, %v888
          %v890 = vand.u32 %v889, 4294901760
          %891 = vmatmul.f32.gmra.mxu0 %v890
          %v892 = vpop.f32.mrf.mxu0
          %v893 = vadd.f32 %v850, %v892
          %894 = vdwg.mxu0
          %895 = vmatpush.msra.mxu0 0.0
          %896 = vmatpush.msra.mxu0 0.0
          %897 = vmatpush.msra.mxu0 0.0
          %898 = vmatpush.msra.mxu0 0.0
          %899 = vmatpush.msra.mxu0 0.0
          %900 = vmatpush.msra.mxu0 0.0
          %901 = vmatpush.msra.mxu0 0.0
          %902 = vmatpush.msra.mxu0 0.0
          %903 = vmatpush.msra.mxu0 0.0
          %904 = vmatpush.msra.mxu0 0.0
          %905 = vmatpush.msra.mxu0 0.0
          %906 = vmatpush.msra.mxu0 0.0
          %v907 = vand.u32 %v847, 4294901760
          %v908 = vsub.f32 %v847, %v907
          %v909 = vand.u32 %v908, 4294901760
          %v910 = vsub.f32 %v908, %v909
          %v911 = vand.u32 %v910, 4294901760
          %912 = vmatpush.msra.mxu0 %v911
          %v913 = vand.u32 %v846, 4294901760
          %v914 = vsub.f32 %v846, %v913
          %v915 = vand.u32 %v914, 4294901760
          %v916 = vsub.f32 %v914, %v915
          %v917 = vand.u32 %v916, 4294901760
          %918 = vmatpush.msra.mxu0 %v917
          %v919 = vand.u32 %v845, 4294901760
          %v920 = vsub.f32 %v845, %v919
          %v921 = vand.u32 %v920, 4294901760
          %v922 = vsub.f32 %v920, %v921
          %v923 = vand.u32 %v922, 4294901760
          %924 = vmatpush.msra.mxu0 %v923
          %v925 = vand.u32 %v844, 4294901760
          %v926 = vsub.f32 %v844, %v925
          %v927 = vand.u32 %v926, 4294901760
          %v928 = vsub.f32 %v926, %v927
          %v929 = vand.u32 %v928, 4294901760
          %930 = vmatpush.msra.mxu0 %v929
          %v931 = vand.u32 %v853, 4294901760
          %932 = vmatmul.f32.gmra.mxu0 %v931
          %v933 = vpop.f32.mrf.mxu0
          %v934 = vadd.f32 %v885, %v933
          %v935 = vand.u32 %v856, 4294901760
          %936 = vmatmul.f32.gmra.mxu0 %v935
          %v937 = vpop.f32.mrf.mxu0
          %v938 = vadd.f32 %v893, %v937
          %939 = vdwg.mxu0
          %940 = vmatpush.msra.mxu0 0.0
          %941 = vmatpush.msra.mxu0 0.0
          %942 = vmatpush.msra.mxu0 0.0
          %943 = vmatpush.msra.mxu0 0.0
          %944 = vmatpush.msra.mxu0 0.0
          %945 = vmatpush.msra.mxu0 0.0
          %946 = vmatpush.msra.mxu0 0.0
          %947 = vmatpush.msra.mxu0 0.0
          %948 = vmatpush.msra.mxu0 0.0
          %949 = vmatpush.msra.mxu0 0.0
          %950 = vmatpush.msra.mxu0 0.0
          %951 = vmatpush.msra.mxu0 0.0
          %v952 = vand.u32 %v847, 4294901760
          %v953 = vsub.f32 %v847, %v952
          %954 = vmatpush.msra.mxu0 %v953
          %v955 = vand.u32 %v846, 4294901760
          %v956 = vsub.f32 %v846, %v955
          %957 = vmatpush.msra.mxu0 %v956
          %v958 = vand.u32 %v845, 4294901760
          %v959 = vsub.f32 %v845, %v958
          %960 = vmatpush.msra.mxu0 %v959
          %v961 = vand.u32 %v844, 4294901760
          %v962 = vsub.f32 %v844, %v961
          %963 = vmatpush.msra.mxu0 %v962
          %v964 = vand.u32 %v853, 4294901760
          %v965 = vsub.f32 %v853, %v964
          %966 = vmatmul.f32.gmra.mxu0 %v965
          %v967 = vpop.f32.mrf.mxu0
          %v968 = vadd.f32 %v934, %v967
          %v969 = vand.u32 %v856, 4294901760
          %v970 = vsub.f32 %v856, %v969
          %971 = vmatmul.f32.gmra.mxu0 %v970
          %v972 = vpop.f32.mrf.mxu0
          %v973 = vadd.f32 %v938, %v972
          %974 = vdwg.mxu0
          %975 = vmatpush.msra.mxu0 0.0
          %976 = vmatpush.msra.mxu0 0.0
          %977 = vmatpush.msra.mxu0 0.0
          %978 = vmatpush.msra.mxu0 0.0
          %979 = vmatpush.msra.mxu0 0.0
          %980 = vmatpush.msra.mxu0 0.0
          %981 = vmatpush.msra.mxu0 0.0
          %982 = vmatpush.msra.mxu0 0.0
          %983 = vmatpush.msra.mxu0 0.0
          %984 = vmatpush.msra.mxu0 0.0
          %985 = vmatpush.msra.mxu0 0.0
          %986 = vmatpush.msra.mxu0 0.0
          %v987 = vand.u32 %v847, 4294901760
          %988 = vmatpush.msra.mxu0 %v987
          %v989 = vand.u32 %v846, 4294901760
          %990 = vmatpush.msra.mxu0 %v989
          %v991 = vand.u32 %v845, 4294901760
          %992 = vmatpush.msra.mxu0 %v991
          %v993 = vand.u32 %v844, 4294901760
          %994 = vmatpush.msra.mxu0 %v993
          %v995 = vand.u32 %v853, 4294901760
          %v996 = vsub.f32 %v853, %v995
          %v997 = vand.u32 %v996, 4294901760
          %998 = vmatmul.f32.gmra.mxu0 %v997
          %v999 = vpop.f32.mrf.mxu0
          %v1000 = vadd.f32 %v968, %v999
          %v1001 = vand.u32 %v856, 4294901760
          %v1002 = vsub.f32 %v856, %v1001
          %v1003 = vand.u32 %v1002, 4294901760
          %1004 = vmatmul.f32.gmra.mxu0 %v1003
          %v1005 = vpop.f32.mrf.mxu0
          %v1006 = vadd.f32 %v973, %v1005
          %1007 = vdwg.mxu0
          %1008 = vmatpush.msra.mxu0 0.0
          %1009 = vmatpush.msra.mxu0 0.0
          %1010 = vmatpush.msra.mxu0 0.0
          %1011 = vmatpush.msra.mxu0 0.0
          %1012 = vmatpush.msra.mxu0 0.0
          %1013 = vmatpush.msra.mxu0 0.0
          %1014 = vmatpush.msra.mxu0 0.0
          %1015 = vmatpush.msra.mxu0 0.0
          %1016 = vmatpush.msra.mxu0 0.0
          %1017 = vmatpush.msra.mxu0 0.0
          %1018 = vmatpush.msra.mxu0 0.0
          %1019 = vmatpush.msra.mxu0 0.0
          %v1020 = vand.u32 %v847, 4294901760
          %v1021 = vsub.f32 %v847, %v1020
          %v1022 = vand.u32 %v1021, 4294901760
          %1023 = vmatpush.msra.mxu0 %v1022
          %v1024 = vand.u32 %v846, 4294901760
          %v1025 = vsub.f32 %v846, %v1024
          %v1026 = vand.u32 %v1025, 4294901760
          %1027 = vmatpush.msra.mxu0 %v1026
          %v1028 = vand.u32 %v845, 4294901760
          %v1029 = vsub.f32 %v845, %v1028
          %v1030 = vand.u32 %v1029, 4294901760
          %1031 = vmatpush.msra.mxu0 %v1030
          %v1032 = vand.u32 %v844, 4294901760
          %v1033 = vsub.f32 %v844, %v1032
          %v1034 = vand.u32 %v1033, 4294901760
          %1035 = vmatpush.msra.mxu0 %v1034
          %v1036 = vand.u32 %v853, 4294901760
          %1037 = vmatmul.f32.gmra.mxu0 %v1036
          %v1038 = vpop.f32.mrf.mxu0
          %v1039 = vadd.f32 %v1000, %v1038
          %v1040 = vand.u32 %v856, 4294901760
          %1041 = vmatmul.f32.gmra.mxu0 %v1040
          %v1042 = vpop.f32.mrf.mxu0
          %v1043 = vadd.f32 %v1006, %v1042
          %1044 = vdwg.mxu0
          %1045 = vmatpush.msra.mxu0 0.0
          %1046 = vmatpush.msra.mxu0 0.0
          %1047 = vmatpush.msra.mxu0 0.0
          %1048 = vmatpush.msra.mxu0 0.0
          %1049 = vmatpush.msra.mxu0 0.0
          %1050 = vmatpush.msra.mxu0 0.0
          %1051 = vmatpush.msra.mxu0 0.0
          %1052 = vmatpush.msra.mxu0 0.0
          %1053 = vmatpush.msra.mxu0 0.0
          %1054 = vmatpush.msra.mxu0 0.0
          %1055 = vmatpush.msra.mxu0 0.0
          %1056 = vmatpush.msra.mxu0 0.0
          %v1057 = vand.u32 %v847, 4294901760
          %1058 = vmatpush.msra.mxu0 %v1057
          %v1059 = vand.u32 %v846, 4294901760
          %1060 = vmatpush.msra.mxu0 %v1059
          %v1061 = vand.u32 %v845, 4294901760
          %1062 = vmatpush.msra.mxu0 %v1061
          %v1063 = vand.u32 %v844, 4294901760
          %1064 = vmatpush.msra.mxu0 %v1063
          %v1065 = vand.u32 %v853, 4294901760
          %1066 = vmatmul.f32.gmra.mxu0 %v1065
          %v1067 = vpop.f32.mrf.mxu0
          %v1068 = vadd.f32 %v1039, %v1067
          %v1069 = vand.u32 %v856, 4294901760
          %1070 = vmatmul.f32.gmra.mxu0 %v1069
          %v1071 = vpop.f32.mrf.mxu0
          %v1072 = vadd.f32 %v1043, %v1071
          %1073 = vdwg.mxu0
          %v1074 = vld [vmem:[%s8] sm:$0xff]
          %v1075 = vld [vmem:[%s8 + $0x8] sm:$0xff]
          %v1076 = vld [vmem:[%s8 + $0x10] sm:$0xff]
          %v1077 = vld [vmem:[%s8 + $0x18] sm:$0xff]
          %v1078 = vld [vmem:[%s9] sm:$0x1]
          %v1080 = vperm.slane %v1078, 0
          %1082 = vmatpush.msra.mxu0 0.0
          %1083 = vmatpush.msra.mxu0 0.0
          %1084 = vmatpush.msra.mxu0 0.0
          %1085 = vmatpush.msra.mxu0 0.0
          %1086 = vmatpush.msra.mxu0 0.0
          %1087 = vmatpush.msra.mxu0 0.0
          %1088 = vmatpush.msra.mxu0 0.0
          %1089 = vmatpush.msra.mxu0 0.0
          %1090 = vmatpush.msra.mxu0 0.0
          %1091 = vmatpush.msra.mxu0 0.0
          %1092 = vmatpush.msra.mxu0 0.0
          %1093 = vmatpush.msra.mxu0 0.0
          %v1094 = vand.u32 %v1077, 4294901760
          %1095 = vmatpush.msra.mxu0 %v1094
          %v1096 = vand.u32 %v1076, 4294901760
          %1097 = vmatpush.msra.mxu0 %v1096
          %v1098 = vand.u32 %v1075, 4294901760
          %1099 = vmatpush.msra.mxu0 %v1098
          %v1100 = vand.u32 %v1074, 4294901760
          %1101 = vmatpush.msra.mxu0 %v1100
          %v1102 = vand.u32 %v853, 4294901760
          %v1103 = vsub.f32 %v853, %v1102
          %v1104 = vand.u32 %v1103, 4294901760
          %v1105 = vsub.f32 %v1103, %v1104
          %v1106 = vand.u32 %v1105, 4294901760
          %1107 = vmatmul.f32.gmra.mxu0 %v1106
          %v1108 = vpop.f32.mrf.mxu0
          %v1109 = vadd.f32 %v1080, %v1108
          %v1110 = vand.u32 %v856, 4294901760
          %v1111 = vsub.f32 %v856, %v1110
          %v1112 = vand.u32 %v1111, 4294901760
          %v1113 = vsub.f32 %v1111, %v1112
          %v1114 = vand.u32 %v1113, 4294901760
          %1115 = vmatmul.f32.gmra.mxu0 %v1114
          %v1116 = vpop.f32.mrf.mxu0
          %v1117 = vadd.f32 %v1080, %v1116
          %1118 = vdwg.mxu0
          %1119 = vmatpush.msra.mxu0 0.0
          %1120 = vmatpush.msra.mxu0 0.0
          %1121 = vmatpush.msra.mxu0 0.0
          %1122 = vmatpush.msra.mxu0 0.0
          %1123 = vmatpush.msra.mxu0 0.0
          %1124 = vmatpush.msra.mxu0 0.0
          %1125 = vmatpush.msra.mxu0 0.0
          %1126 = vmatpush.msra.mxu0 0.0
          %1127 = vmatpush.msra.mxu0 0.0
          %1128 = vmatpush.msra.mxu0 0.0
          %1129 = vmatpush.msra.mxu0 0.0
          %1130 = vmatpush.msra.mxu0 0.0
          %v1131 = vand.u32 %v1077, 4294901760
          %v1132 = vsub.f32 %v1077, %v1131
          %v1133 = vand.u32 %v1132, 4294901760
          %v1134 = vsub.f32 %v1132, %v1133
          %v1135 = vand.u32 %v1134, 4294901760
          %1136 = vmatpush.msra.mxu0 %v1135
          %v1137 = vand.u32 %v1076, 4294901760
          %v1138 = vsub.f32 %v1076, %v1137
          %v1139 = vand.u32 %v1138, 4294901760
          %v1140 = vsub.f32 %v1138, %v1139
          %v1141 = vand.u32 %v1140, 4294901760
          %1142 = vmatpush.msra.mxu0 %v1141
          %v1143 = vand.u32 %v1075, 4294901760
          %v1144 = vsub.f32 %v1075, %v1143
          %v1145 = vand.u32 %v1144, 4294901760
          %v1146 = vsub.f32 %v1144, %v1145
          %v1147 = vand.u32 %v1146, 4294901760
          %1148 = vmatpush.msra.mxu0 %v1147
          %v1149 = vand.u32 %v1074, 4294901760
          %v1150 = vsub.f32 %v1074, %v1149
          %v1151 = vand.u32 %v1150, 4294901760
          %v1152 = vsub.f32 %v1150, %v1151
          %v1153 = vand.u32 %v1152, 4294901760
          %1154 = vmatpush.msra.mxu0 %v1153
          %v1155 = vand.u32 %v853, 4294901760
          %1156 = vmatmul.f32.gmra.mxu0 %v1155
          %v1157 = vpop.f32.mrf.mxu0
          %v1158 = vadd.f32 %v1109, %v1157
          %v1159 = vand.u32 %v856, 4294901760
          %1160 = vmatmul.f32.gmra.mxu0 %v1159
          %v1161 = vpop.f32.mrf.mxu0
          %v1162 = vadd.f32 %v1117, %v1161
          %1163 = vdwg.mxu0
          %1164 = vmatpush.msra.mxu0 0.0
          %1165 = vmatpush.msra.mxu0 0.0
          %1166 = vmatpush.msra.mxu0 0.0
          %1167 = vmatpush.msra.mxu0 0.0
          %1168 = vmatpush.msra.mxu0 0.0
          %1169 = vmatpush.msra.mxu0 0.0
          %1170 = vmatpush.msra.mxu0 0.0
          %1171 = vmatpush.msra.mxu0 0.0
          %1172 = vmatpush.msra.mxu0 0.0
          %1173 = vmatpush.msra.mxu0 0.0
          %1174 = vmatpush.msra.mxu0 0.0
          %1175 = vmatpush.msra.mxu0 0.0
          %v1176 = vand.u32 %v1077, 4294901760
          %v1177 = vsub.f32 %v1077, %v1176
          %1178 = vmatpush.msra.mxu0 %v1177
          %v1179 = vand.u32 %v1076, 4294901760
          %v1180 = vsub.f32 %v1076, %v1179
          %1181 = vmatpush.msra.mxu0 %v1180
          %v1182 = vand.u32 %v1075, 4294901760
          %v1183 = vsub.f32 %v1075, %v1182
          %1184 = vmatpush.msra.mxu0 %v1183
          %v1185 = vand.u32 %v1074, 4294901760
          %v1186 = vsub.f32 %v1074, %v1185
          %1187 = vmatpush.msra.mxu0 %v1186
          %v1188 = vand.u32 %v853, 4294901760
          %v1189 = vsub.f32 %v853, %v1188
          %1190 = vmatmul.f32.gmra.mxu0 %v1189
          %v1191 = vpop.f32.mrf.mxu0
          %v1192 = vadd.f32 %v1158, %v1191
          %v1193 = vand.u32 %v856, 4294901760
          %v1194 = vsub.f32 %v856, %v1193
          %1195 = vmatmul.f32.gmra.mxu0 %v1194
          %v1196 = vpop.f32.mrf.mxu0
          %v1197 = vadd.f32 %v1162, %v1196
          %1198 = vdwg.mxu0
          %1199 = vmatpush.msra.mxu0 0.0
          %1200 = vmatpush.msra.mxu0 0.0
          %1201 = vmatpush.msra.mxu0 0.0
          %1202 = vmatpush.msra.mxu0 0.0
          %1203 = vmatpush.msra.mxu0 0.0
          %1204 = vmatpush.msra.mxu0 0.0
          %1205 = vmatpush.msra.mxu0 0.0
          %1206 = vmatpush.msra.mxu0 0.0
          %1207 = vmatpush.msra.mxu0 0.0
          %1208 = vmatpush.msra.mxu0 0.0
          %1209 = vmatpush.msra.mxu0 0.0
          %1210 = vmatpush.msra.mxu0 0.0
          %v1211 = vand.u32 %v1077, 4294901760
          %1212 = vmatpush.msra.mxu0 %v1211
          %v1213 = vand.u32 %v1076, 4294901760
          %1214 = vmatpush.msra.mxu0 %v1213
          %v1215 = vand.u32 %v1075, 4294901760
          %1216 = vmatpush.msra.mxu0 %v1215
          %v1217 = vand.u32 %v1074, 4294901760
          %1218 = vmatpush.msra.mxu0 %v1217
          %v1219 = vand.u32 %v853, 4294901760
          %v1220 = vsub.f32 %v853, %v1219
          %v1221 = vand.u32 %v1220, 4294901760
          %1222 = vmatmul.f32.gmra.mxu0 %v1221
          %v1223 = vpop.f32.mrf.mxu0
          %v1224 = vadd.f32 %v1192, %v1223
          %v1225 = vand.u32 %v856, 4294901760
          %v1226 = vsub.f32 %v856, %v1225
          %v1227 = vand.u32 %v1226, 4294901760
          %1228 = vmatmul.f32.gmra.mxu0 %v1227
          %v1229 = vpop.f32.mrf.mxu0
          %v1230 = vadd.f32 %v1197, %v1229
          %1231 = vdwg.mxu0
          %1232 = vmatpush.msra.mxu0 0.0
          %1233 = vmatpush.msra.mxu0 0.0
          %1234 = vmatpush.msra.mxu0 0.0
          %1235 = vmatpush.msra.mxu0 0.0
          %1236 = vmatpush.msra.mxu0 0.0
          %1237 = vmatpush.msra.mxu0 0.0
          %1238 = vmatpush.msra.mxu0 0.0
          %1239 = vmatpush.msra.mxu0 0.0
          %1240 = vmatpush.msra.mxu0 0.0
          %1241 = vmatpush.msra.mxu0 0.0
          %1242 = vmatpush.msra.mxu0 0.0
          %1243 = vmatpush.msra.mxu0 0.0
          %v1244 = vand.u32 %v1077, 4294901760
          %v1245 = vsub.f32 %v1077, %v1244
          %v1246 = vand.u32 %v1245, 4294901760
          %1247 = vmatpush.msra.mxu0 %v1246
          %v1248 = vand.u32 %v1076, 4294901760
          %v1249 = vsub.f32 %v1076, %v1248
          %v1250 = vand.u32 %v1249, 4294901760
          %1251 = vmatpush.msra.mxu0 %v1250
          %v1252 = vand.u32 %v1075, 4294901760
          %v1253 = vsub.f32 %v1075, %v1252
          %v1254 = vand.u32 %v1253, 4294901760
          %1255 = vmatpush.msra.mxu0 %v1254
          %v1256 = vand.u32 %v1074, 4294901760
          %v1257 = vsub.f32 %v1074, %v1256
          %v1258 = vand.u32 %v1257, 4294901760
          %1259 = vmatpush.msra.mxu0 %v1258
          %v1260 = vand.u32 %v853, 4294901760
          %1261 = vmatmul.f32.gmra.mxu0 %v1260
          %v1262 = vpop.f32.mrf.mxu0
          %v1263 = vadd.f32 %v1224, %v1262
          %v1264 = vand.u32 %v856, 4294901760
          %1265 = vmatmul.f32.gmra.mxu0 %v1264
          %v1266 = vpop.f32.mrf.mxu0
          %v1267 = vadd.f32 %v1230, %v1266
          %1268 = vdwg.mxu0
          %1269 = vmatpush.msra.mxu0 0.0
          %1270 = vmatpush.msra.mxu0 0.0
          %1271 = vmatpush.msra.mxu0 0.0
          %1272 = vmatpush.msra.mxu0 0.0
          %1273 = vmatpush.msra.mxu0 0.0
          %1274 = vmatpush.msra.mxu0 0.0
          %1275 = vmatpush.msra.mxu0 0.0
          %1276 = vmatpush.msra.mxu0 0.0
          %1277 = vmatpush.msra.mxu0 0.0
          %1278 = vmatpush.msra.mxu0 0.0
          %1279 = vmatpush.msra.mxu0 0.0
          %1280 = vmatpush.msra.mxu0 0.0
          %v1281 = vand.u32 %v1077, 4294901760
          %1282 = vmatpush.msra.mxu0 %v1281
          %v1283 = vand.u32 %v1076, 4294901760
          %1284 = vmatpush.msra.mxu0 %v1283
          %v1285 = vand.u32 %v1075, 4294901760
          %1286 = vmatpush.msra.mxu0 %v1285
          %v1287 = vand.u32 %v1074, 4294901760
          %1288 = vmatpush.msra.mxu0 %v1287
          %v1289 = vand.u32 %v853, 4294901760
          %1290 = vmatmul.f32.gmra.mxu0 %v1289
          %v1291 = vpop.f32.mrf.mxu0
          %v1292 = vadd.f32 %v1263, %v1291
          %v1293 = vand.u32 %v856, 4294901760
          %1294 = vmatmul.f32.gmra.mxu0 %v1293
          %v1295 = vpop.f32.mrf.mxu0
          %v1296 = vadd.f32 %v1267, %v1295
          %1297 = vdwg.mxu0
          %vm1298 = vcmask 64512
          %1299 = vst.msk [vmem:[#allocation3] sm:$0xff] %vm1298, %v838
          %1300 = vst.msk [vmem:[#allocation3 + $0x8] sm:$0xff] %vm1298, %v842
          %1301 = vst.msk [vmem:[#allocation4] sm:$0xff] %vm1298, %v1068
          %1302 = vst.msk [vmem:[#allocation4 + $0x8] sm:$0xff] %vm1298, %v1072
          %1303 = vst.msk [vmem:[#allocation5] sm:$0xff] %vm1298, %v1292
          %1304 = vst.msk [vmem:[#allocation5 + $0x8] sm:$0xff] %vm1298, %v1296
          %1307 = vrot.lane.b32.xlu0 %v838, 120
          %v1308 = vpop.permute.xlu0 %1307
          %1309 = vrot.lane.b32.xlu0 %v842, 120
          %v1310 = vpop.permute.xlu0 %1309
          %s1313 = scalar_lea.vmem [#allocation3], 16
          %1314 = vst.msk [vmem:[%s1313] sm:$0xff] %vm1298, %v1308
          %1315 = vst.msk [vmem:[%s1313 + $0x8] sm:$0xff] %vm1298, %v1310
          %1318 = vrot.lane.b32.xlu0 %v1068, 120
          %v1319 = vpop.permute.xlu0 %1318
          %1320 = vrot.lane.b32.xlu0 %v1072, 120
          %v1321 = vpop.permute.xlu0 %1320
          %s1324 = scalar_lea.vmem [#allocation4], 16
          %1325 = vst.msk [vmem:[%s1324] sm:$0xff] %vm1298, %v1319
          %1326 = vst.msk [vmem:[%s1324 + $0x8] sm:$0xff] %vm1298, %v1321
          %1329 = vrot.lane.b32.xlu0 %v1292, 120
          %v1330 = vpop.permute.xlu0 %1329
          %1331 = vrot.lane.b32.xlu0 %v1296, 120
          %v1332 = vpop.permute.xlu0 %1331
          %s1335 = scalar_lea.vmem [#allocation5], 16
          %1336 = vst.msk [vmem:[%s1335] sm:$0xff] %vm1298, %v1330
          %1337 = vst.msk [vmem:[%s1335 + $0x8] sm:$0xff] %vm1298, %v1332
          %1338 = vrot.lane.b32.xlu0 %v838, 112
          %v1339 = vpop.permute.xlu0 %1338
          %1340 = vrot.lane.b32.xlu0 %v842, 112
          %v1341 = vpop.permute.xlu0 %1340
          %s1344 = scalar_lea.vmem [#allocation3], 32
          %1345 = vst.msk [vmem:[%s1344] sm:$0xff] %vm1298, %v1339
          %1346 = vst.msk [vmem:[%s1344 + $0x8] sm:$0xff] %vm1298, %v1341
          %1347 = vrot.lane.b32.xlu0 %v1068, 112
          %v1348 = vpop.permute.xlu0 %1347
          %1349 = vrot.lane.b32.xlu0 %v1072, 112
          %v1350 = vpop.permute.xlu0 %1349
          %s1353 = scalar_lea.vmem [#allocation4], 32
          %1354 = vst.msk [vmem:[%s1353] sm:$0xff] %vm1298, %v1348
          %1355 = vst.msk [vmem:[%s1353 + $0x8] sm:$0xff] %vm1298, %v1350
          %1356 = vrot.lane.b32.xlu0 %v1292, 112
          %v1357 = vpop.permute.xlu0 %1356
          %1358 = vrot.lane.b32.xlu0 %v1296, 112
          %v1359 = vpop.permute.xlu0 %1358
          %s1362 = scalar_lea.vmem [#allocation5], 32
          %1363 = vst.msk [vmem:[%s1362] sm:$0xff] %vm1298, %v1357
          %1364 = vst.msk [vmem:[%s1362 + $0x8] sm:$0xff] %vm1298, %v1359
          %1365 = vrot.lane.b32.xlu0 %v838, 104
          %v1366 = vpop.permute.xlu0 %1365
          %1367 = vrot.lane.b32.xlu0 %v842, 104
          %v1368 = vpop.permute.xlu0 %1367
          %s1371 = scalar_lea.vmem [#allocation3], 48
          %1372 = vst.msk [vmem:[%s1371] sm:$0xff] %vm1298, %v1366
          %1373 = vst.msk [vmem:[%s1371 + $0x8] sm:$0xff] %vm1298, %v1368
          %1374 = vrot.lane.b32.xlu0 %v1068, 104
          %v1375 = vpop.permute.xlu0 %1374
          %1376 = vrot.lane.b32.xlu0 %v1072, 104
          %v1377 = vpop.permute.xlu0 %1376
          %s1380 = scalar_lea.vmem [#allocation4], 48
          %1381 = vst.msk [vmem:[%s1380] sm:$0xff] %vm1298, %v1375
          %1382 = vst.msk [vmem:[%s1380 + $0x8] sm:$0xff] %vm1298, %v1377
          %1383 = vrot.lane.b32.xlu0 %v1292, 104
          %v1384 = vpop.permute.xlu0 %1383
          %1385 = vrot.lane.b32.xlu0 %v1296, 104
          %v1386 = vpop.permute.xlu0 %1385
          %s1389 = scalar_lea.vmem [#allocation5], 48
          %1390 = vst.msk [vmem:[%s1389] sm:$0xff] %vm1298, %v1384
          %1391 = vst.msk [vmem:[%s1389 + $0x8] sm:$0xff] %vm1298, %v1386
        $region84: #{tpu_custom_call.1} parent=79 // pred_fallthru
          _
        %s1392 = smul.u32 %s34, 16
        %s1393 = scalar_lea.vmem [#allocation3], %s1392
        %v1394 = vld [vmem:[%s1393] sm:$0xff]
        %v1395 = vld [vmem:[%s1393 + $0x8] sm:$0xff]
        %s1396 = scalar_lea.vmem [#allocation4], %s1392
        %v1397 = vld [vmem:[%s1396] sm:$0xff]
        %v1398 = vld [vmem:[%s1396 + $0x8] sm:$0xff]
        %s1399 = scalar_lea.vmem [#allocation5], %s1392
        %v1400 = vld [vmem:[%s1399] sm:$0xff]
        %v1401 = vld [vmem:[%s1399 + $0x8] sm:$0xff]
        %v1402 = vld [vmem:[%s12] sm:$0xff]
        %v1403 = vld [vmem:[%s12 + $0x8] sm:$0xff]
        %v1404 = vld [vmem:[%s12 + $0x10] sm:$0xff]
        %v1405 = vld [vmem:[%s12 + $0x18] sm:$0xff]
        %v1406 = vld [vmem:[%s12 + $0x20] sm:$0xff]
        %v1407 = vld [vmem:[%s12 + $0x28] sm:$0xff]
        %v1408 = vld [vmem:[%s12 + $0x30] sm:$0xff]
        %v1409 = vld [vmem:[%s12 + $0x38] sm:$0xff]
        %v1410 = vld [vmem:[%s12 + $0x40] sm:$0xff]
        %v1411 = vld [vmem:[%s12 + $0x48] sm:$0xff]
        %v1412 = vld [vmem:[%s12 + $0x50] sm:$0xff]
        %v1413 = vld [vmem:[%s12 + $0x58] sm:$0xff]
        %v1414 = vld [vmem:[%s12 + $0x60] sm:$0xff]
        %v1415 = vld [vmem:[%s12 + $0x68] sm:$0xff]
        %v1416 = vld [vmem:[%s12 + $0x70] sm:$0xff]
        %v1417 = vld [vmem:[%s12 + $0x78] sm:$0xff]
        %vm1418 = vcmask 64512
        %v1420 = vsel %vm1418, %v1394, 0
        %v1423 = vsel %vm1418, %v1395, 0
        %v1426 = vsel %vm1418, %v1402, 0
        %v1429 = vsel %vm1418, %v1403, 0
        %v1432 = vsel %vm1418, %v1404, 0
        %v1435 = vsel %vm1418, %v1405, 0
        %v1438 = vsel %vm1418, %v1406, 0
        %v1441 = vsel %vm1418, %v1407, 0
        %v1444 = vsel %vm1418, %v1408, 0
        %v1447 = vsel %vm1418, %v1409, 0
        %v1450 = vsel %vm1418, %v1410, 0
        %v1453 = vsel %vm1418, %v1411, 0
        %v1456 = vsel %vm1418, %v1412, 0
        %v1459 = vsel %vm1418, %v1413, 0
        %v1462 = vsel %vm1418, %v1414, 0
        %v1465 = vsel %vm1418, %v1415, 0
        %v1468 = vsel %vm1418, %v1416, 0
        %v1471 = vsel %vm1418, %v1417, 0
        %v1473 = vand.u32 %v1471, 4294901760
        %1474 = vmatpush.xpose.msra.mxu0 %v1473
        %v1475 = vand.u32 %v1468, 4294901760
        %1476 = vmatpush.xpose.msra.mxu0 %v1475
        %v1477 = vand.u32 %v1465, 4294901760
        %1478 = vmatpush.xpose.msra.mxu0 %v1477
        %v1479 = vand.u32 %v1462, 4294901760
        %1480 = vmatpush.xpose.msra.mxu0 %v1479
        %v1481 = vand.u32 %v1459, 4294901760
        %1482 = vmatpush.xpose.msra.mxu0 %v1481
        %v1483 = vand.u32 %v1456, 4294901760
        %1484 = vmatpush.xpose.msra.mxu0 %v1483
        %v1485 = vand.u32 %v1453, 4294901760
        %1486 = vmatpush.xpose.msra.mxu0 %v1485
        %v1487 = vand.u32 %v1450, 4294901760
        %1488 = vmatpush.xpose.msra.mxu0 %v1487
        %v1489 = vand.u32 %v1447, 4294901760
        %1490 = vmatpush.xpose.msra.mxu0 %v1489
        %v1491 = vand.u32 %v1444, 4294901760
        %1492 = vmatpush.xpose.msra.mxu0 %v1491
        %v1493 = vand.u32 %v1441, 4294901760
        %1494 = vmatpush.xpose.msra.mxu0 %v1493
        %v1495 = vand.u32 %v1438, 4294901760
        %1496 = vmatpush.xpose.msra.mxu0 %v1495
        %v1497 = vand.u32 %v1435, 4294901760
        %1498 = vmatpush.xpose.msra.mxu0 %v1497
        %v1499 = vand.u32 %v1432, 4294901760
        %1500 = vmatpush.xpose.msra.mxu0 %v1499
        %v1501 = vand.u32 %v1429, 4294901760
        %1502 = vmatpush.xpose.msra.mxu0 %v1501
        %v1503 = vand.u32 %v1426, 4294901760
        %1504 = vmatpush.xpose.msra.mxu0 %v1503
        %v1505 = vand.u32 %v1420, 4294901760
        %v1506 = vsub.f32 %v1420, %v1505
        %v1507 = vand.u32 %v1506, 4294901760
        %v1508 = vsub.f32 %v1506, %v1507
        %v1509 = vand.u32 %v1508, 4294901760
        %1510 = vmatmul.f32.gmra.mxu0 %v1509
        %v1511 = vpop.f32.mrf.mxu0
        %v1512 = vadd.f32 0.0, %v1511
        %v1513 = vand.u32 %v1423, 4294901760
        %v1514 = vsub.f32 %v1423, %v1513
        %v1515 = vand.u32 %v1514, 4294901760
        %v1516 = vsub.f32 %v1514, %v1515
        %v1517 = vand.u32 %v1516, 4294901760
        %1518 = vmatmul.f32.gmra.mxu0 %v1517
        %v1519 = vpop.f32.mrf.mxu0
        %v1520 = vadd.f32 0.0, %v1519
        %1521 = vdwg.mxu0
        %v1522 = vand.u32 %v1471, 4294901760
        %v1523 = vsub.f32 %v1471, %v1522
        %v1524 = vand.u32 %v1523, 4294901760
        %v1525 = vsub.f32 %v1523, %v1524
        %v1526 = vand.u32 %v1525, 4294901760
        %1527 = vmatpush.xpose.msra.mxu0 %v1526
        %v1528 = vand.u32 %v1468, 4294901760
        %v1529 = vsub.f32 %v1468, %v1528
        %v1530 = vand.u32 %v1529, 4294901760
        %v1531 = vsub.f32 %v1529, %v1530
        %v1532 = vand.u32 %v1531, 4294901760
        %1533 = vmatpush.xpose.msra.mxu0 %v1532
        %v1534 = vand.u32 %v1465, 4294901760
        %v1535 = vsub.f32 %v1465, %v1534
        %v1536 = vand.u32 %v1535, 4294901760
        %v1537 = vsub.f32 %v1535, %v1536
        %v1538 = vand.u32 %v1537, 4294901760
        %1539 = vmatpush.xpose.msra.mxu0 %v1538
        %v1540 = vand.u32 %v1462, 4294901760
        %v1541 = vsub.f32 %v1462, %v1540
        %v1542 = vand.u32 %v1541, 4294901760
        %v1543 = vsub.f32 %v1541, %v1542
        %v1544 = vand.u32 %v1543, 4294901760
        %1545 = vmatpush.xpose.msra.mxu0 %v1544
        %v1546 = vand.u32 %v1459, 4294901760
        %v1547 = vsub.f32 %v1459, %v1546
        %v1548 = vand.u32 %v1547, 4294901760
        %v1549 = vsub.f32 %v1547, %v1548
        %v1550 = vand.u32 %v1549, 4294901760
        %1551 = vmatpush.xpose.msra.mxu0 %v1550
        %v1552 = vand.u32 %v1456, 4294901760
        %v1553 = vsub.f32 %v1456, %v1552
        %v1554 = vand.u32 %v1553, 4294901760
        %v1555 = vsub.f32 %v1553, %v1554
        %v1556 = vand.u32 %v1555, 4294901760
        %1557 = vmatpush.xpose.msra.mxu0 %v1556
        %v1558 = vand.u32 %v1453, 4294901760
        %v1559 = vsub.f32 %v1453, %v1558
        %v1560 = vand.u32 %v1559, 4294901760
        %v1561 = vsub.f32 %v1559, %v1560
        %v1562 = vand.u32 %v1561, 4294901760
        %1563 = vmatpush.xpose.msra.mxu0 %v1562
        %v1564 = vand.u32 %v1450, 4294901760
        %v1565 = vsub.f32 %v1450, %v1564
        %v1566 = vand.u32 %v1565, 4294901760
        %v1567 = vsub.f32 %v1565, %v1566
        %v1568 = vand.u32 %v1567, 4294901760
        %1569 = vmatpush.xpose.msra.mxu0 %v1568
        %v1570 = vand.u32 %v1447, 4294901760
        %v1571 = vsub.f32 %v1447, %v1570
        %v1572 = vand.u32 %v1571, 4294901760
        %v1573 = vsub.f32 %v1571, %v1572
        %v1574 = vand.u32 %v1573, 4294901760
        %1575 = vmatpush.xpose.msra.mxu0 %v1574
        %v1576 = vand.u32 %v1444, 4294901760
        %v1577 = vsub.f32 %v1444, %v1576
        %v1578 = vand.u32 %v1577, 4294901760
        %v1579 = vsub.f32 %v1577, %v1578
        %v1580 = vand.u32 %v1579, 4294901760
        %1581 = vmatpush.xpose.msra.mxu0 %v1580
        %v1582 = vand.u32 %v1441, 4294901760
        %v1583 = vsub.f32 %v1441, %v1582
        %v1584 = vand.u32 %v1583, 4294901760
        %v1585 = vsub.f32 %v1583, %v1584
        %v1586 = vand.u32 %v1585, 4294901760
        %1587 = vmatpush.xpose.msra.mxu0 %v1586
        %v1588 = vand.u32 %v1438, 4294901760
        %v1589 = vsub.f32 %v1438, %v1588
        %v1590 = vand.u32 %v1589, 4294901760
        %v1591 = vsub.f32 %v1589, %v1590
        %v1592 = vand.u32 %v1591, 4294901760
        %1593 = vmatpush.xpose.msra.mxu0 %v1592
        %v1594 = vand.u32 %v1435, 4294901760
        %v1595 = vsub.f32 %v1435, %v1594
        %v1596 = vand.u32 %v1595, 4294901760
        %v1597 = vsub.f32 %v1595, %v1596
        %v1598 = vand.u32 %v1597, 4294901760
        %1599 = vmatpush.xpose.msra.mxu0 %v1598
        %v1600 = vand.u32 %v1432, 4294901760
        %v1601 = vsub.f32 %v1432, %v1600
        %v1602 = vand.u32 %v1601, 4294901760
        %v1603 = vsub.f32 %v1601, %v1602
        %v1604 = vand.u32 %v1603, 4294901760
        %1605 = vmatpush.xpose.msra.mxu0 %v1604
        %v1606 = vand.u32 %v1429, 4294901760
        %v1607 = vsub.f32 %v1429, %v1606
        %v1608 = vand.u32 %v1607, 4294901760
        %v1609 = vsub.f32 %v1607, %v1608
        %v1610 = vand.u32 %v1609, 4294901760
        %1611 = vmatpush.xpose.msra.mxu0 %v1610
        %v1612 = vand.u32 %v1426, 4294901760
        %v1613 = vsub.f32 %v1426, %v1612
        %v1614 = vand.u32 %v1613, 4294901760
        %v1615 = vsub.f32 %v1613, %v1614
        %v1616 = vand.u32 %v1615, 4294901760
        %1617 = vmatpush.xpose.msra.mxu0 %v1616
        %v1618 = vand.u32 %v1420, 4294901760
        %1619 = vmatmul.f32.gmra.mxu0 %v1618
        %v1620 = vpop.f32.mrf.mxu0
        %v1621 = vadd.f32 %v1512, %v1620
        %v1622 = vand.u32 %v1423, 4294901760
        %1623 = vmatmul.f32.gmra.mxu0 %v1622
        %v1624 = vpop.f32.mrf.mxu0
        %v1625 = vadd.f32 %v1520, %v1624
        %1626 = vdwg.mxu0
        %v1627 = vand.u32 %v1471, 4294901760
        %v1628 = vsub.f32 %v1471, %v1627
        %1629 = vmatpush.xpose.msra.mxu0 %v1628
        %v1630 = vand.u32 %v1468, 4294901760
        %v1631 = vsub.f32 %v1468, %v1630
        %1632 = vmatpush.xpose.msra.mxu0 %v1631
        %v1633 = vand.u32 %v1465, 4294901760
        %v1634 = vsub.f32 %v1465, %v1633
        %1635 = vmatpush.xpose.msra.mxu0 %v1634
        %v1636 = vand.u32 %v1462, 4294901760
        %v1637 = vsub.f32 %v1462, %v1636
        %1638 = vmatpush.xpose.msra.mxu0 %v1637
        %v1639 = vand.u32 %v1459, 4294901760
        %v1640 = vsub.f32 %v1459, %v1639
        %1641 = vmatpush.xpose.msra.mxu0 %v1640
        %v1642 = vand.u32 %v1456, 4294901760
        %v1643 = vsub.f32 %v1456, %v1642
        %1644 = vmatpush.xpose.msra.mxu0 %v1643
        %v1645 = vand.u32 %v1453, 4294901760
        %v1646 = vsub.f32 %v1453, %v1645
        %1647 = vmatpush.xpose.msra.mxu0 %v1646
        %v1648 = vand.u32 %v1450, 4294901760
        %v1649 = vsub.f32 %v1450, %v1648
        %1650 = vmatpush.xpose.msra.mxu0 %v1649
        %v1651 = vand.u32 %v1447, 4294901760
        %v1652 = vsub.f32 %v1447, %v1651
        %1653 = vmatpush.xpose.msra.mxu0 %v1652
        %v1654 = vand.u32 %v1444, 4294901760
        %v1655 = vsub.f32 %v1444, %v1654
        %1656 = vmatpush.xpose.msra.mxu0 %v1655
        %v1657 = vand.u32 %v1441, 4294901760
        %v1658 = vsub.f32 %v1441, %v1657
        %1659 = vmatpush.xpose.msra.mxu0 %v1658
        %v1660 = vand.u32 %v1438, 4294901760
        %v1661 = vsub.f32 %v1438, %v1660
        %1662 = vmatpush.xpose.msra.mxu0 %v1661
        %v1663 = vand.u32 %v1435, 4294901760
        %v1664 = vsub.f32 %v1435, %v1663
        %1665 = vmatpush.xpose.msra.mxu0 %v1664
        %v1666 = vand.u32 %v1432, 4294901760
        %v1667 = vsub.f32 %v1432, %v1666
        %1668 = vmatpush.xpose.msra.mxu0 %v1667
        %v1669 = vand.u32 %v1429, 4294901760
        %v1670 = vsub.f32 %v1429, %v1669
        %1671 = vmatpush.xpose.msra.mxu0 %v1670
        %v1672 = vand.u32 %v1426, 4294901760
        %v1673 = vsub.f32 %v1426, %v1672
        %1674 = vmatpush.xpose.msra.mxu0 %v1673
        %v1675 = vand.u32 %v1420, 4294901760
        %v1676 = vsub.f32 %v1420, %v1675
        %1677 = vmatmul.f32.gmra.mxu0 %v1676
        %v1678 = vpop.f32.mrf.mxu0
        %v1679 = vadd.f32 %v1621, %v1678
        %v1680 = vand.u32 %v1423, 4294901760
        %v1681 = vsub.f32 %v1423, %v1680
        %1682 = vmatmul.f32.gmra.mxu0 %v1681
        %v1683 = vpop.f32.mrf.mxu0
        %v1684 = vadd.f32 %v1625, %v1683
        %1685 = vdwg.mxu0
        %v1686 = vand.u32 %v1471, 4294901760
        %1687 = vmatpush.xpose.msra.mxu0 %v1686
        %v1688 = vand.u32 %v1468, 4294901760
        %1689 = vmatpush.xpose.msra.mxu0 %v1688
        %v1690 = vand.u32 %v1465, 4294901760
        %1691 = vmatpush.xpose.msra.mxu0 %v1690
        %v1692 = vand.u32 %v1462, 4294901760
        %1693 = vmatpush.xpose.msra.mxu0 %v1692
        %v1694 = vand.u32 %v1459, 4294901760
        %1695 = vmatpush.xpose.msra.mxu0 %v1694
        %v1696 = vand.u32 %v1456, 4294901760
        %1697 = vmatpush.xpose.msra.mxu0 %v1696
        %v1698 = vand.u32 %v1453, 4294901760
        %1699 = vmatpush.xpose.msra.mxu0 %v1698
        %v1700 = vand.u32 %v1450, 4294901760
        %1701 = vmatpush.xpose.msra.mxu0 %v1700
        %v1702 = vand.u32 %v1447, 4294901760
        %1703 = vmatpush.xpose.msra.mxu0 %v1702
        %v1704 = vand.u32 %v1444, 4294901760
        %1705 = vmatpush.xpose.msra.mxu0 %v1704
        %v1706 = vand.u32 %v1441, 4294901760
        %1707 = vmatpush.xpose.msra.mxu0 %v1706
        %v1708 = vand.u32 %v1438, 4294901760
        %1709 = vmatpush.xpose.msra.mxu0 %v1708
        %v1710 = vand.u32 %v1435, 4294901760
        %1711 = vmatpush.xpose.msra.mxu0 %v1710
        %v1712 = vand.u32 %v1432, 4294901760
        %1713 = vmatpush.xpose.msra.mxu0 %v1712
        %v1714 = vand.u32 %v1429, 4294901760
        %1715 = vmatpush.xpose.msra.mxu0 %v1714
        %v1716 = vand.u32 %v1426, 4294901760
        %1717 = vmatpush.xpose.msra.mxu0 %v1716
        %v1718 = vand.u32 %v1420, 4294901760
        %v1719 = vsub.f32 %v1420, %v1718
        %v1720 = vand.u32 %v1719, 4294901760
        %1721 = vmatmul.f32.gmra.mxu0 %v1720
        %v1722 = vpop.f32.mrf.mxu0
        %v1723 = vadd.f32 %v1679, %v1722
        %v1724 = vand.u32 %v1423, 4294901760
        %v1725 = vsub.f32 %v1423, %v1724
        %v1726 = vand.u32 %v1725, 4294901760
        %1727 = vmatmul.f32.gmra.mxu0 %v1726
        %v1728 = vpop.f32.mrf.mxu0
        %v1729 = vadd.f32 %v1684, %v1728
        %1730 = vdwg.mxu0
        %v1731 = vand.u32 %v1471, 4294901760
        %v1732 = vsub.f32 %v1471, %v1731
        %v1733 = vand.u32 %v1732, 4294901760
        %1734 = vmatpush.xpose.msra.mxu0 %v1733
        %v1735 = vand.u32 %v1468, 4294901760
        %v1736 = vsub.f32 %v1468, %v1735
        %v1737 = vand.u32 %v1736, 4294901760
        %1738 = vmatpush.xpose.msra.mxu0 %v1737
        %v1739 = vand.u32 %v1465, 4294901760
        %v1740 = vsub.f32 %v1465, %v1739
        %v1741 = vand.u32 %v1740, 4294901760
        %1742 = vmatpush.xpose.msra.mxu0 %v1741
        %v1743 = vand.u32 %v1462, 4294901760
        %v1744 = vsub.f32 %v1462, %v1743
        %v1745 = vand.u32 %v1744, 4294901760
        %1746 = vmatpush.xpose.msra.mxu0 %v1745
        %v1747 = vand.u32 %v1459, 4294901760
        %v1748 = vsub.f32 %v1459, %v1747
        %v1749 = vand.u32 %v1748, 4294901760
        %1750 = vmatpush.xpose.msra.mxu0 %v1749
        %v1751 = vand.u32 %v1456, 4294901760
        %v1752 = vsub.f32 %v1456, %v1751
        %v1753 = vand.u32 %v1752, 4294901760
        %1754 = vmatpush.xpose.msra.mxu0 %v1753
        %v1755 = vand.u32 %v1453, 4294901760
        %v1756 = vsub.f32 %v1453, %v1755
        %v1757 = vand.u32 %v1756, 4294901760
        %1758 = vmatpush.xpose.msra.mxu0 %v1757
        %v1759 = vand.u32 %v1450, 4294901760
        %v1760 = vsub.f32 %v1450, %v1759
        %v1761 = vand.u32 %v1760, 4294901760
        %1762 = vmatpush.xpose.msra.mxu0 %v1761
        %v1763 = vand.u32 %v1447, 4294901760
        %v1764 = vsub.f32 %v1447, %v1763
        %v1765 = vand.u32 %v1764, 4294901760
        %1766 = vmatpush.xpose.msra.mxu0 %v1765
        %v1767 = vand.u32 %v1444, 4294901760
        %v1768 = vsub.f32 %v1444, %v1767
        %v1769 = vand.u32 %v1768, 4294901760
        %1770 = vmatpush.xpose.msra.mxu0 %v1769
        %v1771 = vand.u32 %v1441, 4294901760
        %v1772 = vsub.f32 %v1441, %v1771
        %v1773 = vand.u32 %v1772, 4294901760
        %1774 = vmatpush.xpose.msra.mxu0 %v1773
        %v1775 = vand.u32 %v1438, 4294901760
        %v1776 = vsub.f32 %v1438, %v1775
        %v1777 = vand.u32 %v1776, 4294901760
        %1778 = vmatpush.xpose.msra.mxu0 %v1777
        %v1779 = vand.u32 %v1435, 4294901760
        %v1780 = vsub.f32 %v1435, %v1779
        %v1781 = vand.u32 %v1780, 4294901760
        %1782 = vmatpush.xpose.msra.mxu0 %v1781
        %v1783 = vand.u32 %v1432, 4294901760
        %v1784 = vsub.f32 %v1432, %v1783
        %v1785 = vand.u32 %v1784, 4294901760
        %1786 = vmatpush.xpose.msra.mxu0 %v1785
        %v1787 = vand.u32 %v1429, 4294901760
        %v1788 = vsub.f32 %v1429, %v1787
        %v1789 = vand.u32 %v1788, 4294901760
        %1790 = vmatpush.xpose.msra.mxu0 %v1789
        %v1791 = vand.u32 %v1426, 4294901760
        %v1792 = vsub.f32 %v1426, %v1791
        %v1793 = vand.u32 %v1792, 4294901760
        %1794 = vmatpush.xpose.msra.mxu0 %v1793
        %v1795 = vand.u32 %v1420, 4294901760
        %1796 = vmatmul.f32.gmra.mxu0 %v1795
        %v1797 = vpop.f32.mrf.mxu0
        %v1798 = vadd.f32 %v1723, %v1797
        %v1799 = vand.u32 %v1423, 4294901760
        %1800 = vmatmul.f32.gmra.mxu0 %v1799
        %v1801 = vpop.f32.mrf.mxu0
        %v1802 = vadd.f32 %v1729, %v1801
        %1803 = vdwg.mxu0
        %v1804 = vand.u32 %v1471, 4294901760
        %1805 = vmatpush.xpose.msra.mxu0 %v1804
        %v1806 = vand.u32 %v1468, 4294901760
        %1807 = vmatpush.xpose.msra.mxu0 %v1806
        %v1808 = vand.u32 %v1465, 4294901760
        %1809 = vmatpush.xpose.msra.mxu0 %v1808
        %v1810 = vand.u32 %v1462, 4294901760
        %1811 = vmatpush.xpose.msra.mxu0 %v1810
        %v1812 = vand.u32 %v1459, 4294901760
        %1813 = vmatpush.xpose.msra.mxu0 %v1812
        %v1814 = vand.u32 %v1456, 4294901760
        %1815 = vmatpush.xpose.msra.mxu0 %v1814
        %v1816 = vand.u32 %v1453, 4294901760
        %1817 = vmatpush.xpose.msra.mxu0 %v1816
        %v1818 = vand.u32 %v1450, 4294901760
        %1819 = vmatpush.xpose.msra.mxu0 %v1818
        %v1820 = vand.u32 %v1447, 4294901760
        %1821 = vmatpush.xpose.msra.mxu0 %v1820
        %v1822 = vand.u32 %v1444, 4294901760
        %1823 = vmatpush.xpose.msra.mxu0 %v1822
        %v1824 = vand.u32 %v1441, 4294901760
        %1825 = vmatpush.xpose.msra.mxu0 %v1824
        %v1826 = vand.u32 %v1438, 4294901760
        %1827 = vmatpush.xpose.msra.mxu0 %v1826
        %v1828 = vand.u32 %v1435, 4294901760
        %1829 = vmatpush.xpose.msra.mxu0 %v1828
        %v1830 = vand.u32 %v1432, 4294901760
        %1831 = vmatpush.xpose.msra.mxu0 %v1830
        %v1832 = vand.u32 %v1429, 4294901760
        %1833 = vmatpush.xpose.msra.mxu0 %v1832
        %v1834 = vand.u32 %v1426, 4294901760
        %1835 = vmatpush.xpose.msra.mxu0 %v1834
        %v1836 = vand.u32 %v1420, 4294901760
        %1837 = vmatmul.f32.gmra.mxu0 %v1836
        %v1838 = vpop.f32.mrf.mxu0
        %v1839 = vadd.f32 %v1798, %v1838
        %v1840 = vand.u32 %v1423, 4294901760
        %1841 = vmatmul.f32.gmra.mxu0 %v1840
        %v1842 = vpop.f32.mrf.mxu0
        %v1843 = vadd.f32 %v1802, %v1842
        %1844 = vdwg.mxu0
        %v1845 = vlaneseq
        %v1846 = vand.u32 %v1845, 127
        %v1847 = vlaneseq
        %v1848 = vshrl.u32 %v1847, 7
        %v1849 = vadd.s32 %v1848, 8
        %v1850 = vsub.s32 %v1846, %v1848
        %v1851 = vsub.s32 %v1846, %v1849
        %vm1852 = vcmp.eq.s32.totalorder %v1850, 4294967292
        %vm1853 = vcmp.eq.s32.totalorder %v1851, 4294967292
        %1855 = vset.pattern.permute.xlu0 0
        %1856 = vperm.xlu0 %1855, %v1839
        %v1857 = vpop.permute.xlu0 %1856
        %1860 = vset.pattern.permute.xlu0 0
        %1861 = vperm.xlu0 %1860, %v1843
        %v1862 = vpop.permute.xlu0 %1861
        %v1864 = vsel %vm1852, %v1857, 0.0
        %v1865 = vsel %vm1853, %v1862, 0.0
        %v1867 = vsel %vm1418, %v1397, 0
        %v1870 = vsel %vm1418, %v1398, 0
        %1872 = vmatpush.xpose.msra.mxu0 0.0
        %1873 = vmatpush.xpose.msra.mxu0 0.0
        %1874 = vmatpush.xpose.msra.mxu0 0.0
        %1875 = vmatpush.xpose.msra.mxu0 0.0
        %1876 = vmatpush.xpose.msra.mxu0 0.0
        %1877 = vmatpush.xpose.msra.mxu0 0.0
        %1878 = vmatpush.xpose.msra.mxu0 0.0
        %1879 = vmatpush.xpose.msra.mxu0 0.0
        %1880 = vmatpush.xpose.msra.mxu0 0.0
        %1881 = vmatpush.xpose.msra.mxu0 0.0
        %1882 = vmatpush.xpose.msra.mxu0 0.0
        %1883 = vmatpush.xpose.msra.mxu0 0.0
        %1884 = vmatpush.xpose.msra.mxu0 0.0
        %1885 = vmatpush.xpose.msra.mxu0 0.0
        %v1886 = vand.u32 %v1870, 4294901760
        %1887 = vmatpush.xpose.msra.mxu0 %v1886
        %v1888 = vand.u32 %v1867, 4294901760
        %1889 = vmatpush.xpose.msra.mxu0 %v1888
        %v1890 = vand.u32 %v1420, 4294901760
        %v1891 = vsub.f32 %v1420, %v1890
        %v1892 = vand.u32 %v1891, 4294901760
        %v1893 = vsub.f32 %v1891, %v1892
        %v1894 = vand.u32 %v1893, 4294901760
        %1895 = vmatmul.f32.gmra.mxu0 %v1894
        %v1896 = vpop.f32.mrf.mxu0
        %v1897 = vadd.f32 %v1864, %v1896
        %v1898 = vand.u32 %v1423, 4294901760
        %v1899 = vsub.f32 %v1423, %v1898
        %v1900 = vand.u32 %v1899, 4294901760
        %v1901 = vsub.f32 %v1899, %v1900
        %v1902 = vand.u32 %v1901, 4294901760
        %1903 = vmatmul.f32.gmra.mxu0 %v1902
        %v1904 = vpop.f32.mrf.mxu0
        %v1905 = vadd.f32 %v1865, %v1904
        %1906 = vdwg.mxu0
        %1907 = vmatpush.xpose.msra.mxu0 0.0
        %1908 = vmatpush.xpose.msra.mxu0 0.0
        %1909 = vmatpush.xpose.msra.mxu0 0.0
        %1910 = vmatpush.xpose.msra.mxu0 0.0
        %1911 = vmatpush.xpose.msra.mxu0 0.0
        %1912 = vmatpush.xpose.msra.mxu0 0.0
        %1913 = vmatpush.xpose.msra.mxu0 0.0
        %1914 = vmatpush.xpose.msra.mxu0 0.0
        %1915 = vmatpush.xpose.msra.mxu0 0.0
        %1916 = vmatpush.xpose.msra.mxu0 0.0
        %1917 = vmatpush.xpose.msra.mxu0 0.0
        %1918 = vmatpush.xpose.msra.mxu0 0.0
        %1919 = vmatpush.xpose.msra.mxu0 0.0
        %1920 = vmatpush.xpose.msra.mxu0 0.0
        %v1921 = vand.u32 %v1870, 4294901760
        %v1922 = vsub.f32 %v1870, %v1921
        %v1923 = vand.u32 %v1922, 4294901760
        %v1924 = vsub.f32 %v1922, %v1923
        %v1925 = vand.u32 %v1924, 4294901760
        %1926 = vmatpush.xpose.msra.mxu0 %v1925
        %v1927 = vand.u32 %v1867, 4294901760
        %v1928 = vsub.f32 %v1867, %v1927
        %v1929 = vand.u32 %v1928, 4294901760
        %v1930 = vsub.f32 %v1928, %v1929
        %v1931 = vand.u32 %v1930, 4294901760
        %1932 = vmatpush.xpose.msra.mxu0 %v1931
        %v1933 = vand.u32 %v1420, 4294901760
        %1934 = vmatmul.f32.gmra.mxu0 %v1933
        %v1935 = vpop.f32.mrf.mxu0
        %v1936 = vadd.f32 %v1897, %v1935
        %v1937 = vand.u32 %v1423, 4294901760
        %1938 = vmatmul.f32.gmra.mxu0 %v1937
        %v1939 = vpop.f32.mrf.mxu0
        %v1940 = vadd.f32 %v1905, %v1939
        %1941 = vdwg.mxu0
        %1942 = vmatpush.xpose.msra.mxu0 0.0
        %1943 = vmatpush.xpose.msra.mxu0 0.0
        %1944 = vmatpush.xpose.msra.mxu0 0.0
        %1945 = vmatpush.xpose.msra.mxu0 0.0
        %1946 = vmatpush.xpose.msra.mxu0 0.0
        %1947 = vmatpush.xpose.msra.mxu0 0.0
        %1948 = vmatpush.xpose.msra.mxu0 0.0
        %1949 = vmatpush.xpose.msra.mxu0 0.0
        %1950 = vmatpush.xpose.msra.mxu0 0.0
        %1951 = vmatpush.xpose.msra.mxu0 0.0
        %1952 = vmatpush.xpose.msra.mxu0 0.0
        %1953 = vmatpush.xpose.msra.mxu0 0.0
        %1954 = vmatpush.xpose.msra.mxu0 0.0
        %1955 = vmatpush.xpose.msra.mxu0 0.0
        %v1956 = vand.u32 %v1870, 4294901760
        %v1957 = vsub.f32 %v1870, %v1956
        %1958 = vmatpush.xpose.msra.mxu0 %v1957
        %v1959 = vand.u32 %v1867, 4294901760
        %v1960 = vsub.f32 %v1867, %v1959
        %1961 = vmatpush.xpose.msra.mxu0 %v1960
        %v1962 = vand.u32 %v1420, 4294901760
        %v1963 = vsub.f32 %v1420, %v1962
        %1964 = vmatmul.f32.gmra.mxu0 %v1963
        %v1965 = vpop.f32.mrf.mxu0
        %v1966 = vadd.f32 %v1936, %v1965
        %v1967 = vand.u32 %v1423, 4294901760
        %v1968 = vsub.f32 %v1423, %v1967
        %1969 = vmatmul.f32.gmra.mxu0 %v1968
        %v1970 = vpop.f32.mrf.mxu0
        %v1971 = vadd.f32 %v1940, %v1970
        %1972 = vdwg.mxu0
        %1973 = vmatpush.xpose.msra.mxu0 0.0
        %1974 = vmatpush.xpose.msra.mxu0 0.0
        %1975 = vmatpush.xpose.msra.mxu0 0.0
        %1976 = vmatpush.xpose.msra.mxu0 0.0
        %1977 = vmatpush.xpose.msra.mxu0 0.0
        %1978 = vmatpush.xpose.msra.mxu0 0.0
        %1979 = vmatpush.xpose.msra.mxu0 0.0
        %1980 = vmatpush.xpose.msra.mxu0 0.0
        %1981 = vmatpush.xpose.msra.mxu0 0.0
        %1982 = vmatpush.xpose.msra.mxu0 0.0
        %1983 = vmatpush.xpose.msra.mxu0 0.0
        %1984 = vmatpush.xpose.msra.mxu0 0.0
        %1985 = vmatpush.xpose.msra.mxu0 0.0
        %1986 = vmatpush.xpose.msra.mxu0 0.0
        %v1987 = vand.u32 %v1870, 4294901760
        %1988 = vmatpush.xpose.msra.mxu0 %v1987
        %v1989 = vand.u32 %v1867, 4294901760
        %1990 = vmatpush.xpose.msra.mxu0 %v1989
        %v1991 = vand.u32 %v1420, 4294901760
        %v1992 = vsub.f32 %v1420, %v1991
        %v1993 = vand.u32 %v1992, 4294901760
        %1994 = vmatmul.f32.gmra.mxu0 %v1993
        %v1995 = vpop.f32.mrf.mxu0
        %v1996 = vadd.f32 %v1966, %v1995
        %v1997 = vand.u32 %v1423, 4294901760
        %v1998 = vsub.f32 %v1423, %v1997
        %v1999 = vand.u32 %v1998, 4294901760
        %2000 = vmatmul.f32.gmra.mxu0 %v1999
        %v2001 = vpop.f32.mrf.mxu0
        %v2002 = vadd.f32 %v1971, %v2001
        %2003 = vdwg.mxu0
        %2004 = vmatpush.xpose.msra.mxu0 0.0
        %2005 = vmatpush.xpose.msra.mxu0 0.0
        %2006 = vmatpush.xpose.msra.mxu0 0.0
        %2007 = vmatpush.xpose.msra.mxu0 0.0
        %2008 = vmatpush.xpose.msra.mxu0 0.0
        %2009 = vmatpush.xpose.msra.mxu0 0.0
        %2010 = vmatpush.xpose.msra.mxu0 0.0
        %2011 = vmatpush.xpose.msra.mxu0 0.0
        %2012 = vmatpush.xpose.msra.mxu0 0.0
        %2013 = vmatpush.xpose.msra.mxu0 0.0
        %2014 = vmatpush.xpose.msra.mxu0 0.0
        %2015 = vmatpush.xpose.msra.mxu0 0.0
        %2016 = vmatpush.xpose.msra.mxu0 0.0
        %2017 = vmatpush.xpose.msra.mxu0 0.0
        %v2018 = vand.u32 %v1870, 4294901760
        %v2019 = vsub.f32 %v1870, %v2018
        %v2020 = vand.u32 %v2019, 4294901760
        %2021 = vmatpush.xpose.msra.mxu0 %v2020
        %v2022 = vand.u32 %v1867, 4294901760
        %v2023 = vsub.f32 %v1867, %v2022
        %v2024 = vand.u32 %v2023, 4294901760
        %2025 = vmatpush.xpose.msra.mxu0 %v2024
        %v2026 = vand.u32 %v1420, 4294901760
        %2027 = vmatmul.f32.gmra.mxu0 %v2026
        %v2028 = vpop.f32.mrf.mxu0
        %v2029 = vadd.f32 %v1996, %v2028
        %v2030 = vand.u32 %v1423, 4294901760
        %2031 = vmatmul.f32.gmra.mxu0 %v2030
        %v2032 = vpop.f32.mrf.mxu0
        %v2033 = vadd.f32 %v2002, %v2032
        %2034 = vdwg.mxu0
        %2035 = vmatpush.xpose.msra.mxu0 0.0
        %2036 = vmatpush.xpose.msra.mxu0 0.0
        %2037 = vmatpush.xpose.msra.mxu0 0.0
        %2038 = vmatpush.xpose.msra.mxu0 0.0
        %2039 = vmatpush.xpose.msra.mxu0 0.0
        %2040 = vmatpush.xpose.msra.mxu0 0.0
        %2041 = vmatpush.xpose.msra.mxu0 0.0
        %2042 = vmatpush.xpose.msra.mxu0 0.0
        %2043 = vmatpush.xpose.msra.mxu0 0.0
        %2044 = vmatpush.xpose.msra.mxu0 0.0
        %2045 = vmatpush.xpose.msra.mxu0 0.0
        %2046 = vmatpush.xpose.msra.mxu0 0.0
        %2047 = vmatpush.xpose.msra.mxu0 0.0
        %2048 = vmatpush.xpose.msra.mxu0 0.0
        %v2049 = vand.u32 %v1870, 4294901760
        %2050 = vmatpush.xpose.msra.mxu0 %v2049
        %v2051 = vand.u32 %v1867, 4294901760
        %2052 = vmatpush.xpose.msra.mxu0 %v2051
        %v2053 = vand.u32 %v1420, 4294901760
        %2054 = vmatmul.f32.gmra.mxu0 %v2053
        %v2055 = vpop.f32.mrf.mxu0
        %v2056 = vadd.f32 %v2029, %v2055
        %v2057 = vand.u32 %v1423, 4294901760
        %2058 = vmatmul.f32.gmra.mxu0 %v2057
        %v2059 = vpop.f32.mrf.mxu0
        %v2060 = vadd.f32 %v2033, %v2059
        %2061 = vdwg.mxu0
        %vm2062 = vcmp.eq.s32.totalorder %v1850, 4294967293
        %vm2063 = vcmp.eq.s32.totalorder %v1851, 4294967293
        %2064 = vset.pattern.permute.xlu0 1
        %2065 = vperm.xlu0 %2064, %v1839
        %v2066 = vpop.permute.xlu0 %2065
        %2068 = vset.pattern.permute.xlu0 1
        %2069 = vperm.xlu0 %2068, %v1843
        %v2070 = vpop.permute.xlu0 %2069
        %v2072 = vsel %vm2062, %v2066, 0.0
        %v2073 = vsel %vm2063, %v2070, 0.0
        %v2074 = vadd.f32 %v2056, %v2072
        %v2075 = vadd.f32 %v2060, %v2073
        %vm2076 = vcmp.eq.s32.totalorder %v1850, 4294967294
        %vm2077 = vcmp.eq.s32.totalorder %v1851, 4294967294
        %2078 = vset.pattern.permute.xlu0 2
        %2079 = vperm.xlu0 %2078, %v1839
        %v2080 = vpop.permute.xlu0 %2079
        %2082 = vset.pattern.permute.xlu0 2
        %2083 = vperm.xlu0 %2082, %v1843
        %v2084 = vpop.permute.xlu0 %2083
        %v2086 = vsel %vm2076, %v2080, 0.0
        %v2087 = vsel %vm2077, %v2084, 0.0
        %v2088 = vadd.f32 %v2074, %v2086
        %v2089 = vadd.f32 %v2075, %v2087
        %vm2090 = vcmp.eq.s32.totalorder %v1850, 4294967295
        %vm2091 = vcmp.eq.s32.totalorder %v1851, 4294967295
        %2092 = vset.pattern.permute.xlu0 3
        %2093 = vperm.xlu0 %2092, %v1839
        %v2094 = vpop.permute.xlu0 %2093
        %2096 = vset.pattern.permute.xlu0 3
        %2097 = vperm.xlu0 %2096, %v1843
        %v2098 = vpop.permute.xlu0 %2097
        %v2100 = vsel %vm2090, %v2094, 0.0
        %v2101 = vsel %vm2091, %v2098, 0.0
        %v2102 = vadd.f32 %v2088, %v2100
        %v2103 = vadd.f32 %v2089, %v2101
        %vm2104 = vcmp.eq.s32.totalorder %v1850, 0
        %vm2105 = vcmp.eq.s32.totalorder %v1851, 0
        %2106 = vset.pattern.permute.xlu0 4
        %2107 = vperm.xlu0 %2106, %v1839
        %v2108 = vpop.permute.xlu0 %2107
        %2110 = vset.pattern.permute.xlu0 4
        %2111 = vperm.xlu0 %2110, %v1843
        %v2112 = vpop.permute.xlu0 %2111
        %v2114 = vsel %vm2104, %v2108, 0.0
        %v2115 = vsel %vm2105, %v2112, 0.0
        %v2116 = vadd.f32 %v2102, %v2114
        %v2117 = vadd.f32 %v2103, %v2115
        %vm2118 = vcmp.eq.s32.totalorder %v1850, 1
        %vm2119 = vcmp.eq.s32.totalorder %v1851, 1
        %2120 = vset.pattern.permute.xlu0 5
        %2121 = vperm.xlu0 %2120, %v1839
        %v2122 = vpop.permute.xlu0 %2121
        %2124 = vset.pattern.permute.xlu0 5
        %2125 = vperm.xlu0 %2124, %v1843
        %v2126 = vpop.permute.xlu0 %2125
        %v2128 = vsel %vm2118, %v2122, 0.0
        %v2129 = vsel %vm2119, %v2126, 0.0
        %v2130 = vadd.f32 %v2116, %v2128
        %v2131 = vadd.f32 %v2117, %v2129
        %vm2132 = vcmp.eq.s32.totalorder %v1850, 2
        %vm2133 = vcmp.eq.s32.totalorder %v1851, 2
        %2134 = vset.pattern.permute.xlu0 6
        %2135 = vperm.xlu0 %2134, %v1839
        %v2136 = vpop.permute.xlu0 %2135
        %2138 = vset.pattern.permute.xlu0 6
        %2139 = vperm.xlu0 %2138, %v1843
        %v2140 = vpop.permute.xlu0 %2139
        %v2142 = vsel %vm2132, %v2136, 0.0
        %v2143 = vsel %vm2133, %v2140, 0.0
        %v2144 = vadd.f32 %v2130, %v2142
        %v2145 = vadd.f32 %v2131, %v2143
        %vm2146 = vcmp.eq.s32.totalorder %v1850, 3
        %vm2147 = vcmp.eq.s32.totalorder %v1851, 3
        %2148 = vset.pattern.permute.xlu0 7
        %2149 = vperm.xlu0 %2148, %v1839
        %v2150 = vpop.permute.xlu0 %2149
        %2152 = vset.pattern.permute.xlu0 7
        %2153 = vperm.xlu0 %2152, %v1843
        %v2154 = vpop.permute.xlu0 %2153
        %v2156 = vsel %vm2146, %v2150, 0.0
        %v2157 = vsel %vm2147, %v2154, 0.0
        %v2158 = vadd.f32 %v2144, %v2156
        %v2159 = vadd.f32 %v2145, %v2157
        %vm2160 = vcmp.eq.s32.totalorder %v1850, 4
        %vm2161 = vcmp.eq.s32.totalorder %v1851, 4
        %2162 = vset.pattern.permute.xlu0 8
        %2163 = vperm.xlu0 %2162, %v1839
        %v2164 = vpop.permute.xlu0 %2163
        %2166 = vset.pattern.permute.xlu0 8
        %2167 = vperm.xlu0 %2166, %v1843
        %v2168 = vpop.permute.xlu0 %2167
        %v2170 = vsel %vm2160, %v2164, 0.0
        %v2171 = vsel %vm2161, %v2168, 0.0
        %v2172 = vadd.f32 %v2158, %v2170
        %v2173 = vadd.f32 %v2159, %v2171
        %v2174 = vld [vmem:[#allocation2] sm:$0xff]
        %v2175 = vld [vmem:[#allocation2 + $0x8] sm:$0xff]
        %vm2176 = vcmp.eq.f32.partialorder %v2174, -10000.0
        %vm2177 = vcmp.eq.f32.partialorder %v2175, -10000.0
        %v2178 = vmul.f32 %v2172, 0.35355338
        %v2179 = vmul.f32 %v2173, 0.35355338
        %v2180 = vadd.f32 %v2178, %v2174
        %v2181 = vadd.f32 %v2179, %v2175
        %v2182 = vsel %vm2176, -10000.0, %v2180
        %v2183 = vsel %vm2177, -10000.0, %v2181
        %vm2184 = vcmask 130048
        %v2185 = vsel %vm2184, %v2182, -inf
        %2186 = vmax.xlane.f32.xlu0 %v2185
        %v2187 = vpop.xlane.xlu0 %2186
        %v2188 = vsel %vm2184, %v2183, -inf
        %2189 = vmax.xlane.f32.xlu0 %v2188
        %v2190 = vpop.xlane.xlu0 %2189
        %v2191 = vsub.f32 %v2182, %v2187
        %v2192 = vsub.f32 %v2183, %v2190
        %v2193 = vmul.f32 %v2191, 1.442695
        %v2194 = vpow.pop %v2193
        %v2195 = vmul.f32 %v2192, 1.442695
        %v2196 = vpow.pop %v2195
        %v2197 = vsel %vm2184, %v2194, 0.0
        %2198 = vadd.xlane.f32.xlu0 %v2197
        %v2199 = vpop.xlane.xlu0 %2198
        %v2200 = vsel %vm2184, %v2196, 0.0
        %2201 = vadd.xlane.f32.xlu0 %v2200
        %v2202 = vpop.xlane.xlu0 %2201
        %v2203 = vrcp.pop %v2199
        %v2204 = vmul.f32 %v2199, %v2203
        %v2205 = vsub.f32 1.0, %v2204
        %v2206 = vmul.f32 %v2203, %v2205
        %v2207 = vadd.f32 %v2203, %v2206
        %vm2208 = vweird.f32 %v2199
        %vm2209 = vweird.f32 %v2203
        %vm2210 = vmor %vm2208, %vm2209
        %v2211 = vsel %vm2210, %v2203, %v2207
        %v2212 = vand.u32 2147483647, %v2199
        %vm2213 = vcmp.eq.f32.partialorder %v2212, 8.507059e+37
        %v2214 = vand.u32 %v2199, 2147483648
        %v2215 = vor.u32 1.1754944e-38, %v2214
        %v2216 = vsel %vm2213, %v2215, %v2211
        %v2217 = vmul.f32 1.0, %v2216
        %v2218 = vrcp.pop %v2202
        %v2219 = vmul.f32 %v2202, %v2218
        %v2220 = vsub.f32 1.0, %v2219
        %v2221 = vmul.f32 %v2218, %v2220
        %v2222 = vadd.f32 %v2218, %v2221
        %vm2223 = vweird.f32 %v2202
        %vm2224 = vweird.f32 %v2218
        %vm2225 = vmor %vm2223, %vm2224
        %v2226 = vsel %vm2225, %v2218, %v2222
        %v2227 = vand.u32 2147483647, %v2202
        %vm2228 = vcmp.eq.f32.partialorder %v2227, 8.507059e+37
        %v2229 = vand.u32 %v2202, 2147483648
        %v2230 = vor.u32 1.1754944e-38, %v2229
        %v2231 = vsel %vm2228, %v2230, %v2226
        %v2232 = vmul.f32 1.0, %v2231
        %v2233 = vld [vmem:[%s13] sm:$0xff]
        %v2234 = vld [vmem:[%s13 + $0x8] sm:$0x1]
        %v2235 = vsel %vm1852, %v2194, 0.0
        %v2236 = vsel %vm1853, %v2196, 0.0
        %v2237 = vsel %vm2184, %v2235, 0.0
        %2238 = vadd.xlane.f32.xlu0 %v2237
        %v2239 = vpop.xlane.xlu0 %2238
        %v2240 = vsel %vm2184, %v2236, 0.0
        %2241 = vadd.xlane.f32.xlu0 %v2240
        %v2242 = vpop.xlane.xlu0 %2241
        %v2243 = vperm.slane %v2233, 0
        %v2244 = vmul.f32 %v2239, %v2243
        %v2245 = vmul.f32 %v2242, %v2243
        %v2247 = vsel %vm2184, %v2194, 0
        %v2250 = vsel %vm2184, %v2196, 0
        %2252 = vmatpush.msra.mxu0 0.0
        %2253 = vmatpush.msra.mxu0 0.0
        %2254 = vmatpush.msra.mxu0 0.0
        %2255 = vmatpush.msra.mxu0 0.0
        %2256 = vmatpush.msra.mxu0 0.0
        %2257 = vmatpush.msra.mxu0 0.0
        %2258 = vmatpush.msra.mxu0 0.0
        %2259 = vmatpush.msra.mxu0 0.0
        %2260 = vmatpush.msra.mxu0 0.0
        %2261 = vmatpush.msra.mxu0 0.0
        %2262 = vmatpush.msra.mxu0 0.0
        %2263 = vmatpush.msra.mxu0 0.0
        %2264 = vmatpush.msra.mxu0 0.0
        %2265 = vmatpush.msra.mxu0 0.0
        %v2266 = vand.u32 %v1401, 4294901760
        %2267 = vmatpush.msra.mxu0 %v2266
        %v2268 = vand.u32 %v1400, 4294901760
        %2269 = vmatpush.msra.mxu0 %v2268
        %v2270 = vand.u32 %v2247, 4294901760
        %v2271 = vsub.f32 %v2247, %v2270
        %v2272 = vand.u32 %v2271, 4294901760
        %v2273 = vsub.f32 %v2271, %v2272
        %v2274 = vand.u32 %v2273, 4294901760
        %2275 = vmatmul.f32.gmra.mxu0 %v2274
        %v2276 = vpop.f32.mrf.mxu0
        %v2277 = vadd.f32 %v2244, %v2276
        %v2278 = vand.u32 %v2250, 4294901760
        %v2279 = vsub.f32 %v2250, %v2278
        %v2280 = vand.u32 %v2279, 4294901760
        %v2281 = vsub.f32 %v2279, %v2280
        %v2282 = vand.u32 %v2281, 4294901760
        %2283 = vmatmul.f32.gmra.mxu0 %v2282
        %v2284 = vpop.f32.mrf.mxu0
        %v2285 = vadd.f32 %v2245, %v2284
        %2286 = vdwg.mxu0
        %2287 = vmatpush.msra.mxu0 0.0
        %2288 = vmatpush.msra.mxu0 0.0
        %2289 = vmatpush.msra.mxu0 0.0
        %2290 = vmatpush.msra.mxu0 0.0
        %2291 = vmatpush.msra.mxu0 0.0
        %2292 = vmatpush.msra.mxu0 0.0
        %2293 = vmatpush.msra.mxu0 0.0
        %2294 = vmatpush.msra.mxu0 0.0
        %2295 = vmatpush.msra.mxu0 0.0
        %2296 = vmatpush.msra.mxu0 0.0
        %2297 = vmatpush.msra.mxu0 0.0
        %2298 = vmatpush.msra.mxu0 0.0
        %2299 = vmatpush.msra.mxu0 0.0
        %2300 = vmatpush.msra.mxu0 0.0
        %v2301 = vand.u32 %v1401, 4294901760
        %v2302 = vsub.f32 %v1401, %v2301
        %v2303 = vand.u32 %v2302, 4294901760
        %v2304 = vsub.f32 %v2302, %v2303
        %v2305 = vand.u32 %v2304, 4294901760
        %2306 = vmatpush.msra.mxu0 %v2305
        %v2307 = vand.u32 %v1400, 4294901760
        %v2308 = vsub.f32 %v1400, %v2307
        %v2309 = vand.u32 %v2308, 4294901760
        %v2310 = vsub.f32 %v2308, %v2309
        %v2311 = vand.u32 %v2310, 4294901760
        %2312 = vmatpush.msra.mxu0 %v2311
        %v2313 = vand.u32 %v2247, 4294901760
        %2314 = vmatmul.f32.gmra.mxu0 %v2313
        %v2315 = vpop.f32.mrf.mxu0
        %v2316 = vadd.f32 %v2277, %v2315
        %v2317 = vand.u32 %v2250, 4294901760
        %2318 = vmatmul.f32.gmra.mxu0 %v2317
        %v2319 = vpop.f32.mrf.mxu0
        %v2320 = vadd.f32 %v2285, %v2319
        %2321 = vdwg.mxu0
        %2322 = vmatpush.msra.mxu0 0.0
        %2323 = vmatpush.msra.mxu0 0.0
        %2324 = vmatpush.msra.mxu0 0.0
        %2325 = vmatpush.msra.mxu0 0.0
        %2326 = vmatpush.msra.mxu0 0.0
        %2327 = vmatpush.msra.mxu0 0.0
        %2328 = vmatpush.msra.mxu0 0.0
        %2329 = vmatpush.msra.mxu0 0.0
        %2330 = vmatpush.msra.mxu0 0.0
        %2331 = vmatpush.msra.mxu0 0.0
        %2332 = vmatpush.msra.mxu0 0.0
        %2333 = vmatpush.msra.mxu0 0.0
        %2334 = vmatpush.msra.mxu0 0.0
        %2335 = vmatpush.msra.mxu0 0.0
        %v2336 = vand.u32 %v1401, 4294901760
        %v2337 = vsub.f32 %v1401, %v2336
        %2338 = vmatpush.msra.mxu0 %v2337
        %v2339 = vand.u32 %v1400, 4294901760
        %v2340 = vsub.f32 %v1400, %v2339
        %2341 = vmatpush.msra.mxu0 %v2340
        %v2342 = vand.u32 %v2247, 4294901760
        %v2343 = vsub.f32 %v2247, %v2342
        %2344 = vmatmul.f32.gmra.mxu0 %v2343
        %v2345 = vpop.f32.mrf.mxu0
        %v2346 = vadd.f32 %v2316, %v2345
        %v2347 = vand.u32 %v2250, 4294901760
        %v2348 = vsub.f32 %v2250, %v2347
        %2349 = vmatmul.f32.gmra.mxu0 %v2348
        %v2350 = vpop.f32.mrf.mxu0
        %v2351 = vadd.f32 %v2320, %v2350
        %2352 = vdwg.mxu0
        %2353 = vmatpush.msra.mxu0 0.0
        %2354 = vmatpush.msra.mxu0 0.0
        %2355 = vmatpush.msra.mxu0 0.0
        %2356 = vmatpush.msra.mxu0 0.0
        %2357 = vmatpush.msra.mxu0 0.0
        %2358 = vmatpush.msra.mxu0 0.0
        %2359 = vmatpush.msra.mxu0 0.0
        %2360 = vmatpush.msra.mxu0 0.0
        %2361 = vmatpush.msra.mxu0 0.0
        %2362 = vmatpush.msra.mxu0 0.0
        %2363 = vmatpush.msra.mxu0 0.0
        %2364 = vmatpush.msra.mxu0 0.0
        %2365 = vmatpush.msra.mxu0 0.0
        %2366 = vmatpush.msra.mxu0 0.0
        %v2367 = vand.u32 %v1401, 4294901760
        %2368 = vmatpush.msra.mxu0 %v2367
        %v2369 = vand.u32 %v1400, 4294901760
        %2370 = vmatpush.msra.mxu0 %v2369
        %v2371 = vand.u32 %v2247, 4294901760
        %v2372 = vsub.f32 %v2247, %v2371
        %v2373 = vand.u32 %v2372, 4294901760
        %2374 = vmatmul.f32.gmra.mxu0 %v2373
        %v2375 = vpop.f32.mrf.mxu0
        %v2376 = vadd.f32 %v2346, %v2375
        %v2377 = vand.u32 %v2250, 4294901760
        %v2378 = vsub.f32 %v2250, %v2377
        %v2379 = vand.u32 %v2378, 4294901760
        %2380 = vmatmul.f32.gmra.mxu0 %v2379
        %v2381 = vpop.f32.mrf.mxu0
        %v2382 = vadd.f32 %v2351, %v2381
        %2383 = vdwg.mxu0
        %2384 = vmatpush.msra.mxu0 0.0
        %2385 = vmatpush.msra.mxu0 0.0
        %2386 = vmatpush.msra.mxu0 0.0
        %2387 = vmatpush.msra.mxu0 0.0
        %2388 = vmatpush.msra.mxu0 0.0
        %2389 = vmatpush.msra.mxu0 0.0
        %2390 = vmatpush.msra.mxu0 0.0
        %2391 = vmatpush.msra.mxu0 0.0
        %2392 = vmatpush.msra.mxu0 0.0
        %2393 = vmatpush.msra.mxu0 0.0
        %2394 = vmatpush.msra.mxu0 0.0
        %2395 = vmatpush.msra.mxu0 0.0
        %2396 = vmatpush.msra.mxu0 0.0
        %2397 = vmatpush.msra.mxu0 0.0
        %v2398 = vand.u32 %v1401, 4294901760
        %v2399 = vsub.f32 %v1401, %v2398
        %v2400 = vand.u32 %v2399, 4294901760
        %2401 = vmatpush.msra.mxu0 %v2400
        %v2402 = vand.u32 %v1400, 4294901760
        %v2403 = vsub.f32 %v1400, %v2402
        %v2404 = vand.u32 %v2403, 4294901760
        %2405 = vmatpush.msra.mxu0 %v2404
        %v2406 = vand.u32 %v2247, 4294901760
        %2407 = vmatmul.f32.gmra.mxu0 %v2406
        %v2408 = vpop.f32.mrf.mxu0
        %v2409 = vadd.f32 %v2376, %v2408
        %v2410 = vand.u32 %v2250, 4294901760
        %2411 = vmatmul.f32.gmra.mxu0 %v2410
        %v2412 = vpop.f32.mrf.mxu0
        %v2413 = vadd.f32 %v2382, %v2412
        %2414 = vdwg.mxu0
        %2415 = vmatpush.msra.mxu0 0.0
        %2416 = vmatpush.msra.mxu0 0.0
        %2417 = vmatpush.msra.mxu0 0.0
        %2418 = vmatpush.msra.mxu0 0.0
        %2419 = vmatpush.msra.mxu0 0.0
        %2420 = vmatpush.msra.mxu0 0.0
        %2421 = vmatpush.msra.mxu0 0.0
        %2422 = vmatpush.msra.mxu0 0.0
        %2423 = vmatpush.msra.mxu0 0.0
        %2424 = vmatpush.msra.mxu0 0.0
        %2425 = vmatpush.msra.mxu0 0.0
        %2426 = vmatpush.msra.mxu0 0.0
        %2427 = vmatpush.msra.mxu0 0.0
        %2428 = vmatpush.msra.mxu0 0.0
        %v2429 = vand.u32 %v1401, 4294901760
        %2430 = vmatpush.msra.mxu0 %v2429
        %v2431 = vand.u32 %v1400, 4294901760
        %2432 = vmatpush.msra.mxu0 %v2431
        %v2433 = vand.u32 %v2247, 4294901760
        %2434 = vmatmul.f32.gmra.mxu0 %v2433
        %v2435 = vpop.f32.mrf.mxu0
        %v2436 = vadd.f32 %v2409, %v2435
        %v2437 = vand.u32 %v2250, 4294901760
        %2438 = vmatmul.f32.gmra.mxu0 %v2437
        %v2439 = vpop.f32.mrf.mxu0
        %v2440 = vadd.f32 %v2413, %v2439
        %2441 = vdwg.mxu0
        %v2442 = vsel %vm2062, %v2194, 0.0
        %v2443 = vsel %vm2063, %v2196, 0.0
        %v2444 = vsel %vm2184, %v2442, 0.0
        %2445 = vadd.xlane.f32.xlu0 %v2444
        %v2446 = vpop.xlane.xlu0 %2445
        %v2447 = vsel %vm2184, %v2443, 0.0
        %2448 = vadd.xlane.f32.xlu0 %v2447
        %v2449 = vpop.xlane.xlu0 %2448
        %v2450 = vperm.slane %v2233, 1
        %v2451 = vmul.f32 %v2446, %v2450
        %v2452 = vmul.f32 %v2449, %v2450
        %v2453 = vadd.f32 %v2436, %v2451
        %v2454 = vadd.f32 %v2440, %v2452
        %v2455 = vsel %vm2076, %v2194, 0.0
        %v2456 = vsel %vm2077, %v2196, 0.0
        %v2457 = vsel %vm2184, %v2455, 0.0
        %2458 = vadd.xlane.f32.xlu0 %v2457
        %v2459 = vpop.xlane.xlu0 %2458
        %v2460 = vsel %vm2184, %v2456, 0.0
        %2461 = vadd.xlane.f32.xlu0 %v2460
        %v2462 = vpop.xlane.xlu0 %2461
        %v2463 = vperm.slane %v2233, 2
        %v2464 = vmul.f32 %v2459, %v2463
        %v2465 = vmul.f32 %v2462, %v2463
        %v2466 = vadd.f32 %v2453, %v2464
        %v2467 = vadd.f32 %v2454, %v2465
        %v2468 = vsel %vm2090, %v2194, 0.0
        %v2469 = vsel %vm2091, %v2196, 0.0
        %v2470 = vsel %vm2184, %v2468, 0.0
        %2471 = vadd.xlane.f32.xlu0 %v2470
        %v2472 = vpop.xlane.xlu0 %2471
        %v2473 = vsel %vm2184, %v2469, 0.0
        %2474 = vadd.xlane.f32.xlu0 %v2473
        %v2475 = vpop.xlane.xlu0 %2474
        %v2476 = vperm.slane %v2233, 3
        %v2477 = vmul.f32 %v2472, %v2476
        %v2478 = vmul.f32 %v2475, %v2476
        %v2479 = vadd.f32 %v2466, %v2477
        %v2480 = vadd.f32 %v2467, %v2478
        %v2481 = vsel %vm2104, %v2194, 0.0
        %v2482 = vsel %vm2105, %v2196, 0.0
        %v2483 = vsel %vm2184, %v2481, 0.0
        %2484 = vadd.xlane.f32.xlu0 %v2483
        %v2485 = vpop.xlane.xlu0 %2484
        %v2486 = vsel %vm2184, %v2482, 0.0
        %2487 = vadd.xlane.f32.xlu0 %v2486
        %v2488 = vpop.xlane.xlu0 %2487
        %v2489 = vperm.slane %v2233, 4
        %v2490 = vmul.f32 %v2485, %v2489
        %v2491 = vmul.f32 %v2488, %v2489
        %v2492 = vadd.f32 %v2479, %v2490
        %v2493 = vadd.f32 %v2480, %v2491
        %v2494 = vsel %vm2118, %v2194, 0.0
        %v2495 = vsel %vm2119, %v2196, 0.0
        %v2496 = vsel %vm2184, %v2494, 0.0
        %2497 = vadd.xlane.f32.xlu0 %v2496
        %v2498 = vpop.xlane.xlu0 %2497
        %v2499 = vsel %vm2184, %v2495, 0.0
        %2500 = vadd.xlane.f32.xlu0 %v2499
        %v2501 = vpop.xlane.xlu0 %2500
        %v2502 = vperm.slane %v2233, 5
        %v2503 = vmul.f32 %v2498, %v2502
        %v2504 = vmul.f32 %v2501, %v2502
        %v2505 = vadd.f32 %v2492, %v2503
        %v2506 = vadd.f32 %v2493, %v2504
        %v2507 = vsel %vm2132, %v2194, 0.0
        %v2508 = vsel %vm2133, %v2196, 0.0
        %v2509 = vsel %vm2184, %v2507, 0.0
        %2510 = vadd.xlane.f32.xlu0 %v2509
        %v2511 = vpop.xlane.xlu0 %2510
        %v2512 = vsel %vm2184, %v2508, 0.0
        %2513 = vadd.xlane.f32.xlu0 %v2512
        %v2514 = vpop.xlane.xlu0 %2513
        %v2515 = vperm.slane %v2233, 6
        %v2516 = vmul.f32 %v2511, %v2515
        %v2517 = vmul.f32 %v2514, %v2515
        %v2518 = vadd.f32 %v2505, %v2516
        %v2519 = vadd.f32 %v2506, %v2517
        %v2520 = vsel %vm2146, %v2194, 0.0
        %v2521 = vsel %vm2147, %v2196, 0.0
        %v2522 = vsel %vm2184, %v2520, 0.0
        %2523 = vadd.xlane.f32.xlu0 %v2522
        %v2524 = vpop.xlane.xlu0 %2523
        %v2525 = vsel %vm2184, %v2521, 0.0
        %2526 = vadd.xlane.f32.xlu0 %v2525
        %v2527 = vpop.xlane.xlu0 %2526
        %v2528 = vperm.slane %v2233, 7
        %v2529 = vmul.f32 %v2524, %v2528
        %v2530 = vmul.f32 %v2527, %v2528
        %v2531 = vadd.f32 %v2518, %v2529
        %v2532 = vadd.f32 %v2519, %v2530
        %v2533 = vsel %vm2160, %v2194, 0.0
        %v2534 = vsel %vm2161, %v2196, 0.0
        %v2535 = vsel %vm2184, %v2533, 0.0
        %2536 = vadd.xlane.f32.xlu0 %v2535
        %v2537 = vpop.xlane.xlu0 %2536
        %v2538 = vsel %vm2184, %v2534, 0.0
        %2539 = vadd.xlane.f32.xlu0 %v2538
        %v2540 = vpop.xlane.xlu0 %2539
        %v2541 = vperm.slane %v2234, 0
        %v2542 = vmul.f32 %v2537, %v2541
        %v2543 = vmul.f32 %v2540, %v2541
        %v2544 = vadd.f32 %v2531, %v2542
        %v2545 = vadd.f32 %v2532, %v2543
        %v2546 = vmul.f32 %v2544, %v2217
        %v2547 = vmul.f32 %v2545, %v2232
        %s2548 = scalar_lea.vmem [#allocation6], %s1392
        %2549 = vst.msk [vmem:[%s2548] sm:$0xff] %vm1418, %v2546
        %2550 = vst.msk [vmem:[%s2548 + $0x8] sm:$0xff] %vm1418, %v2547
        %p2551 = scmp.eq.s32.totalorder %s34, 3
        // Predicated region
        $region85: #{tpu_custom_call.1} parent=79 // pred_check
          %p2552 = pneg %p2551
        $region86: #{tpu_custom_call.1} parent=79 // pred_check_branch
          %2554 = sbr.rel (%p2552) target = $region88
        $region87: #{tpu_custom_call.1} parent=79 // pred_region
          %v2555 = vld [vmem:[#allocation6] sm:$0xff]
          %v2556 = vld [vmem:[#allocation6 + $0x8] sm:$0xff]
          %s2557 = scalar_lea.vmem [#allocation6], 16
          %v2558 = vld [vmem:[%s2557] sm:$0xff]
          %v2559 = vld [vmem:[%s2557 + $0x8] sm:$0xff]
          %s2560 = scalar_lea.vmem [#allocation6], 32
          %v2561 = vld [vmem:[%s2560] sm:$0xff]
          %v2562 = vld [vmem:[%s2560 + $0x8] sm:$0xff]
          %s2563 = scalar_lea.vmem [#allocation6], 48
          %v2564 = vld [vmem:[%s2563] sm:$0xff]
          %v2565 = vld [vmem:[%s2563 + $0x8] sm:$0xff]
          %2568 = vrot.lane.b32.xlu0 %v2558, 8
          %v2569 = vpop.permute.xlu0 %2568
          %2570 = vrot.lane.b32.xlu0 %v2559, 8
          %v2571 = vpop.permute.xlu0 %2570
          %2576 = vrot.lane.b32.xlu0 %v2561, 16
          %v2577 = vpop.permute.xlu0 %2576
          %2578 = vrot.lane.b32.xlu0 %v2562, 16
          %v2579 = vpop.permute.xlu0 %2578
          %2584 = vrot.lane.b32.xlu0 %v2564, 24
          %v2585 = vpop.permute.xlu0 %2584
          %2586 = vrot.lane.b32.xlu0 %v2565, 24
          %v2587 = vpop.permute.xlu0 %2586
          %v2590 = vsel %vm1418, %v2555, %v2569
          %v2591 = vsel %vm1418, %v2556, %v2571
          %v2592 = vsel %vm2184, %v2590, %v2577
          %v2593 = vsel %vm2184, %v2591, %v2579
          %vm2594 = vcmask 195584
          %v2595 = vsel %vm2594, %v2592, %v2585
          %v2596 = vsel %vm2594, %v2593, %v2587
          %v2597 = vld [vmem:[%s10] sm:$0xff]
          %v2598 = vld [vmem:[%s10 + $0x8] sm:$0xff]
          %v2599 = vld [vmem:[%s10 + $0x10] sm:$0xff]
          %v2600 = vld [vmem:[%s10 + $0x18] sm:$0xff]
          %v2601 = vld [vmem:[%s11] sm:$0x1]
          %v2603 = vperm.slane %v2601, 0
          %vm2605 = vcmask 261120
          %v2607 = vsel %vm2605, %v2595, 0
          %v2610 = vsel %vm2605, %v2596, 0
          %2612 = vmatpush.msra.mxu0 0.0
          %2613 = vmatpush.msra.mxu0 0.0
          %2614 = vmatpush.msra.mxu0 0.0
          %2615 = vmatpush.msra.mxu0 0.0
          %2616 = vmatpush.msra.mxu0 0.0
          %2617 = vmatpush.msra.mxu0 0.0
          %2618 = vmatpush.msra.mxu0 0.0
          %2619 = vmatpush.msra.mxu0 0.0
          %2620 = vmatpush.msra.mxu0 0.0
          %2621 = vmatpush.msra.mxu0 0.0
          %2622 = vmatpush.msra.mxu0 0.0
          %2623 = vmatpush.msra.mxu0 0.0
          %v2624 = vand.u32 %v2600, 4294901760
          %2625 = vmatpush.msra.mxu0 %v2624
          %v2626 = vand.u32 %v2599, 4294901760
          %2627 = vmatpush.msra.mxu0 %v2626
          %v2628 = vand.u32 %v2598, 4294901760
          %2629 = vmatpush.msra.mxu0 %v2628
          %v2630 = vand.u32 %v2597, 4294901760
          %2631 = vmatpush.msra.mxu0 %v2630
          %v2632 = vand.u32 %v2607, 4294901760
          %v2633 = vsub.f32 %v2607, %v2632
          %v2634 = vand.u32 %v2633, 4294901760
          %v2635 = vsub.f32 %v2633, %v2634
          %v2636 = vand.u32 %v2635, 4294901760
          %2637 = vmatmul.f32.gmra.mxu0 %v2636
          %v2638 = vpop.f32.mrf.mxu0
          %v2639 = vadd.f32 %v2603, %v2638
          %v2640 = vand.u32 %v2610, 4294901760
          %v2641 = vsub.f32 %v2610, %v2640
          %v2642 = vand.u32 %v2641, 4294901760
          %v2643 = vsub.f32 %v2641, %v2642
          %v2644 = vand.u32 %v2643, 4294901760
          %2645 = vmatmul.f32.gmra.mxu0 %v2644
          %v2646 = vpop.f32.mrf.mxu0
          %v2647 = vadd.f32 %v2603, %v2646
          %2648 = vdwg.mxu0
          %2649 = vmatpush.msra.mxu0 0.0
          %2650 = vmatpush.msra.mxu0 0.0
          %2651 = vmatpush.msra.mxu0 0.0
          %2652 = vmatpush.msra.mxu0 0.0
          %2653 = vmatpush.msra.mxu0 0.0
          %2654 = vmatpush.msra.mxu0 0.0
          %2655 = vmatpush.msra.mxu0 0.0
          %2656 = vmatpush.msra.mxu0 0.0
          %2657 = vmatpush.msra.mxu0 0.0
          %2658 = vmatpush.msra.mxu0 0.0
          %2659 = vmatpush.msra.mxu0 0.0
          %2660 = vmatpush.msra.mxu0 0.0
          %v2661 = vand.u32 %v2600, 4294901760
          %v2662 = vsub.f32 %v2600, %v2661
          %v2663 = vand.u32 %v2662, 4294901760
          %v2664 = vsub.f32 %v2662, %v2663
          %v2665 = vand.u32 %v2664, 4294901760
          %2666 = vmatpush.msra.mxu0 %v2665
          %v2667 = vand.u32 %v2599, 4294901760
          %v2668 = vsub.f32 %v2599, %v2667
          %v2669 = vand.u32 %v2668, 4294901760
          %v2670 = vsub.f32 %v2668, %v2669
          %v2671 = vand.u32 %v2670, 4294901760
          %2672 = vmatpush.msra.mxu0 %v2671
          %v2673 = vand.u32 %v2598, 4294901760
          %v2674 = vsub.f32 %v2598, %v2673
          %v2675 = vand.u32 %v2674, 4294901760
          %v2676 = vsub.f32 %v2674, %v2675
          %v2677 = vand.u32 %v2676, 4294901760
          %2678 = vmatpush.msra.mxu0 %v2677
          %v2679 = vand.u32 %v2597, 4294901760
          %v2680 = vsub.f32 %v2597, %v2679
          %v2681 = vand.u32 %v2680, 4294901760
          %v2682 = vsub.f32 %v2680, %v2681
          %v2683 = vand.u32 %v2682, 4294901760
          %2684 = vmatpush.msra.mxu0 %v2683
          %v2685 = vand.u32 %v2607, 4294901760
          %2686 = vmatmul.f32.gmra.mxu0 %v2685
          %v2687 = vpop.f32.mrf.mxu0
          %v2688 = vadd.f32 %v2639, %v2687
          %v2689 = vand.u32 %v2610, 4294901760
          %2690 = vmatmul.f32.gmra.mxu0 %v2689
          %v2691 = vpop.f32.mrf.mxu0
          %v2692 = vadd.f32 %v2647, %v2691
          %2693 = vdwg.mxu0
          %2694 = vmatpush.msra.mxu0 0.0
          %2695 = vmatpush.msra.mxu0 0.0
          %2696 = vmatpush.msra.mxu0 0.0
          %2697 = vmatpush.msra.mxu0 0.0
          %2698 = vmatpush.msra.mxu0 0.0
          %2699 = vmatpush.msra.mxu0 0.0
          %2700 = vmatpush.msra.mxu0 0.0
          %2701 = vmatpush.msra.mxu0 0.0
          %2702 = vmatpush.msra.mxu0 0.0
          %2703 = vmatpush.msra.mxu0 0.0
          %2704 = vmatpush.msra.mxu0 0.0
          %2705 = vmatpush.msra.mxu0 0.0
          %v2706 = vand.u32 %v2600, 4294901760
          %v2707 = vsub.f32 %v2600, %v2706
          %2708 = vmatpush.msra.mxu0 %v2707
          %v2709 = vand.u32 %v2599, 4294901760
          %v2710 = vsub.f32 %v2599, %v2709
          %2711 = vmatpush.msra.mxu0 %v2710
          %v2712 = vand.u32 %v2598, 4294901760
          %v2713 = vsub.f32 %v2598, %v2712
          %2714 = vmatpush.msra.mxu0 %v2713
          %v2715 = vand.u32 %v2597, 4294901760
          %v2716 = vsub.f32 %v2597, %v2715
          %2717 = vmatpush.msra.mxu0 %v2716
          %v2718 = vand.u32 %v2607, 4294901760
          %v2719 = vsub.f32 %v2607, %v2718
          %2720 = vmatmul.f32.gmra.mxu0 %v2719
          %v2721 = vpop.f32.mrf.mxu0
          %v2722 = vadd.f32 %v2688, %v2721
          %v2723 = vand.u32 %v2610, 4294901760
          %v2724 = vsub.f32 %v2610, %v2723
          %2725 = vmatmul.f32.gmra.mxu0 %v2724
          %v2726 = vpop.f32.mrf.mxu0
          %v2727 = vadd.f32 %v2692, %v2726
          %2728 = vdwg.mxu0
          %2729 = vmatpush.msra.mxu0 0.0
          %2730 = vmatpush.msra.mxu0 0.0
          %2731 = vmatpush.msra.mxu0 0.0
          %2732 = vmatpush.msra.mxu0 0.0
          %2733 = vmatpush.msra.mxu0 0.0
          %2734 = vmatpush.msra.mxu0 0.0
          %2735 = vmatpush.msra.mxu0 0.0
          %2736 = vmatpush.msra.mxu0 0.0
          %2737 = vmatpush.msra.mxu0 0.0
          %2738 = vmatpush.msra.mxu0 0.0
          %2739 = vmatpush.msra.mxu0 0.0
          %2740 = vmatpush.msra.mxu0 0.0
          %v2741 = vand.u32 %v2600, 4294901760
          %2742 = vmatpush.msra.mxu0 %v2741
          %v2743 = vand.u32 %v2599, 4294901760
          %2744 = vmatpush.msra.mxu0 %v2743
          %v2745 = vand.u32 %v2598, 4294901760
          %2746 = vmatpush.msra.mxu0 %v2745
          %v2747 = vand.u32 %v2597, 4294901760
          %2748 = vmatpush.msra.mxu0 %v2747
          %v2749 = vand.u32 %v2607, 4294901760
          %v2750 = vsub.f32 %v2607, %v2749
          %v2751 = vand.u32 %v2750, 4294901760
          %2752 = vmatmul.f32.gmra.mxu0 %v2751
          %v2753 = vpop.f32.mrf.mxu0
          %v2754 = vadd.f32 %v2722, %v2753
          %v2755 = vand.u32 %v2610, 4294901760
          %v2756 = vsub.f32 %v2610, %v2755
          %v2757 = vand.u32 %v2756, 4294901760
          %2758 = vmatmul.f32.gmra.mxu0 %v2757
          %v2759 = vpop.f32.mrf.mxu0
          %v2760 = vadd.f32 %v2727, %v2759
          %2761 = vdwg.mxu0
          %2762 = vmatpush.msra.mxu0 0.0
          %2763 = vmatpush.msra.mxu0 0.0
          %2764 = vmatpush.msra.mxu0 0.0
          %2765 = vmatpush.msra.mxu0 0.0
          %2766 = vmatpush.msra.mxu0 0.0
          %2767 = vmatpush.msra.mxu0 0.0
          %2768 = vmatpush.msra.mxu0 0.0
          %2769 = vmatpush.msra.mxu0 0.0
          %2770 = vmatpush.msra.mxu0 0.0
          %2771 = vmatpush.msra.mxu0 0.0
          %2772 = vmatpush.msra.mxu0 0.0
          %2773 = vmatpush.msra.mxu0 0.0
          %v2774 = vand.u32 %v2600, 4294901760
          %v2775 = vsub.f32 %v2600, %v2774
          %v2776 = vand.u32 %v2775, 4294901760
          %2777 = vmatpush.msra.mxu0 %v2776
          %v2778 = vand.u32 %v2599, 4294901760
          %v2779 = vsub.f32 %v2599, %v2778
          %v2780 = vand.u32 %v2779, 4294901760
          %2781 = vmatpush.msra.mxu0 %v2780
          %v2782 = vand.u32 %v2598, 4294901760
          %v2783 = vsub.f32 %v2598, %v2782
          %v2784 = vand.u32 %v2783, 4294901760
          %2785 = vmatpush.msra.mxu0 %v2784
          %v2786 = vand.u32 %v2597, 4294901760
          %v2787 = vsub.f32 %v2597, %v2786
          %v2788 = vand.u32 %v2787, 4294901760
          %2789 = vmatpush.msra.mxu0 %v2788
          %v2790 = vand.u32 %v2607, 4294901760
          %2791 = vmatmul.f32.gmra.mxu0 %v2790
          %v2792 = vpop.f32.mrf.mxu0
          %v2793 = vadd.f32 %v2754, %v2792
          %v2794 = vand.u32 %v2610, 4294901760
          %2795 = vmatmul.f32.gmra.mxu0 %v2794
          %v2796 = vpop.f32.mrf.mxu0
          %v2797 = vadd.f32 %v2760, %v2796
          %2798 = vdwg.mxu0
          %2799 = vmatpush.msra.mxu0 0.0
          %2800 = vmatpush.msra.mxu0 0.0
          %2801 = vmatpush.msra.mxu0 0.0
          %2802 = vmatpush.msra.mxu0 0.0
          %2803 = vmatpush.msra.mxu0 0.0
          %2804 = vmatpush.msra.mxu0 0.0
          %2805 = vmatpush.msra.mxu0 0.0
          %2806 = vmatpush.msra.mxu0 0.0
          %2807 = vmatpush.msra.mxu0 0.0
          %2808 = vmatpush.msra.mxu0 0.0
          %2809 = vmatpush.msra.mxu0 0.0
          %2810 = vmatpush.msra.mxu0 0.0
          %v2811 = vand.u32 %v2600, 4294901760
          %2812 = vmatpush.msra.mxu0 %v2811
          %v2813 = vand.u32 %v2599, 4294901760
          %2814 = vmatpush.msra.mxu0 %v2813
          %v2815 = vand.u32 %v2598, 4294901760
          %2816 = vmatpush.msra.mxu0 %v2815
          %v2817 = vand.u32 %v2597, 4294901760
          %2818 = vmatpush.msra.mxu0 %v2817
          %v2819 = vand.u32 %v2607, 4294901760
          %2820 = vmatmul.f32.gmra.mxu0 %v2819
          %v2821 = vpop.f32.mrf.mxu0
          %v2822 = vadd.f32 %v2793, %v2821
          %v2823 = vand.u32 %v2610, 4294901760
          %2824 = vmatmul.f32.gmra.mxu0 %v2823
          %v2825 = vpop.f32.mrf.mxu0
          %v2826 = vadd.f32 %v2797, %v2825
          %2827 = vdwg.mxu0
          %2828 = vst.msk [vmem:[%s555] sm:$0xff] %vm2605, %v2822
          %2829 = vst.msk [vmem:[%s555 + $0x8] sm:$0xff] %vm2605, %v2826
        $region88: #{tpu_custom_call.1} parent=79 // pred_fallthru
          _
        %s2830 = sand.u32 %s389, 1
        %s2831 = scalar_lea.sflag [#allocation8], %s2830
        %s2832 = sand.u32 %s389, 1
        %s2833 = smul.addr %s2832, 16
        %s2834 = scalar_lea.vmem [#allocation7], %s2833
        // Predicated region
        $region89: #{tpu_custom_call.1} parent=79 // pred_check
          %p2835 = pneg %p399
        $region90: #{tpu_custom_call.1} parent=79 // pred_check_branch
          %2837 = sbr.rel (%p2835) target = $region92
        $region91: #{tpu_custom_call.1} parent=79 // pred_region
          %2839 = vsyncadd %s2831, 0
          %s2840 = smul.addr %s33, 2
          %s2841 = smul.addr %s2840, 8
          %s2842 = scalar_lea.hbm %s15, %s2841
          %s2843 = sshll.u32 %s2834, 4
          %s2844 = int_to_ptr.vmem [resolvable:$true] %s2843
          %s2845 = sshll.u32 %s2842, 4
          %s2846 = int_to_ptr.hbm [resolvable:$true] %s2845
          %2851 = dma.vmem_to_hbm [thread:$0]  %s2844, 256, %s2846, %s2831, 128, 128, 8
        $region92: #{tpu_custom_call.1} parent=79 // pred_fallthru
          _
      $region80: #{tpu_custom_call.1} parent=5 // pred_fallthru
        _
      %p2852 = scmp.le.s32.totalorder 2, %s24
      // Predicated region
      $region93: #{tpu_custom_call.1} parent=5 // pred_check
        %p2853 = pneg %p2852
      $region94: #{tpu_custom_call.1} parent=5 // pred_check_branch
        %2855 = sbr.rel (%p2853) target = $region96
      $region95: #{tpu_custom_call.1} parent=5 // pred_region
        %s2856 = ssub.s32 %s24, 2
        // Predicated region
        $region97: #{tpu_custom_call.1} parent=95 // pred_check
          %p2857 = pneg %p405
        $region98: #{tpu_custom_call.1} parent=95 // pred_check_branch
          %2859 = sbr.rel (%p2857) target = $region100
        $region99: #{tpu_custom_call.1} parent=95 // pred_region
          %s2860 = sand.u32 %s390, 1
          %s2861 = scalar_lea.sflag [#allocation8], %s2860
          %s2862 = sand.u32 %s390, 1
          %s2863 = smul.addr %s2862, 16
          %s2864 = scalar_lea.vmem [#allocation7], %s2863
          %2866 = dma.done %s2861, 256
        $region100: #{tpu_custom_call.1} parent=95 // pred_fallthru
          _
      $region96: #{tpu_custom_call.1} parent=5 // pred_fallthru
        _
    $region6: #{tpu_custom_call.1} parent=1 // loop_footer
      %s28 = sadd.s32 1, %s24
    $region7: #{tpu_custom_call.1} parent=1 // loop_footer_branch
      %23 = sbr.rel target = $region3
    $region8: #{tpu_custom_call.1} parent=1 // loop_exit
      _
    %2867 = vsyncpa [#allocation8], 1
    %s2868 = scalar_lea.sflag [#allocation8], 1
    %2869 = vsyncpa %s2868, 1

</llo_original>
